<compile_context>
chip_gen: v7x
topology: tpu7x:2x2x1
jax: 0.10.0
libtpu: 0.0.40
codegen_flags: <defaults>
</compile_context>

<pallas_src>
import jax
import jax.numpy as jnp
from jax.experimental import pallas as pl
from jax.experimental.pallas import tpu as pltpu

_LANE = 128
_SUBLANE = 8


def _lstm_gates_ifog(pre, H, c):
    """Gate math with columns pre-ordered (i, f, o, g).

    One sigmoid over the first 3*H lanes and one tanh over the last H lanes
    (two contiguous EUP launches per step); all slices 128-lane aligned.
    """
    sig = jax.nn.sigmoid(pre[:, :3 * H])
    i = sig[:, 0 * H:1 * H]
    f = sig[:, 1 * H:2 * H]
    o = sig[:, 2 * H:3 * H]
    g = jnp.tanh(pre[:, 3 * H:4 * H])
    c_new = f * c + i * g
    h_new = o * jnp.tanh(c_new)
    return h_new, c_new


def _make_kernel(T, Bp):
    def kernel(x2d_ref,
               wih_e_ref, whh_e_ref, b_e_ref,
               w_d_ref, b_d_ref,
               wout_ref, bout_ref,
               out_ref):
        Hpe = whh_e_ref.shape[0]
        Hpd = b_d_ref.shape[1] // 4

        # Weights arrive pre-cast to bf16; load once.
        whh_e = whh_e_ref[...]
        w_d = w_d_ref[...]            # stacked [wih_d; whh_d], (Hpe+Hpd, 4Hpd)
        wout = wout_ref[...]

        # Hoisted input-side encoder gates: one big lane-dense matmul for all
        # T timesteps, encoder bias folded in.  Shape (T*Bp, 4*Hpe), f32.
        xg_all = (jnp.dot(x2d_ref[...], wih_e_ref[...],
                          preferred_element_type=jnp.float32)
                  + b_e_ref[...])

        # Hoisted decoder bias broadcast (not re-emitted every step).
        b_d = jnp.broadcast_to(b_d_ref[...], (Bp, 4 * Hpd))

        h_e = jnp.zeros((Bp, Hpe), jnp.float32)
        c_e = jnp.zeros((Bp, Hpe), jnp.float32)
        h_d = jnp.zeros((Bp, Hpd), jnp.float32)
        c_d = jnp.zeros((Bp, Hpd), jnp.float32)

        # Fused encoder/decoder recurrence, fully unrolled (T static & small).
        for t in range(T):
            # Encoder step: only the recurrent h @ W_hh matmul remains in the
            # loop; input-side gates + bias were precomputed above.  Bp=8 rows
            # make this slice a whole-vreg view.
            pre_e = (xg_all[t * Bp:(t + 1) * Bp, :]
                     + jnp.dot(h_e.astype(jnp.bfloat16), whh_e,
                               preferred_element_type=jnp.float32))
            h_e, c_e = _lstm_gates_ifog(pre_e, Hpe, c_e)

            # Decoder step: single fused matmul on concat([h_e, h_d]) against
            # the stacked [wih_d; whh_d] weight (one MXU push per step).
            hd_cat = jnp.concatenate([h_e, h_d], axis=-1).astype(jnp.bfloat16)
            pre_d = (jnp.dot(hd_cat, w_d,
                             preferred_element_type=jnp.float32)
                     + b_d)
            h_d, c_d = _lstm_gates_ifog(pre_d, Hpd, c_d)

        # Final lane-dense projection on the last decoder hidden state.
        out_ref[...] = (jnp.dot(h_d.astype(jnp.bfloat16), wout,
                                preferred_element_type=jnp.float32)
                        + bout_ref[...])

    return kernel


# ----------------------------- wrapper helpers -----------------------------

def _reorder_and_pad_gates(w, H, Hp):
    """(rows, 4*H) in PyTorch (i,f,g,o) order -> (rows, 4*Hp) in (i,f,o,g)
    order, each gate block zero-padded to Hp lanes."""
    rows = w.shape[0]
    w4 = w.reshape(rows, 4, H)
    w4 = w4[:, (0, 1, 3, 2), :]                      # i, f, o, g
    w4 = jnp.pad(w4, ((0, 0), (0, 0), (0, Hp - H)))
    return w4.reshape(rows, 4 * Hp)


def _pad_rows(w, rows_p):
    return jnp.pad(w, ((0, rows_p - w.shape[0]), (0, 0)))


def _pad_cols(w, cols_p):
    return jnp.pad(w, ((0, 0), (0, cols_p - w.shape[1])))


def autoencoder_forward(x_btd, params):
    """x_btd: [B, T, input_size] (PyTorch batch_first layout)."""
    x = jnp.transpose(x_btd, (1, 0, 2)).astype(jnp.float32)   # [T, B, Din]
    T, B, Din = x.shape
    He = params["whh_e"].shape[0]
    Hd = params["whh_d"].shape[0]
    Dout = params["wout"].shape[1]

    # Lane-pad hidden / output widths; sublane-pad the batch.
    Hpe = pl.cdiv(He, _LANE) * _LANE
    Hpd = pl.cdiv(Hd, _LANE) * _LANE
    Doutp = pl.cdiv(Dout, _LANE) * _LANE
    Bp = pl.cdiv(B, _SUBLANE) * _SUBLANE

    x = jnp.pad(x, ((0, 0), (0, Bp - B), (0, 0)))
    x2d = x.reshape(T * Bp, Din).astype(jnp.bfloat16)          # row = t*Bp + b

    # Encoder weights: gates reordered (i,f,o,g), lane-padded, bf16 MXU side.
    wih_e = _reorder_and_pad_gates(params["wih_e"], He, Hpe).astype(jnp.bfloat16)
    whh_e = _pad_rows(_reorder_and_pad_gates(params["whh_e"], He, Hpe),
                      Hpe).astype(jnp.bfloat16)
    b_e = _reorder_and_pad_gates(params["b_e"], He, Hpe)       # f32, (1, 4Hpe)

    # Decoder: stack [wih_d; whh_d] into one (Hpe+Hpd, 4*Hpd) weight.
    wih_d = _pad_rows(_reorder_and_pad_gates(params["wih_d"], Hd, Hpd), Hpe)
    whh_d = _pad_rows(_reorder_and_pad_gates(params["whh_d"], Hd, Hpd), Hpd)
    w_d = jnp.concatenate([wih_d, whh_d], axis=0).astype(jnp.bfloat16)
    b_d = _reorder_and_pad_gates(params["b_d"], Hd, Hpd)       # f32, (1, 4Hpd)

    # Output projection: rows padded to Hpd, columns lane-padded to 128.
    wout = _pad_cols(_pad_rows(params["wout"], Hpd), Doutp).astype(jnp.bfloat16)
    bout = _pad_cols(params["bout"], Doutp)                    # f32, (1, Doutp)

    vmem = pl.BlockSpec(memory_space=pltpu.MemorySpace.VMEM)
    inputs = (x2d, wih_e, whh_e, b_e, w_d, b_d, wout, bout)

    out = pl.pallas_call(
        _make_kernel(T, Bp),
        out_shape=jax.ShapeDtypeStruct((Bp, Doutp), jnp.float32),
        in_specs=[vmem] * len(inputs),
        out_specs=vmem,
        compiler_params=pltpu.CompilerParams(
            vmem_limit_bytes=32 * 1024 * 1024),
    )(*inputs)

    # Slice off batch / output-lane padding; matches outputs.unsqueeze(0).
    return out[None, :B, :Dout]


def init_params(key, input_size, enc_hidden, dec_hidden, output_size):
    """PyTorch-style uniform(-1/sqrt(H), 1/sqrt(H)) init.

    Weights stored transposed ([in_dim, 4H]); LSTM b_ih + b_hh fused.
    """
    ks = jax.random.split(key, 7)

    def u(k, shape, scale):
        return jax.random.uniform(k, shape, jnp.float32, -scale, scale)

    se = 1.0 / float(enc_hidden) ** 0.5
    sd = 1.0 / float(dec_hidden) ** 0.5
    return {
        "wih_e": u(ks[0], (input_size, 4 * enc_hidden), se),
        "whh_e": u(ks[1], (enc_hidden, 4 * enc_hidden), se),
        "b_e": u(ks[2], (1, 4 * enc_hidden), se),
        "wih_d": u(ks[3], (enc_hidden, 4 * dec_hidden), sd),
        "whh_d": u(ks[4], (dec_hidden, 4 * dec_hidden), sd),
        "b_d": u(ks[5], (1, 4 * dec_hidden), sd),
        "wout": u(ks[6], (dec_hidden, output_size), sd),
        "bout": jnp.zeros((1, output_size), jnp.float32),
    }


def reference_forward(x_btd, params):
    """Plain-JAX reference mirroring the kernel math (bf16 MXU operands,
    f32 accumulation, PyTorch (i,f,g,o) gate order)."""
    x = jnp.transpose(x_btd, (1, 0, 2)).astype(jnp.float32)
    T, B, Din = x.shape
    He = params["whh_e"].shape[0]
    Hd = params["whh_d"].shape[0]

    def dot16(a, b):
        return jnp.dot(a.astype(jnp.bfloat16), b.astype(jnp.bfloat16),
                       preferred_element_type=jnp.float32)

    def gates(pre, c, H):
        i = jax.nn.sigmoid(pre[:, 0 * H:1 * H])
        f = jax.nn.sigmoid(pre[:, 1 * H:2 * H])
        g = jnp.tanh(pre[:, 2 * H:3 * H])
        o = jax.nn.sigmoid(pre[:, 3 * H:4 * H])
        c_new = f * c + i * g
        return o * jnp.tanh(c_new), c_new

    xg = (dot16(x.reshape(T * B, Din), params["wih_e"])
          + params["b_e"]).reshape(T, B, 4 * He)

    h_e = jnp.zeros((B, He), jnp.float32)
    c_e = jnp.zeros((B, He), jnp.float32)
    h_d = jnp.zeros((B, Hd), jnp.float32)
    c_d = jnp.zeros((B, Hd), jnp.float32)
    for t in range(T):
        h_e, c_e = gates(xg[t] + dot16(h_e, params["whh_e"]), c_e, He)
        h_d, c_d = gates(dot16(h_e, params["wih_d"])
                         + dot16(h_d, params["whh_d"])
                         + params["b_d"], c_d, Hd)

    out = dot16(h_d, params["wout"]) + params["bout"]
    return out[None, ...]


if __name__ == "__main__":
    num_layers = 1
    batch, seq_len = 2, 8
    input_size, enc_hidden, dec_hidden, output_size = 16, 32, 32, 16

    key = jax.random.PRNGKey(0)
    kx, kp = jax.random.split(key)
    x = jax.random.normal(kx, (batch, seq_len, input_size), jnp.float32)
    params = init_params(kp, input_size, enc_hidden, dec_hidden, output_size)

    out = autoencoder_forward(x, params)
    out = jax.block_until_ready(out)

    ref = reference_forward(x, params)
    assert out.shape == (1, batch, output_size), out.shape
    # bf16 MXU operands in both kernel and reference; tolerance covers
    # EUP-vs-XLA transcendental / accumulation-order differences.
    assert jnp.allclose(out, ref, atol=3e-2, rtol=3e-2), \
        float(jnp.max(jnp.abs(out - ref)))
    print("KERNEL_OK")
</pallas_src>

<mosaic_0001>
module attributes {stable_mosaic.version = 11 : i64} {
  func.func @kernel(%arg0: memref<64x16xbf16, #tpu.memory_space<vmem>>, %arg1: memref<16x512xbf16, #tpu.memory_space<vmem>>, %arg2: memref<128x512xbf16, #tpu.memory_space<vmem>>, %arg3: memref<1x512xf32, #tpu.memory_space<vmem>>, %arg4: memref<256x512xbf16, #tpu.memory_space<vmem>>, %arg5: memref<1x512xf32, #tpu.memory_space<vmem>>, %arg6: memref<128x128xbf16, #tpu.memory_space<vmem>>, %arg7: memref<1x128xf32, #tpu.memory_space<vmem>>, %arg8: memref<8x128xf32, #tpu.memory_space<vmem>>) attributes {dimension_semantics = [], scalar_prefetch = 0 : i64, scratch_operands = 0 : i64, tpu.core_type = #tpu.core_type<tc>} {
    %c0 = arith.constant 0 : index
    %c0_0 = arith.constant 0 : index
    %0 = vector.load %arg2[%c0, %c0_0] : memref<128x512xbf16, #tpu.memory_space<vmem>>, vector<128x512xbf16>
    %c0_1 = arith.constant 0 : index
    %c0_2 = arith.constant 0 : index
    %1 = vector.load %arg4[%c0_1, %c0_2] : memref<256x512xbf16, #tpu.memory_space<vmem>>, vector<256x512xbf16>
    %c0_3 = arith.constant 0 : index
    %c0_4 = arith.constant 0 : index
    %2 = vector.load %arg6[%c0_3, %c0_4] : memref<128x128xbf16, #tpu.memory_space<vmem>>, vector<128x128xbf16>
    %c0_5 = arith.constant 0 : index
    %c0_6 = arith.constant 0 : index
    %3 = vector.load %arg0[%c0_5, %c0_6] : memref<64x16xbf16, #tpu.memory_space<vmem>>, vector<64x16xbf16>
    %c0_7 = arith.constant 0 : index
    %c0_8 = arith.constant 0 : index
    %4 = vector.load %arg1[%c0_7, %c0_8] : memref<16x512xbf16, #tpu.memory_space<vmem>>, vector<16x512xbf16>
    %cst = arith.constant dense<0.000000e+00> : vector<64x512xf32>
    %5 = tpu.matmul %3, %4, %cst {dimension_numbers = #tpu.dot_dimension_numbers<[1], [0], [0], [1], [0, 0, 1, 1], [], []>} : vector<64x16xbf16>, vector<16x512xbf16>, vector<64x512xf32> -> vector<64x512xf32>
    %c0_9 = arith.constant 0 : index
    %c0_10 = arith.constant 0 : index
    %6 = vector.load %arg3[%c0_9, %c0_10] : memref<1x512xf32, #tpu.memory_space<vmem>>, vector<1x512xf32>
    %7 = vector.broadcast %6 : vector<1x512xf32> to vector<64x512xf32>
    %8 = arith.addf %5, %7 : vector<64x512xf32>
    %c0_11 = arith.constant 0 : index
    %c0_12 = arith.constant 0 : index
    %9 = vector.load %arg5[%c0_11, %c0_12] : memref<1x512xf32, #tpu.memory_space<vmem>>, vector<1x512xf32>
    %10 = vector.shape_cast %9 : vector<1x512xf32> to vector<1x512xf32>
    %11 = vector.broadcast %10 : vector<1x512xf32> to vector<8x512xf32>
    %cst_13 = arith.constant 0.000000e+00 : f32
    %12 = vector.broadcast %cst_13 : f32 to vector<8x128xf32>
    %cst_14 = arith.constant 0.000000e+00 : f32
    %13 = vector.broadcast %cst_14 : f32 to vector<8x128xf32>
    %cst_15 = arith.constant 0.000000e+00 : f32
    %14 = vector.broadcast %cst_15 : f32 to vector<8x128xf32>
    %cst_16 = arith.constant 0.000000e+00 : f32
    %15 = vector.broadcast %cst_16 : f32 to vector<8x128xf32>
    %16 = vector.extract_strided_slice %8 {offsets = [0, 0], sizes = [8, 512], strides = [1, 1]} : vector<64x512xf32> to vector<8x512xf32>
    %17 = arith.truncf %12 : vector<8x128xf32> to vector<8x128xbf16>
    %cst_17 = arith.constant dense<0.000000e+00> : vector<8x512xf32>
    %18 = tpu.matmul %17, %0, %cst_17 {dimension_numbers = #tpu.dot_dimension_numbers<[1], [0], [0], [1], [0, 0, 1, 1], [], []>} : vector<8x128xbf16>, vector<128x512xbf16>, vector<8x512xf32> -> vector<8x512xf32>
    %19 = arith.addf %16, %18 : vector<8x512xf32>
    %20 = vector.extract_strided_slice %19 {offsets = [0, 0], sizes = [8, 384], strides = [1, 1]} : vector<8x512xf32> to vector<8x384xf32>
    %21 = arith.negf %20 : vector<8x384xf32>
    %22 = math.exp %21 : vector<8x384xf32>
    %cst_18 = arith.constant 1.000000e+00 : f32
    %23 = vector.broadcast %cst_18 : f32 to vector<8x384xf32>
    %24 = arith.addf %23, %22 : vector<8x384xf32>
    %25 = arith.divf %23, %24 : vector<8x384xf32>
    %26 = vector.extract_strided_slice %25 {offsets = [0, 0], sizes = [8, 128], strides = [1, 1]} : vector<8x384xf32> to vector<8x128xf32>
    %27 = vector.extract_strided_slice %25 {offsets = [0, 128], sizes = [8, 128], strides = [1, 1]} : vector<8x384xf32> to vector<8x128xf32>
    %28 = vector.extract_strided_slice %25 {offsets = [0, 256], sizes = [8, 128], strides = [1, 1]} : vector<8x384xf32> to vector<8x128xf32>
    %29 = vector.extract_strided_slice %19 {offsets = [0, 384], sizes = [8, 128], strides = [1, 1]} : vector<8x512xf32> to vector<8x128xf32>
    %30 = math.tanh %29 : vector<8x128xf32>
    %31 = arith.mulf %27, %13 : vector<8x128xf32>
    %32 = arith.mulf %26, %30 : vector<8x128xf32>
    %33 = arith.addf %31, %32 : vector<8x128xf32>
    %34 = math.tanh %33 : vector<8x128xf32>
    %35 = arith.mulf %28, %34 : vector<8x128xf32>
    %36 = tpu.concatenate %35, %14 in 1 : vector<8x128xf32>, vector<8x128xf32> -> vector<8x256xf32>
    %37 = arith.truncf %36 : vector<8x256xf32> to vector<8x256xbf16>
    %cst_19 = arith.constant dense<0.000000e+00> : vector<8x512xf32>
    %38 = tpu.matmul %37, %1, %cst_19 {dimension_numbers = #tpu.dot_dimension_numbers<[1], [0], [0], [1], [0, 0, 1, 1], [], []>} : vector<8x256xbf16>, vector<256x512xbf16>, vector<8x512xf32> -> vector<8x512xf32>
    %39 = arith.addf %38, %11 : vector<8x512xf32>
    %40 = vector.extract_strided_slice %39 {offsets = [0, 0], sizes = [8, 384], strides = [1, 1]} : vector<8x512xf32> to vector<8x384xf32>
    %41 = arith.negf %40 : vector<8x384xf32>
    %42 = math.exp %41 : vector<8x384xf32>
    %cst_20 = arith.constant 1.000000e+00 : f32
    %43 = vector.broadcast %cst_20 : f32 to vector<8x384xf32>
    %44 = arith.addf %43, %42 : vector<8x384xf32>
    %45 = arith.divf %43, %44 : vector<8x384xf32>
    %46 = vector.extract_strided_slice %45 {offsets = [0, 0], sizes = [8, 128], strides = [1, 1]} : vector<8x384xf32> to vector<8x128xf32>
    %47 = vector.extract_strided_slice %45 {offsets = [0, 128], sizes = [8, 128], strides = [1, 1]} : vector<8x384xf32> to vector<8x128xf32>
    %48 = vector.extract_strided_slice %45 {offsets = [0, 256], sizes = [8, 128], strides = [1, 1]} : vector<8x384xf32> to vector<8x128xf32>
    %49 = vector.extract_strided_slice %39 {offsets = [0, 384], sizes = [8, 128], strides = [1, 1]} : vector<8x512xf32> to vector<8x128xf32>
    %50 = math.tanh %49 : vector<8x128xf32>
    %51 = arith.mulf %47, %15 : vector<8x128xf32>
    %52 = arith.mulf %46, %50 : vector<8x128xf32>
    %53 = arith.addf %51, %52 : vector<8x128xf32>
    %54 = math.tanh %53 : vector<8x128xf32>
    %55 = arith.mulf %48, %54 : vector<8x128xf32>
    %56 = vector.extract_strided_slice %8 {offsets = [8, 0], sizes = [8, 512], strides = [1, 1]} : vector<64x512xf32> to vector<8x512xf32>
    %57 = arith.truncf %35 : vector<8x128xf32> to vector<8x128xbf16>
    %cst_21 = arith.constant dense<0.000000e+00> : vector<8x512xf32>
    %58 = tpu.matmul %57, %0, %cst_21 {dimension_numbers = #tpu.dot_dimension_numbers<[1], [0], [0], [1], [0, 0, 1, 1], [], []>} : vector<8x128xbf16>, vector<128x512xbf16>, vector<8x512xf32> -> vector<8x512xf32>
    %59 = arith.addf %56, %58 : vector<8x512xf32>
    %60 = vector.extract_strided_slice %59 {offsets = [0, 0], sizes = [8, 384], strides = [1, 1]} : vector<8x512xf32> to vector<8x384xf32>
    %61 = arith.negf %60 : vector<8x384xf32>
    %62 = math.exp %61 : vector<8x384xf32>
    %cst_22 = arith.constant 1.000000e+00 : f32
    %63 = vector.broadcast %cst_22 : f32 to vector<8x384xf32>
    %64 = arith.addf %63, %62 : vector<8x384xf32>
    %65 = arith.divf %63, %64 : vector<8x384xf32>
    %66 = vector.extract_strided_slice %65 {offsets = [0, 0], sizes = [8, 128], strides = [1, 1]} : vector<8x384xf32> to vector<8x128xf32>
    %67 = vector.extract_strided_slice %65 {offsets = [0, 128], sizes = [8, 128], strides = [1, 1]} : vector<8x384xf32> to vector<8x128xf32>
    %68 = vector.extract_strided_slice %65 {offsets = [0, 256], sizes = [8, 128], strides = [1, 1]} : vector<8x384xf32> to vector<8x128xf32>
    %69 = vector.extract_strided_slice %59 {offsets = [0, 384], sizes = [8, 128], strides = [1, 1]} : vector<8x512xf32> to vector<8x128xf32>
    %70 = math.tanh %69 : vector<8x128xf32>
    %71 = arith.mulf %67, %33 : vector<8x128xf32>
    %72 = arith.mulf %66, %70 : vector<8x128xf32>
    %73 = arith.addf %71, %72 : vector<8x128xf32>
    %74 = math.tanh %73 : vector<8x128xf32>
    %75 = arith.mulf %68, %74 : vector<8x128xf32>
    %76 = tpu.concatenate %75, %55 in 1 : vector<8x128xf32>, vector<8x128xf32> -> vector<8x256xf32>
    %77 = arith.truncf %76 : vector<8x256xf32> to vector<8x256xbf16>
    %cst_23 = arith.constant dense<0.000000e+00> : vector<8x512xf32>
    %78 = tpu.matmul %77, %1, %cst_23 {dimension_numbers = #tpu.dot_dimension_numbers<[1], [0], [0], [1], [0, 0, 1, 1], [], []>} : vector<8x256xbf16>, vector<256x512xbf16>, vector<8x512xf32> -> vector<8x512xf32>
    %79 = arith.addf %78, %11 : vector<8x512xf32>
    %80 = vector.extract_strided_slice %79 {offsets = [0, 0], sizes = [8, 384], strides = [1, 1]} : vector<8x512xf32> to vector<8x384xf32>
    %81 = arith.negf %80 : vector<8x384xf32>
    %82 = math.exp %81 : vector<8x384xf32>
    %cst_24 = arith.constant 1.000000e+00 : f32
    %83 = vector.broadcast %cst_24 : f32 to vector<8x384xf32>
    %84 = arith.addf %83, %82 : vector<8x384xf32>
    %85 = arith.divf %83, %84 : vector<8x384xf32>
    %86 = vector.extract_strided_slice %85 {offsets = [0, 0], sizes = [8, 128], strides = [1, 1]} : vector<8x384xf32> to vector<8x128xf32>
    %87 = vector.extract_strided_slice %85 {offsets = [0, 128], sizes = [8, 128], strides = [1, 1]} : vector<8x384xf32> to vector<8x128xf32>
    %88 = vector.extract_strided_slice %85 {offsets = [0, 256], sizes = [8, 128], strides = [1, 1]} : vector<8x384xf32> to vector<8x128xf32>
    %89 = vector.extract_strided_slice %79 {offsets = [0, 384], sizes = [8, 128], strides = [1, 1]} : vector<8x512xf32> to vector<8x128xf32>
    %90 = math.tanh %89 : vector<8x128xf32>
    %91 = arith.mulf %87, %53 : vector<8x128xf32>
    %92 = arith.mulf %86, %90 : vector<8x128xf32>
    %93 = arith.addf %91, %92 : vector<8x128xf32>
    %94 = math.tanh %93 : vector<8x128xf32>
    %95 = arith.mulf %88, %94 : vector<8x128xf32>
    %96 = vector.extract_strided_slice %8 {offsets = [16, 0], sizes = [8, 512], strides = [1, 1]} : vector<64x512xf32> to vector<8x512xf32>
    %97 = arith.truncf %75 : vector<8x128xf32> to vector<8x128xbf16>
    %cst_25 = arith.constant dense<0.000000e+00> : vector<8x512xf32>
    %98 = tpu.matmul %97, %0, %cst_25 {dimension_numbers = #tpu.dot_dimension_numbers<[1], [0], [0], [1], [0, 0, 1, 1], [], []>} : vector<8x128xbf16>, vector<128x512xbf16>, vector<8x512xf32> -> vector<8x512xf32>
    %99 = arith.addf %96, %98 : vector<8x512xf32>
    %100 = vector.extract_strided_slice %99 {offsets = [0, 0], sizes = [8, 384], strides = [1, 1]} : vector<8x512xf32> to vector<8x384xf32>
    %101 = arith.negf %100 : vector<8x384xf32>
    %102 = math.exp %101 : vector<8x384xf32>
    %cst_26 = arith.constant 1.000000e+00 : f32
    %103 = vector.broadcast %cst_26 : f32 to vector<8x384xf32>
    %104 = arith.addf %103, %102 : vector<8x384xf32>
    %105 = arith.divf %103, %104 : vector<8x384xf32>
    %106 = vector.extract_strided_slice %105 {offsets = [0, 0], sizes = [8, 128], strides = [1, 1]} : vector<8x384xf32> to vector<8x128xf32>
    %107 = vector.extract_strided_slice %105 {offsets = [0, 128], sizes = [8, 128], strides = [1, 1]} : vector<8x384xf32> to vector<8x128xf32>
    %108 = vector.extract_strided_slice %105 {offsets = [0, 256], sizes = [8, 128], strides = [1, 1]} : vector<8x384xf32> to vector<8x128xf32>
    %109 = vector.extract_strided_slice %99 {offsets = [0, 384], sizes = [8, 128], strides = [1, 1]} : vector<8x512xf32> to vector<8x128xf32>
    %110 = math.tanh %109 : vector<8x128xf32>
    %111 = arith.mulf %107, %73 : vector<8x128xf32>
    %112 = arith.mulf %106, %110 : vector<8x128xf32>
    %113 = arith.addf %111, %112 : vector<8x128xf32>
    %114 = math.tanh %113 : vector<8x128xf32>
    %115 = arith.mulf %108, %114 : vector<8x128xf32>
    %116 = tpu.concatenate %115, %95 in 1 : vector<8x128xf32>, vector<8x128xf32> -> vector<8x256xf32>
    %117 = arith.truncf %116 : vector<8x256xf32> to vector<8x256xbf16>
    %cst_27 = arith.constant dense<0.000000e+00> : vector<8x512xf32>
    %118 = tpu.matmul %117, %1, %cst_27 {dimension_numbers = #tpu.dot_dimension_numbers<[1], [0], [0], [1], [0, 0, 1, 1], [], []>} : vector<8x256xbf16>, vector<256x512xbf16>, vector<8x512xf32> -> vector<8x512xf32>
    %119 = arith.addf %118, %11 : vector<8x512xf32>
    %120 = vector.extract_strided_slice %119 {offsets = [0, 0], sizes = [8, 384], strides = [1, 1]} : vector<8x512xf32> to vector<8x384xf32>
    %121 = arith.negf %120 : vector<8x384xf32>
    %122 = math.exp %121 : vector<8x384xf32>
    %cst_28 = arith.constant 1.000000e+00 : f32
    %123 = vector.broadcast %cst_28 : f32 to vector<8x384xf32>
    %124 = arith.addf %123, %122 : vector<8x384xf32>
    %125 = arith.divf %123, %124 : vector<8x384xf32>
    %126 = vector.extract_strided_slice %125 {offsets = [0, 0], sizes = [8, 128], strides = [1, 1]} : vector<8x384xf32> to vector<8x128xf32>
    %127 = vector.extract_strided_slice %125 {offsets = [0, 128], sizes = [8, 128], strides = [1, 1]} : vector<8x384xf32> to vector<8x128xf32>
    %128 = vector.extract_strided_slice %125 {offsets = [0, 256], sizes = [8, 128], strides = [1, 1]} : vector<8x384xf32> to vector<8x128xf32>
    %129 = vector.extract_strided_slice %119 {offsets = [0, 384], sizes = [8, 128], strides = [1, 1]} : vector<8x512xf32> to vector<8x128xf32>
    %130 = math.tanh %129 : vector<8x128xf32>
    %131 = arith.mulf %127, %93 : vector<8x128xf32>
    %132 = arith.mulf %126, %130 : vector<8x128xf32>
    %133 = arith.addf %131, %132 : vector<8x128xf32>
    %134 = math.tanh %133 : vector<8x128xf32>
    %135 = arith.mulf %128, %134 : vector<8x128xf32>
    %136 = vector.extract_strided_slice %8 {offsets = [24, 0], sizes = [8, 512], strides = [1, 1]} : vector<64x512xf32> to vector<8x512xf32>
    %137 = arith.truncf %115 : vector<8x128xf32> to vector<8x128xbf16>
    %cst_29 = arith.constant dense<0.000000e+00> : vector<8x512xf32>
    %138 = tpu.matmul %137, %0, %cst_29 {dimension_numbers = #tpu.dot_dimension_numbers<[1], [0], [0], [1], [0, 0, 1, 1], [], []>} : vector<8x128xbf16>, vector<128x512xbf16>, vector<8x512xf32> -> vector<8x512xf32>
    %139 = arith.addf %136, %138 : vector<8x512xf32>
    %140 = vector.extract_strided_slice %139 {offsets = [0, 0], sizes = [8, 384], strides = [1, 1]} : vector<8x512xf32> to vector<8x384xf32>
    %141 = arith.negf %140 : vector<8x384xf32>
    %142 = math.exp %141 : vector<8x384xf32>
    %cst_30 = arith.constant 1.000000e+00 : f32
    %143 = vector.broadcast %cst_30 : f32 to vector<8x384xf32>
    %144 = arith.addf %143, %142 : vector<8x384xf32>
    %145 = arith.divf %143, %144 : vector<8x384xf32>
    %146 = vector.extract_strided_slice %145 {offsets = [0, 0], sizes = [8, 128], strides = [1, 1]} : vector<8x384xf32> to vector<8x128xf32>
    %147 = vector.extract_strided_slice %145 {offsets = [0, 128], sizes = [8, 128], strides = [1, 1]} : vector<8x384xf32> to vector<8x128xf32>
    %148 = vector.extract_strided_slice %145 {offsets = [0, 256], sizes = [8, 128], strides = [1, 1]} : vector<8x384xf32> to vector<8x128xf32>
    %149 = vector.extract_strided_slice %139 {offsets = [0, 384], sizes = [8, 128], strides = [1, 1]} : vector<8x512xf32> to vector<8x128xf32>
    %150 = math.tanh %149 : vector<8x128xf32>
    %151 = arith.mulf %147, %113 : vector<8x128xf32>
    %152 = arith.mulf %146, %150 : vector<8x128xf32>
    %153 = arith.addf %151, %152 : vector<8x128xf32>
    %154 = math.tanh %153 : vector<8x128xf32>
    %155 = arith.mulf %148, %154 : vector<8x128xf32>
    %156 = tpu.concatenate %155, %135 in 1 : vector<8x128xf32>, vector<8x128xf32> -> vector<8x256xf32>
    %157 = arith.truncf %156 : vector<8x256xf32> to vector<8x256xbf16>
    %cst_31 = arith.constant dense<0.000000e+00> : vector<8x512xf32>
    %158 = tpu.matmul %157, %1, %cst_31 {dimension_numbers = #tpu.dot_dimension_numbers<[1], [0], [0], [1], [0, 0, 1, 1], [], []>} : vector<8x256xbf16>, vector<256x512xbf16>, vector<8x512xf32> -> vector<8x512xf32>
    %159 = arith.addf %158, %11 : vector<8x512xf32>
    %160 = vector.extract_strided_slice %159 {offsets = [0, 0], sizes = [8, 384], strides = [1, 1]} : vector<8x512xf32> to vector<8x384xf32>
    %161 = arith.negf %160 : vector<8x384xf32>
    %162 = math.exp %161 : vector<8x384xf32>
    %cst_32 = arith.constant 1.000000e+00 : f32
    %163 = vector.broadcast %cst_32 : f32 to vector<8x384xf32>
    %164 = arith.addf %163, %162 : vector<8x384xf32>
    %165 = arith.divf %163, %164 : vector<8x384xf32>
    %166 = vector.extract_strided_slice %165 {offsets = [0, 0], sizes = [8, 128], strides = [1, 1]} : vector<8x384xf32> to vector<8x128xf32>
    %167 = vector.extract_strided_slice %165 {offsets = [0, 128], sizes = [8, 128], strides = [1, 1]} : vector<8x384xf32> to vector<8x128xf32>
    %168 = vector.extract_strided_slice %165 {offsets = [0, 256], sizes = [8, 128], strides = [1, 1]} : vector<8x384xf32> to vector<8x128xf32>
    %169 = vector.extract_strided_slice %159 {offsets = [0, 384], sizes = [8, 128], strides = [1, 1]} : vector<8x512xf32> to vector<8x128xf32>
    %170 = math.tanh %169 : vector<8x128xf32>
    %171 = arith.mulf %167, %133 : vector<8x128xf32>
    %172 = arith.mulf %166, %170 : vector<8x128xf32>
    %173 = arith.addf %171, %172 : vector<8x128xf32>
    %174 = math.tanh %173 : vector<8x128xf32>
    %175 = arith.mulf %168, %174 : vector<8x128xf32>
    %176 = vector.extract_strided_slice %8 {offsets = [32, 0], sizes = [8, 512], strides = [1, 1]} : vector<64x512xf32> to vector<8x512xf32>
    %177 = arith.truncf %155 : vector<8x128xf32> to vector<8x128xbf16>
    %cst_33 = arith.constant dense<0.000000e+00> : vector<8x512xf32>
    %178 = tpu.matmul %177, %0, %cst_33 {dimension_numbers = #tpu.dot_dimension_numbers<[1], [0], [0], [1], [0, 0, 1, 1], [], []>} : vector<8x128xbf16>, vector<128x512xbf16>, vector<8x512xf32> -> vector<8x512xf32>
    %179 = arith.addf %176, %178 : vector<8x512xf32>
    %180 = vector.extract_strided_slice %179 {offsets = [0, 0], sizes = [8, 384], strides = [1, 1]} : vector<8x512xf32> to vector<8x384xf32>
    %181 = arith.negf %180 : vector<8x384xf32>
    %182 = math.exp %181 : vector<8x384xf32>
    %cst_34 = arith.constant 1.000000e+00 : f32
    %183 = vector.broadcast %cst_34 : f32 to vector<8x384xf32>
    %184 = arith.addf %183, %182 : vector<8x384xf32>
    %185 = arith.divf %183, %184 : vector<8x384xf32>
    %186 = vector.extract_strided_slice %185 {offsets = [0, 0], sizes = [8, 128], strides = [1, 1]} : vector<8x384xf32> to vector<8x128xf32>
    %187 = vector.extract_strided_slice %185 {offsets = [0, 128], sizes = [8, 128], strides = [1, 1]} : vector<8x384xf32> to vector<8x128xf32>
    %188 = vector.extract_strided_slice %185 {offsets = [0, 256], sizes = [8, 128], strides = [1, 1]} : vector<8x384xf32> to vector<8x128xf32>
    %189 = vector.extract_strided_slice %179 {offsets = [0, 384], sizes = [8, 128], strides = [1, 1]} : vector<8x512xf32> to vector<8x128xf32>
    %190 = math.tanh %189 : vector<8x128xf32>
    %191 = arith.mulf %187, %153 : vector<8x128xf32>
    %192 = arith.mulf %186, %190 : vector<8x128xf32>
    %193 = arith.addf %191, %192 : vector<8x128xf32>
    %194 = math.tanh %193 : vector<8x128xf32>
    %195 = arith.mulf %188, %194 : vector<8x128xf32>
    %196 = tpu.concatenate %195, %175 in 1 : vector<8x128xf32>, vector<8x128xf32> -> vector<8x256xf32>
    %197 = arith.truncf %196 : vector<8x256xf32> to vector<8x256xbf16>
    %cst_35 = arith.constant dense<0.000000e+00> : vector<8x512xf32>
    %198 = tpu.matmul %197, %1, %cst_35 {dimension_numbers = #tpu.dot_dimension_numbers<[1], [0], [0], [1], [0, 0, 1, 1], [], []>} : vector<8x256xbf16>, vector<256x512xbf16>, vector<8x512xf32> -> vector<8x512xf32>
    %199 = arith.addf %198, %11 : vector<8x512xf32>
    %200 = vector.extract_strided_slice %199 {offsets = [0, 0], sizes = [8, 384], strides = [1, 1]} : vector<8x512xf32> to vector<8x384xf32>
    %201 = arith.negf %200 : vector<8x384xf32>
    %202 = math.exp %201 : vector<8x384xf32>
    %cst_36 = arith.constant 1.000000e+00 : f32
    %203 = vector.broadcast %cst_36 : f32 to vector<8x384xf32>
    %204 = arith.addf %203, %202 : vector<8x384xf32>
    %205 = arith.divf %203, %204 : vector<8x384xf32>
    %206 = vector.extract_strided_slice %205 {offsets = [0, 0], sizes = [8, 128], strides = [1, 1]} : vector<8x384xf32> to vector<8x128xf32>
    %207 = vector.extract_strided_slice %205 {offsets = [0, 128], sizes = [8, 128], strides = [1, 1]} : vector<8x384xf32> to vector<8x128xf32>
    %208 = vector.extract_strided_slice %205 {offsets = [0, 256], sizes = [8, 128], strides = [1, 1]} : vector<8x384xf32> to vector<8x128xf32>
    %209 = vector.extract_strided_slice %199 {offsets = [0, 384], sizes = [8, 128], strides = [1, 1]} : vector<8x512xf32> to vector<8x128xf32>
    %210 = math.tanh %209 : vector<8x128xf32>
    %211 = arith.mulf %207, %173 : vector<8x128xf32>
    %212 = arith.mulf %206, %210 : vector<8x128xf32>
    %213 = arith.addf %211, %212 : vector<8x128xf32>
    %214 = math.tanh %213 : vector<8x128xf32>
    %215 = arith.mulf %208, %214 : vector<8x128xf32>
    %216 = vector.extract_strided_slice %8 {offsets = [40, 0], sizes = [8, 512], strides = [1, 1]} : vector<64x512xf32> to vector<8x512xf32>
    %217 = arith.truncf %195 : vector<8x128xf32> to vector<8x128xbf16>
    %cst_37 = arith.constant dense<0.000000e+00> : vector<8x512xf32>
    %218 = tpu.matmul %217, %0, %cst_37 {dimension_numbers = #tpu.dot_dimension_numbers<[1], [0], [0], [1], [0, 0, 1, 1], [], []>} : vector<8x128xbf16>, vector<128x512xbf16>, vector<8x512xf32> -> vector<8x512xf32>
    %219 = arith.addf %216, %218 : vector<8x512xf32>
    %220 = vector.extract_strided_slice %219 {offsets = [0, 0], sizes = [8, 384], strides = [1, 1]} : vector<8x512xf32> to vector<8x384xf32>
    %221 = arith.negf %220 : vector<8x384xf32>
    %222 = math.exp %221 : vector<8x384xf32>
    %cst_38 = arith.constant 1.000000e+00 : f32
    %223 = vector.broadcast %cst_38 : f32 to vector<8x384xf32>
    %224 = arith.addf %223, %222 : vector<8x384xf32>
    %225 = arith.divf %223, %224 : vector<8x384xf32>
    %226 = vector.extract_strided_slice %225 {offsets = [0, 0], sizes = [8, 128], strides = [1, 1]} : vector<8x384xf32> to vector<8x128xf32>
    %227 = vector.extract_strided_slice %225 {offsets = [0, 128], sizes = [8, 128], strides = [1, 1]} : vector<8x384xf32> to vector<8x128xf32>
    %228 = vector.extract_strided_slice %225 {offsets = [0, 256], sizes = [8, 128], strides = [1, 1]} : vector<8x384xf32> to vector<8x128xf32>
    %229 = vector.extract_strided_slice %219 {offsets = [0, 384], sizes = [8, 128], strides = [1, 1]} : vector<8x512xf32> to vector<8x128xf32>
    %230 = math.tanh %229 : vector<8x128xf32>
    %231 = arith.mulf %227, %193 : vector<8x128xf32>
    %232 = arith.mulf %226, %230 : vector<8x128xf32>
    %233 = arith.addf %231, %232 : vector<8x128xf32>
    %234 = math.tanh %233 : vector<8x128xf32>
    %235 = arith.mulf %228, %234 : vector<8x128xf32>
    %236 = tpu.concatenate %235, %215 in 1 : vector<8x128xf32>, vector<8x128xf32> -> vector<8x256xf32>
    %237 = arith.truncf %236 : vector<8x256xf32> to vector<8x256xbf16>
    %cst_39 = arith.constant dense<0.000000e+00> : vector<8x512xf32>
    %238 = tpu.matmul %237, %1, %cst_39 {dimension_numbers = #tpu.dot_dimension_numbers<[1], [0], [0], [1], [0, 0, 1, 1], [], []>} : vector<8x256xbf16>, vector<256x512xbf16>, vector<8x512xf32> -> vector<8x512xf32>
    %239 = arith.addf %238, %11 : vector<8x512xf32>
    %240 = vector.extract_strided_slice %239 {offsets = [0, 0], sizes = [8, 384], strides = [1, 1]} : vector<8x512xf32> to vector<8x384xf32>
    %241 = arith.negf %240 : vector<8x384xf32>
    %242 = math.exp %241 : vector<8x384xf32>
    %cst_40 = arith.constant 1.000000e+00 : f32
    %243 = vector.broadcast %cst_40 : f32 to vector<8x384xf32>
    %244 = arith.addf %243, %242 : vector<8x384xf32>
    %245 = arith.divf %243, %244 : vector<8x384xf32>
    %246 = vector.extract_strided_slice %245 {offsets = [0, 0], sizes = [8, 128], strides = [1, 1]} : vector<8x384xf32> to vector<8x128xf32>
    %247 = vector.extract_strided_slice %245 {offsets = [0, 128], sizes = [8, 128], strides = [1, 1]} : vector<8x384xf32> to vector<8x128xf32>
    %248 = vector.extract_strided_slice %245 {offsets = [0, 256], sizes = [8, 128], strides = [1, 1]} : vector<8x384xf32> to vector<8x128xf32>
    %249 = vector.extract_strided_slice %239 {offsets = [0, 384], sizes = [8, 128], strides = [1, 1]} : vector<8x512xf32> to vector<8x128xf32>
    %250 = math.tanh %249 : vector<8x128xf32>
    %251 = arith.mulf %247, %213 : vector<8x128xf32>
    %252 = arith.mulf %246, %250 : vector<8x128xf32>
    %253 = arith.addf %251, %252 : vector<8x128xf32>
    %254 = math.tanh %253 : vector<8x128xf32>
    %255 = arith.mulf %248, %254 : vector<8x128xf32>
    %256 = vector.extract_strided_slice %8 {offsets = [48, 0], sizes = [8, 512], strides = [1, 1]} : vector<64x512xf32> to vector<8x512xf32>
    %257 = arith.truncf %235 : vector<8x128xf32> to vector<8x128xbf16>
    %cst_41 = arith.constant dense<0.000000e+00> : vector<8x512xf32>
    %258 = tpu.matmul %257, %0, %cst_41 {dimension_numbers = #tpu.dot_dimension_numbers<[1], [0], [0], [1], [0, 0, 1, 1], [], []>} : vector<8x128xbf16>, vector<128x512xbf16>, vector<8x512xf32> -> vector<8x512xf32>
    %259 = arith.addf %256, %258 : vector<8x512xf32>
    %260 = vector.extract_strided_slice %259 {offsets = [0, 0], sizes = [8, 384], strides = [1, 1]} : vector<8x512xf32> to vector<8x384xf32>
    %261 = arith.negf %260 : vector<8x384xf32>
    %262 = math.exp %261 : vector<8x384xf32>
    %cst_42 = arith.constant 1.000000e+00 : f32
    %263 = vector.broadcast %cst_42 : f32 to vector<8x384xf32>
    %264 = arith.addf %263, %262 : vector<8x384xf32>
    %265 = arith.divf %263, %264 : vector<8x384xf32>
    %266 = vector.extract_strided_slice %265 {offsets = [0, 0], sizes = [8, 128], strides = [1, 1]} : vector<8x384xf32> to vector<8x128xf32>
    %267 = vector.extract_strided_slice %265 {offsets = [0, 128], sizes = [8, 128], strides = [1, 1]} : vector<8x384xf32> to vector<8x128xf32>
    %268 = vector.extract_strided_slice %265 {offsets = [0, 256], sizes = [8, 128], strides = [1, 1]} : vector<8x384xf32> to vector<8x128xf32>
    %269 = vector.extract_strided_slice %259 {offsets = [0, 384], sizes = [8, 128], strides = [1, 1]} : vector<8x512xf32> to vector<8x128xf32>
    %270 = math.tanh %269 : vector<8x128xf32>
    %271 = arith.mulf %267, %233 : vector<8x128xf32>
    %272 = arith.mulf %266, %270 : vector<8x128xf32>
    %273 = arith.addf %271, %272 : vector<8x128xf32>
    %274 = math.tanh %273 : vector<8x128xf32>
    %275 = arith.mulf %268, %274 : vector<8x128xf32>
    %276 = tpu.concatenate %275, %255 in 1 : vector<8x128xf32>, vector<8x128xf32> -> vector<8x256xf32>
    %277 = arith.truncf %276 : vector<8x256xf32> to vector<8x256xbf16>
    %cst_43 = arith.constant dense<0.000000e+00> : vector<8x512xf32>
    %278 = tpu.matmul %277, %1, %cst_43 {dimension_numbers = #tpu.dot_dimension_numbers<[1], [0], [0], [1], [0, 0, 1, 1], [], []>} : vector<8x256xbf16>, vector<256x512xbf16>, vector<8x512xf32> -> vector<8x512xf32>
    %279 = arith.addf %278, %11 : vector<8x512xf32>
    %280 = vector.extract_strided_slice %279 {offsets = [0, 0], sizes = [8, 384], strides = [1, 1]} : vector<8x512xf32> to vector<8x384xf32>
    %281 = arith.negf %280 : vector<8x384xf32>
    %282 = math.exp %281 : vector<8x384xf32>
    %cst_44 = arith.constant 1.000000e+00 : f32
    %283 = vector.broadcast %cst_44 : f32 to vector<8x384xf32>
    %284 = arith.addf %283, %282 : vector<8x384xf32>
    %285 = arith.divf %283, %284 : vector<8x384xf32>
    %286 = vector.extract_strided_slice %285 {offsets = [0, 0], sizes = [8, 128], strides = [1, 1]} : vector<8x384xf32> to vector<8x128xf32>
    %287 = vector.extract_strided_slice %285 {offsets = [0, 128], sizes = [8, 128], strides = [1, 1]} : vector<8x384xf32> to vector<8x128xf32>
    %288 = vector.extract_strided_slice %285 {offsets = [0, 256], sizes = [8, 128], strides = [1, 1]} : vector<8x384xf32> to vector<8x128xf32>
    %289 = vector.extract_strided_slice %279 {offsets = [0, 384], sizes = [8, 128], strides = [1, 1]} : vector<8x512xf32> to vector<8x128xf32>
    %290 = math.tanh %289 : vector<8x128xf32>
    %291 = arith.mulf %287, %253 : vector<8x128xf32>
    %292 = arith.mulf %286, %290 : vector<8x128xf32>
    %293 = arith.addf %291, %292 : vector<8x128xf32>
    %294 = math.tanh %293 : vector<8x128xf32>
    %295 = arith.mulf %288, %294 : vector<8x128xf32>
    %296 = vector.extract_strided_slice %8 {offsets = [56, 0], sizes = [8, 512], strides = [1, 1]} : vector<64x512xf32> to vector<8x512xf32>
    %297 = arith.truncf %275 : vector<8x128xf32> to vector<8x128xbf16>
    %cst_45 = arith.constant dense<0.000000e+00> : vector<8x512xf32>
    %298 = tpu.matmul %297, %0, %cst_45 {dimension_numbers = #tpu.dot_dimension_numbers<[1], [0], [0], [1], [0, 0, 1, 1], [], []>} : vector<8x128xbf16>, vector<128x512xbf16>, vector<8x512xf32> -> vector<8x512xf32>
    %299 = arith.addf %296, %298 : vector<8x512xf32>
    %300 = vector.extract_strided_slice %299 {offsets = [0, 0], sizes = [8, 384], strides = [1, 1]} : vector<8x512xf32> to vector<8x384xf32>
    %301 = arith.negf %300 : vector<8x384xf32>
    %302 = math.exp %301 : vector<8x384xf32>
    %cst_46 = arith.constant 1.000000e+00 : f32
    %303 = vector.broadcast %cst_46 : f32 to vector<8x384xf32>
    %304 = arith.addf %303, %302 : vector<8x384xf32>
    %305 = arith.divf %303, %304 : vector<8x384xf32>
    %306 = vector.extract_strided_slice %305 {offsets = [0, 0], sizes = [8, 128], strides = [1, 1]} : vector<8x384xf32> to vector<8x128xf32>
    %307 = vector.extract_strided_slice %305 {offsets = [0, 128], sizes = [8, 128], strides = [1, 1]} : vector<8x384xf32> to vector<8x128xf32>
    %308 = vector.extract_strided_slice %305 {offsets = [0, 256], sizes = [8, 128], strides = [1, 1]} : vector<8x384xf32> to vector<8x128xf32>
    %309 = vector.extract_strided_slice %299 {offsets = [0, 384], sizes = [8, 128], strides = [1, 1]} : vector<8x512xf32> to vector<8x128xf32>
    %310 = math.tanh %309 : vector<8x128xf32>
    %311 = arith.mulf %307, %273 : vector<8x128xf32>
    %312 = arith.mulf %306, %310 : vector<8x128xf32>
    %313 = arith.addf %311, %312 : vector<8x128xf32>
    %314 = math.tanh %313 : vector<8x128xf32>
    %315 = arith.mulf %308, %314 : vector<8x128xf32>
    %316 = tpu.concatenate %315, %295 in 1 : vector<8x128xf32>, vector<8x128xf32> -> vector<8x256xf32>
    %317 = arith.truncf %316 : vector<8x256xf32> to vector<8x256xbf16>
    %cst_47 = arith.constant dense<0.000000e+00> : vector<8x512xf32>
    %318 = tpu.matmul %317, %1, %cst_47 {dimension_numbers = #tpu.dot_dimension_numbers<[1], [0], [0], [1], [0, 0, 1, 1], [], []>} : vector<8x256xbf16>, vector<256x512xbf16>, vector<8x512xf32> -> vector<8x512xf32>
    %319 = arith.addf %318, %11 : vector<8x512xf32>
    %320 = vector.extract_strided_slice %319 {offsets = [0, 0], sizes = [8, 384], strides = [1, 1]} : vector<8x512xf32> to vector<8x384xf32>
    %321 = arith.negf %320 : vector<8x384xf32>
    %322 = math.exp %321 : vector<8x384xf32>
    %cst_48 = arith.constant 1.000000e+00 : f32
    %323 = vector.broadcast %cst_48 : f32 to vector<8x384xf32>
    %324 = arith.addf %323, %322 : vector<8x384xf32>
    %325 = arith.divf %323, %324 : vector<8x384xf32>
    %326 = vector.extract_strided_slice %325 {offsets = [0, 0], sizes = [8, 128], strides = [1, 1]} : vector<8x384xf32> to vector<8x128xf32>
    %327 = vector.extract_strided_slice %325 {offsets = [0, 128], sizes = [8, 128], strides = [1, 1]} : vector<8x384xf32> to vector<8x128xf32>
    %328 = vector.extract_strided_slice %325 {offsets = [0, 256], sizes = [8, 128], strides = [1, 1]} : vector<8x384xf32> to vector<8x128xf32>
    %329 = vector.extract_strided_slice %319 {offsets = [0, 384], sizes = [8, 128], strides = [1, 1]} : vector<8x512xf32> to vector<8x128xf32>
    %330 = math.tanh %329 : vector<8x128xf32>
    %331 = arith.mulf %327, %293 : vector<8x128xf32>
    %332 = arith.mulf %326, %330 : vector<8x128xf32>
    %333 = arith.addf %331, %332 : vector<8x128xf32>
    %334 = math.tanh %333 : vector<8x128xf32>
    %335 = arith.mulf %328, %334 : vector<8x128xf32>
    %336 = arith.truncf %335 : vector<8x128xf32> to vector<8x128xbf16>
    %cst_49 = arith.constant dense<0.000000e+00> : vector<8x128xf32>
    %337 = tpu.matmul %336, %2, %cst_49 {dimension_numbers = #tpu.dot_dimension_numbers<[1], [0], [0], [1], [0, 0, 1, 1], [], []>} : vector<8x128xbf16>, vector<128x128xbf16>, vector<8x128xf32> -> vector<8x128xf32>
    %c0_50 = arith.constant 0 : index
    %c0_51 = arith.constant 0 : index
    %338 = vector.load %arg7[%c0_50, %c0_51] : memref<1x128xf32, #tpu.memory_space<vmem>>, vector<1x128xf32>
    %339 = vector.broadcast %338 : vector<1x128xf32> to vector<8x128xf32>
    %340 = arith.addf %337, %339 : vector<8x128xf32>
    %c0_52 = arith.constant 0 : index
    %c0_53 = arith.constant 0 : index
    %341 = vector.load %arg8[%c0_52, %c0_53] : memref<8x128xf32, #tpu.memory_space<vmem>>, vector<8x128xf32>
    tpu.vector_store %arg8[%c0_52, %c0_53], %340 {strides = array<i32>} : memref<8x128xf32, #tpu.memory_space<vmem>>, vector<8x128xf32>,
    return
  }
}

</mosaic_0001>

<llo_original>
// kernel: tpu_custom_call.1
$region0: #{tpu_custom_call.1}
  #allocation0 [shape = 'u32[]', space=smem, size = 0x4, offset = 0x4, fixed_abs, tag = 'smem constant byte address 0x4 - core index']
  #allocation1 [shape = 'u32[144,128]{1,0:T(1,128)}', space=vmem, size = 0x12000, scoped, tag = 'internal scratch']
  %s0 = inlined_call_operand.vmem [shape: bf16[64,16], index: 0, kind: input, shape index: {}]
  %s1 = inlined_call_operand.vmem [shape: bf16[16,512], index: 1, kind: input, shape index: {}]
  %s2 = inlined_call_operand.hbm [shape: bf16[128,512], index: 2, kind: input, shape index: {}]
  %s3 = inlined_call_operand.vmem [shape: f32[1,512], index: 3, kind: input, shape index: {}]
  %s4 = inlined_call_operand.hbm [shape: bf16[256,512], index: 4, kind: input, shape index: {}]
  %s5 = inlined_call_operand.vmem [shape: f32[1,512], index: 5, kind: input, shape index: {}]
  %s6 = inlined_call_operand.hbm [shape: bf16[128,128], index: 6, kind: input, shape index: {}]
  %s7 = inlined_call_operand.vmem [shape: f32[1,128], index: 7, kind: input, shape index: {}]
  %s8 = inlined_call_operand.hbm [shape: f32[8,128], index: 8, kind: output, shape index: {}]
  %s9 = sld [smem:[#allocation0]]
  $region54: #{tpu_custom_call.1} parent=0
    _
  %s11 = ssub.s32 1, %s9
  %s12 = scalar_select 0, %s11, %s9
  $region1: #{tpu_custom_call.1} parent=0
    #allocation2 [shape = 'u8[131072]{0}', space=vmem, size = 0x20000, scoped, tag = 'input window, operand 2, single buffered']
    #allocation3 [shape = 's32[1]{0}', space=sflag, size = 0x4, scoped, tag = 'scoped memory for tpu_custom_call.1']
    #allocation4 [shape = 's32[1]{0}', space=sflag, size = 0x4, scoped, tag = 'scoped memory for tpu_custom_call.1']
    #allocation5 [shape = 'u8[262144]{0}', space=vmem, size = 0x40000, scoped, tag = 'input window, operand 4, single buffered']
    #allocation6 [shape = 's32[1]{0}', space=sflag, size = 0x4, scoped, tag = 'scoped memory for tpu_custom_call.1']
    #allocation7 [shape = 'u8[32768]{0}', space=vmem, size = 0x8000, scoped, tag = 'input window, operand 6, single buffered']
    #allocation8 [shape = 'u8[4096]{0}', space=vmem, size = 0x1000, scoped, tag = 'output window, operand 0, single buffered']
    %13 = vsyncpa [#allocation3], 0
    %14 = vsyncpa [#allocation6], 0
    %15 = vsyncpa [#allocation4], 0
    // Predicated region
    $region2: #{tpu_custom_call.1} parent=1 // pred_check
      _
    $region3: #{tpu_custom_call.1} parent=1 // pred_check_branch
      %17 = sbr.rel (0) target = $region5
    $region4: #{tpu_custom_call.1} parent=1 // pred_region
      _
    $region5: #{tpu_custom_call.1} parent=1 // pred_fallthru
      _
    // Predicated region
    $region6: #{tpu_custom_call.1} parent=1 // pred_check
      _
    $region7: #{tpu_custom_call.1} parent=1 // pred_check_branch
      %19 = sbr.rel (0) target = $region9
    $region8: #{tpu_custom_call.1} parent=1 // pred_region
      _
    $region9: #{tpu_custom_call.1} parent=1 // pred_fallthru
      _
    // Predicated region
    $region10: #{tpu_custom_call.1} parent=1 // pred_check
      _
    $region11: #{tpu_custom_call.1} parent=1 // pred_check_branch
      %21 = sbr.rel (0) target = $region13
    $region12: #{tpu_custom_call.1} parent=1 // pred_region
      %s23 = ssub.s32 4096, 4096
      %24 = vsyncadd [#allocation3], %s23
      %s25 = sshll.u32 [#allocation2], 4
      %s26 = int_to_ptr.vmem [resolvable:$true] %s25
      %31 = dma.hbm_to_vmem [thread:$0]  %s2, 4096, %s26, [#allocation3], 256, 256, 16
    $region13: #{tpu_custom_call.1} parent=1 // pred_fallthru
      _
    // Predicated region
    $region14: #{tpu_custom_call.1} parent=1 // pred_check
      _
    $region15: #{tpu_custom_call.1} parent=1 // pred_check_branch
      %33 = sbr.rel (0) target = $region17
    $region16: #{tpu_custom_call.1} parent=1 // pred_region
      _
    $region17: #{tpu_custom_call.1} parent=1 // pred_fallthru
      _
    // Predicated region
    $region18: #{tpu_custom_call.1} parent=1 // pred_check
      _
    $region19: #{tpu_custom_call.1} parent=1 // pred_check_branch
      %35 = sbr.rel (0) target = $region21
    $region20: #{tpu_custom_call.1} parent=1 // pred_region
      %s37 = ssub.s32 8192, 8192
      %38 = vsyncadd [#allocation6], %s37
      %s39 = sshll.u32 [#allocation5], 4
      %s40 = int_to_ptr.vmem [resolvable:$true] %s39
      %45 = dma.hbm_to_vmem [thread:$0]  %s4, 8192, %s40, [#allocation6], 256, 256, 16
    $region21: #{tpu_custom_call.1} parent=1 // pred_fallthru
      _
    // Predicated region
    $region22: #{tpu_custom_call.1} parent=1 // pred_check
      _
    $region23: #{tpu_custom_call.1} parent=1 // pred_check_branch
      %47 = sbr.rel (0) target = $region25
    $region24: #{tpu_custom_call.1} parent=1 // pred_region
      _
    $region25: #{tpu_custom_call.1} parent=1 // pred_fallthru
      _
    // Predicated region
    $region26: #{tpu_custom_call.1} parent=1 // pred_check
      _
    $region27: #{tpu_custom_call.1} parent=1 // pred_check_branch
      %49 = sbr.rel (0) target = $region29
    $region28: #{tpu_custom_call.1} parent=1 // pred_region
      %s51 = ssub.s32 1024, 1024
      %52 = vsyncadd [#allocation6], %s51
      %s53 = sshll.u32 [#allocation7], 4
      %s54 = int_to_ptr.vmem [resolvable:$true] %s53
      %59 = dma.hbm_to_vmem [thread:$0]  %s6, 1024, %s54, [#allocation6], 64, 64, 4
    $region29: #{tpu_custom_call.1} parent=1 // pred_fallthru
      _
    // Predicated region
    $region30: #{tpu_custom_call.1} parent=1 // pred_check
      _
    $region31: #{tpu_custom_call.1} parent=1 // pred_check_branch
      %61 = sbr.rel (0) target = $region33
    $region32: #{tpu_custom_call.1} parent=1 // pred_region
      _
    $region33: #{tpu_custom_call.1} parent=1 // pred_fallthru
      _
    // Predicated region
    $region34: #{tpu_custom_call.1} parent=1 // pred_check
      _
    $region35: #{tpu_custom_call.1} parent=1 // pred_check_branch
      %63 = sbr.rel (0) target = $region37
    $region36: #{tpu_custom_call.1} parent=1 // pred_region
      %64 = dma.done [#allocation3], 4096
    $region37: #{tpu_custom_call.1} parent=1 // pred_fallthru
      _
    // Predicated region
    $region38: #{tpu_custom_call.1} parent=1 // pred_check
      _
    $region39: #{tpu_custom_call.1} parent=1 // pred_check_branch
      %66 = sbr.rel (0) target = $region41
    $region40: #{tpu_custom_call.1} parent=1 // pred_region
      %67 = dma.done [#allocation6], 8192
    $region41: #{tpu_custom_call.1} parent=1 // pred_fallthru
      _
    // Predicated region
    $region42: #{tpu_custom_call.1} parent=1 // pred_check
      _
    $region43: #{tpu_custom_call.1} parent=1 // pred_check_branch
      %69 = sbr.rel (0) target = $region45
    $region44: #{tpu_custom_call.1} parent=1 // pred_region
      %70 = dma.done [#allocation6], 1024
    $region45: #{tpu_custom_call.1} parent=1 // pred_fallthru
      _
    %v72 = vld [vmem:[#allocation2] sm:$0xff]
    %v73 = vld [vmem:[#allocation2 + $0x8] sm:$0xff]
    %v74 = vld [vmem:[#allocation2 + $0x10] sm:$0xff]
    %v75 = vld [vmem:[#allocation2 + $0x18] sm:$0xff]
    %v76 = vld [vmem:[#allocation2 + $0x20] sm:$0xff]
    %v77 = vld [vmem:[#allocation2 + $0x28] sm:$0xff]
    %v78 = vld [vmem:[#allocation2 + $0x30] sm:$0xff]
    %v79 = vld [vmem:[#allocation2 + $0x38] sm:$0xff]
    %v80 = vld [vmem:[#allocation2 + $0x40] sm:$0xff]
    %v81 = vld [vmem:[#allocation2 + $0x48] sm:$0xff]
    %v82 = vld [vmem:[#allocation2 + $0x50] sm:$0xff]
    %v83 = vld [vmem:[#allocation2 + $0x58] sm:$0xff]
    %v84 = vld [vmem:[#allocation2 + $0x60] sm:$0xff]
    %v85 = vld [vmem:[#allocation2 + $0x68] sm:$0xff]
    %v86 = vld [vmem:[#allocation2 + $0x70] sm:$0xff]
    %v87 = vld [vmem:[#allocation2 + $0x78] sm:$0xff]
    %v88 = vld [vmem:[#allocation2 + $0x80] sm:$0xff]
    %v89 = vld [vmem:[#allocation2 + $0x88] sm:$0xff]
    %v90 = vld [vmem:[#allocation2 + $0x90] sm:$0xff]
    %v91 = vld [vmem:[#allocation2 + $0x98] sm:$0xff]
    %v92 = vld [vmem:[#allocation2 + $0xa0] sm:$0xff]
    %v93 = vld [vmem:[#allocation2 + $0xa8] sm:$0xff]
    %v94 = vld [vmem:[#allocation2 + $0xb0] sm:$0xff]
    %v95 = vld [vmem:[#allocation2 + $0xb8] sm:$0xff]
    %v96 = vld [vmem:[#allocation2 + $0xc0] sm:$0xff]
    %v97 = vld [vmem:[#allocation2 + $0xc8] sm:$0xff]
    %v98 = vld [vmem:[#allocation2 + $0xd0] sm:$0xff]
    %v99 = vld [vmem:[#allocation2 + $0xd8] sm:$0xff]
    %v100 = vld [vmem:[#allocation2 + $0xe0] sm:$0xff]
    %v101 = vld [vmem:[#allocation2 + $0xe8] sm:$0xff]
    %v102 = vld [vmem:[#allocation2 + $0xf0] sm:$0xff]
    %v103 = vld [vmem:[#allocation2 + $0xf8] sm:$0xff]
    %v104 = vld [vmem:[#allocation5] sm:$0xff]
    %v105 = vld [vmem:[#allocation5 + $0x8] sm:$0xff]
    %v106 = vld [vmem:[#allocation5 + $0x10] sm:$0xff]
    %v107 = vld [vmem:[#allocation5 + $0x18] sm:$0xff]
    %v108 = vld [vmem:[#allocation5 + $0x20] sm:$0xff]
    %v109 = vld [vmem:[#allocation5 + $0x28] sm:$0xff]
    %v110 = vld [vmem:[#allocation5 + $0x30] sm:$0xff]
    %v111 = vld [vmem:[#allocation5 + $0x38] sm:$0xff]
    %v112 = vld [vmem:[#allocation5 + $0x40] sm:$0xff]
    %v113 = vld [vmem:[#allocation5 + $0x48] sm:$0xff]
    %v114 = vld [vmem:[#allocation5 + $0x50] sm:$0xff]
    %v115 = vld [vmem:[#allocation5 + $0x58] sm:$0xff]
    %v116 = vld [vmem:[#allocation5 + $0x60] sm:$0xff]
    %v117 = vld [vmem:[#allocation5 + $0x68] sm:$0xff]
    %v118 = vld [vmem:[#allocation5 + $0x70] sm:$0xff]
    %v119 = vld [vmem:[#allocation5 + $0x78] sm:$0xff]
    %v120 = vld [vmem:[#allocation5 + $0x80] sm:$0xff]
    %v121 = vld [vmem:[#allocation5 + $0x88] sm:$0xff]
    %v122 = vld [vmem:[#allocation5 + $0x90] sm:$0xff]
    %v123 = vld [vmem:[#allocation5 + $0x98] sm:$0xff]
    %v124 = vld [vmem:[#allocation5 + $0xa0] sm:$0xff]
    %v125 = vld [vmem:[#allocation5 + $0xa8] sm:$0xff]
    %v126 = vld [vmem:[#allocation5 + $0xb0] sm:$0xff]
    %v127 = vld [vmem:[#allocation5 + $0xb8] sm:$0xff]
    %v128 = vld [vmem:[#allocation5 + $0xc0] sm:$0xff]
    %v129 = vld [vmem:[#allocation5 + $0xc8] sm:$0xff]
    %v130 = vld [vmem:[#allocation5 + $0xd0] sm:$0xff]
    %v131 = vld [vmem:[#allocation5 + $0xd8] sm:$0xff]
    %v132 = vld [vmem:[#allocation5 + $0xe0] sm:$0xff]
    %v133 = vld [vmem:[#allocation5 + $0xe8] sm:$0xff]
    %v134 = vld [vmem:[#allocation5 + $0xf0] sm:$0xff]
    %v135 = vld [vmem:[#allocation5 + $0xf8] sm:$0xff]
    %v136 = vld [vmem:[#allocation5 + $0x100] sm:$0xff]
    %v137 = vld [vmem:[#allocation5 + $0x108] sm:$0xff]
    %v138 = vld [vmem:[#allocation5 + $0x110] sm:$0xff]
    %v139 = vld [vmem:[#allocation5 + $0x118] sm:$0xff]
    %v140 = vld [vmem:[#allocation5 + $0x120] sm:$0xff]
    %v141 = vld [vmem:[#allocation5 + $0x128] sm:$0xff]
    %v142 = vld [vmem:[#allocation5 + $0x130] sm:$0xff]
    %v143 = vld [vmem:[#allocation5 + $0x138] sm:$0xff]
    %v144 = vld [vmem:[#allocation5 + $0x140] sm:$0xff]
    %v145 = vld [vmem:[#allocation5 + $0x148] sm:$0xff]
    %v146 = vld [vmem:[#allocation5 + $0x150] sm:$0xff]
    %v147 = vld [vmem:[#allocation5 + $0x158] sm:$0xff]
    %v148 = vld [vmem:[#allocation5 + $0x160] sm:$0xff]
    %v149 = vld [vmem:[#allocation5 + $0x168] sm:$0xff]
    %v150 = vld [vmem:[#allocation5 + $0x170] sm:$0xff]
    %v151 = vld [vmem:[#allocation5 + $0x178] sm:$0xff]
    %v152 = vld [vmem:[#allocation5 + $0x180] sm:$0xff]
    %v153 = vld [vmem:[#allocation5 + $0x188] sm:$0xff]
    %v154 = vld [vmem:[#allocation5 + $0x190] sm:$0xff]
    %v155 = vld [vmem:[#allocation5 + $0x198] sm:$0xff]
    %v156 = vld [vmem:[#allocation5 + $0x1a0] sm:$0xff]
    %v157 = vld [vmem:[#allocation5 + $0x1a8] sm:$0xff]
    %v158 = vld [vmem:[#allocation5 + $0x1b0] sm:$0xff]
    %v159 = vld [vmem:[#allocation5 + $0x1b8] sm:$0xff]
    %v160 = vld [vmem:[#allocation5 + $0x1c0] sm:$0xff]
    %v161 = vld [vmem:[#allocation5 + $0x1c8] sm:$0xff]
    %v162 = vld [vmem:[#allocation5 + $0x1d0] sm:$0xff]
    %v163 = vld [vmem:[#allocation5 + $0x1d8] sm:$0xff]
    %v164 = vld [vmem:[#allocation5 + $0x1e0] sm:$0xff]
    %v165 = vld [vmem:[#allocation5 + $0x1e8] sm:$0xff]
    %v166 = vld [vmem:[#allocation5 + $0x1f0] sm:$0xff]
    %v167 = vld [vmem:[#allocation5 + $0x1f8] sm:$0xff]
    %v168 = vld [vmem:[#allocation7] sm:$0xf]
    %v169 = vld [vmem:[#allocation7 + $0x4] sm:$0xf]
    %v170 = vld [vmem:[#allocation7 + $0x8] sm:$0xf]
    %v171 = vld [vmem:[#allocation7 + $0xc] sm:$0xf]
    %v172 = vld [vmem:[#allocation7 + $0x10] sm:$0xf]
    %v173 = vld [vmem:[#allocation7 + $0x14] sm:$0xf]
    %v174 = vld [vmem:[#allocation7 + $0x18] sm:$0xf]
    %v175 = vld [vmem:[#allocation7 + $0x1c] sm:$0xf]
    %v176 = vld [vmem:[#allocation7 + $0x20] sm:$0xf]
    %v177 = vld [vmem:[#allocation7 + $0x24] sm:$0xf]
    %v178 = vld [vmem:[#allocation7 + $0x28] sm:$0xf]
    %v179 = vld [vmem:[#allocation7 + $0x2c] sm:$0xf]
    %v180 = vld [vmem:[#allocation7 + $0x30] sm:$0xf]
    %v181 = vld [vmem:[#allocation7 + $0x34] sm:$0xf]
    %v182 = vld [vmem:[#allocation7 + $0x38] sm:$0xf]
    %v183 = vld [vmem:[#allocation7 + $0x3c] sm:$0xf]
    %v184 = vld [vmem:[%s0] sm:$0xf]
    %v185 = vld [vmem:[%s0 + $0x4] sm:$0xf]
    %v186 = vld [vmem:[%s0 + $0x8] sm:$0xf]
    %v187 = vld [vmem:[%s0 + $0xc] sm:$0xf]
    %v188 = vld [vmem:[%s0 + $0x10] sm:$0xf]
    %v189 = vld [vmem:[%s0 + $0x14] sm:$0xf]
    %v190 = vld [vmem:[%s0 + $0x18] sm:$0xf]
    %v191 = vld [vmem:[%s0 + $0x1c] sm:$0xf]
    %v192 = vld [vmem:[%s1] sm:$0xff]
    %v193 = vld [vmem:[%s1 + $0x8] sm:$0xff]
    %v194 = vld [vmem:[%s1 + $0x10] sm:$0xff]
    %v195 = vld [vmem:[%s1 + $0x18] sm:$0xff]
    %v196 = vld [vmem:[%s3] sm:$0xf]
    %v198 = vlaneseq
    %v199 = vshrl.u32 %v198, 7
    %v200 = vsub.s32 0, %v199
    %v201 = vrot.slane %v196, %v200
    %v202 = vlaneseq
    %v203 = vshrl.u32 %v202, 7
    %v204 = vsub.s32 1, %v203
    %v205 = vrot.slane %v196, %v204
    %v206 = vlaneseq
    %v207 = vshrl.u32 %v206, 7
    %v208 = vsub.s32 2, %v207
    %v209 = vrot.slane %v196, %v208
    %v210 = vlaneseq
    %v211 = vshrl.u32 %v210, 7
    %v212 = vsub.s32 3, %v211
    %v213 = vrot.slane %v196, %v212
    %v226 = vunpack.c.l.b16 %v184
    %v227 = vunpack.c.l.b16 %v185
    %v228 = vunpack.c.l.b16 %v186
    %v229 = vunpack.c.l.b16 %v187
    %v230 = vunpack.c.l.b16 %v188
    %v231 = vunpack.c.l.b16 %v189
    %v232 = vunpack.c.l.b16 %v190
    %v233 = vunpack.c.l.b16 %v191
    %v234 = vpack.c.b16 %v227, %v226
    %v235 = vpack.c.b16 %v229, %v228
    %v236 = vpack.c.b16 %v231, %v230
    %v237 = vpack.c.b16 %v233, %v232
    %v242 = vunpack.c.l.b16 %v192
    %v243 = vunpack.c.h.b16 %v192
    %v244 = vunpack.c.l.b16 %v193
    %v245 = vunpack.c.h.b16 %v193
    %v246 = vunpack.c.l.b16 %v194
    %v247 = vunpack.c.h.b16 %v194
    %v248 = vunpack.c.l.b16 %v195
    %v249 = vunpack.c.h.b16 %v195
    %v250 = vpack.c.b16 %v246, %v242
    %v251 = vpack.c.b16 %v247, %v243
    %v252 = vpack.c.b16 %v248, %v244
    %v253 = vpack.c.b16 %v249, %v245
    %vm258 = vcmask 130048
    %v260 = vsel %vm258, %v234, 0
    %v263 = vsel %vm258, %v235, 0
    %v266 = vsel %vm258, %v236, 0
    %v269 = vsel %vm258, %v237, 0
    %271 = vmatprep.subr.bf16.mxu0 %v251
    %272 = vmatpush1.bf16.msra.mxu0 %v250
    %273 = vmatprep.subr.bf16.mxu0 0
    %274 = vmatpush1.bf16.msra.mxu0 0
    %275 = vmatprep.subr.bf16.mxu0 0
    %276 = vmatpush1.bf16.msra.mxu0 0
    %277 = vmatprep.subr.bf16.mxu0 0
    %278 = vmatpush1.bf16.msra.mxu0 0
    %279 = vmatprep.subr.bf16.mxu0 0
    %280 = vmatpush1.bf16.msra.mxu0 0
    %281 = vmatprep.subr.bf16.mxu0 0
    %282 = vmatpush1.bf16.msra.mxu0 0
    %283 = vmatprep.subr.bf16.mxu0 0
    %284 = vmatpush1.bf16.msra.mxu0 0
    %285 = vmatprep.subr.bf16.mxu0 0
    %286 = vmatpush1.bf16.msra.mxu0 0
    %287 = vmatprep.subr.bf16.mxu0 0
    %288 = vmatpush1.bf16.msra.mxu0 0
    %289 = vmatprep.subr.bf16.mxu0 0
    %290 = vmatpush1.bf16.msra.mxu0 0
    %291 = vmatprep.subr.bf16.mxu0 0
    %292 = vmatpush1.bf16.msra.mxu0 0
    %293 = vmatprep.subr.bf16.mxu0 0
    %294 = vmatpush1.bf16.msra.mxu0 0
    %295 = vmatprep.subr.bf16.mxu0 0
    %296 = vmatpush1.bf16.msra.mxu0 0
    %297 = vmatprep.subr.bf16.mxu0 0
    %298 = vmatpush1.bf16.msra.mxu0 0
    %299 = vmatprep.subr.bf16.mxu0 0
    %300 = vmatpush1.bf16.msra.mxu0 0
    %301 = vmatprep.subr.bf16.mxu0 0
    %302 = vmatpush1.bf16.msra.mxu0 0
    %303 = vmatprep.mubr.bf16.mxu0 0
    %304 = vmatmul.mubr.bf16.gmra.mrb[0].mxu0 %v260
    %v305 = vpop.f32.mrb[0].mxu0
    %v306 = vadd.f32 %v201, %v305
    %v307 = vpop.f32.mrb[0].mxu0
    %v308 = vadd.f32 %v205, %v307
    %v309 = vpop.f32.mrb[0].mxu0
    %v310 = vadd.f32 %v201, %v309
    %v311 = vpop.f32.mrb[0].mxu0
    %v312 = vadd.f32 %v205, %v311
    %313 = vmatprep.mubr.bf16.mxu0 0
    %314 = vmatmul.mubr.bf16.gmra.mrb[0].mxu0 %v263
    %v315 = vpop.f32.mrb[0].mxu0
    %v316 = vadd.f32 %v201, %v315
    %v317 = vpop.f32.mrb[0].mxu0
    %v318 = vadd.f32 %v205, %v317
    %v319 = vpop.f32.mrb[0].mxu0
    %v320 = vadd.f32 %v201, %v319
    %v321 = vpop.f32.mrb[0].mxu0
    %v322 = vadd.f32 %v205, %v321
    %323 = vmatprep.mubr.bf16.mxu0 0
    %324 = vmatmul.mubr.bf16.gmra.mrb[0].mxu0 %v266
    %v325 = vpop.f32.mrb[0].mxu0
    %v326 = vadd.f32 %v201, %v325
    %v327 = vpop.f32.mrb[0].mxu0
    %v328 = vadd.f32 %v205, %v327
    %v329 = vpop.f32.mrb[0].mxu0
    %v330 = vadd.f32 %v201, %v329
    %v331 = vpop.f32.mrb[0].mxu0
    %v332 = vadd.f32 %v205, %v331
    %333 = vmatprep.mubr.bf16.mxu0 0
    %334 = vmatmul.mubr.bf16.gmra.mrb[0].mxu0 %v269
    %v335 = vpop.f32.mrb[0].mxu0
    %v336 = vadd.f32 %v201, %v335
    %v337 = vpop.f32.mrb[0].mxu0
    %v338 = vadd.f32 %v205, %v337
    %v339 = vpop.f32.mrb[0].mxu0
    %v340 = vadd.f32 %v201, %v339
    %v341 = vpop.f32.mrb[0].mxu0
    %v342 = vadd.f32 %v205, %v341
    %343 = vdwg.mxu0
    %344 = vmatprep.subr.bf16.mxu0 %v253
    %345 = vmatpush1.bf16.msra.mxu0 %v252
    %346 = vmatprep.subr.bf16.mxu0 0
    %347 = vmatpush1.bf16.msra.mxu0 0
    %348 = vmatprep.subr.bf16.mxu0 0
    %349 = vmatpush1.bf16.msra.mxu0 0
    %350 = vmatprep.subr.bf16.mxu0 0
    %351 = vmatpush1.bf16.msra.mxu0 0
    %352 = vmatprep.subr.bf16.mxu0 0
    %353 = vmatpush1.bf16.msra.mxu0 0
    %354 = vmatprep.subr.bf16.mxu0 0
    %355 = vmatpush1.bf16.msra.mxu0 0
    %356 = vmatprep.subr.bf16.mxu0 0
    %357 = vmatpush1.bf16.msra.mxu0 0
    %358 = vmatprep.subr.bf16.mxu0 0
    %359 = vmatpush1.bf16.msra.mxu0 0
    %360 = vmatprep.subr.bf16.mxu0 0
    %361 = vmatpush1.bf16.msra.mxu0 0
    %362 = vmatprep.subr.bf16.mxu0 0
    %363 = vmatpush1.bf16.msra.mxu0 0
    %364 = vmatprep.subr.bf16.mxu0 0
    %365 = vmatpush1.bf16.msra.mxu0 0
    %366 = vmatprep.subr.bf16.mxu0 0
    %367 = vmatpush1.bf16.msra.mxu0 0
    %368 = vmatprep.subr.bf16.mxu0 0
    %369 = vmatpush1.bf16.msra.mxu0 0
    %370 = vmatprep.subr.bf16.mxu0 0
    %371 = vmatpush1.bf16.msra.mxu0 0
    %372 = vmatprep.subr.bf16.mxu0 0
    %373 = vmatpush1.bf16.msra.mxu0 0
    %374 = vmatprep.subr.bf16.mxu0 0
    %375 = vmatpush1.bf16.msra.mxu0 0
    %376 = vmatprep.mubr.bf16.mxu0 0
    %377 = vmatmul.mubr.bf16.gmra.mrb[0].mxu0 %v260
    %v378 = vpop.f32.mrb[0].mxu0
    %v379 = vadd.f32 %v209, %v378
    %v380 = vpop.f32.mrb[0].mxu0
    %v381 = vadd.f32 %v213, %v380
    %v382 = vpop.f32.mrb[0].mxu0
    %v383 = vadd.f32 %v209, %v382
    %v384 = vpop.f32.mrb[0].mxu0
    %v385 = vadd.f32 %v213, %v384
    %386 = vmatprep.mubr.bf16.mxu0 0
    %387 = vmatmul.mubr.bf16.gmra.mrb[0].mxu0 %v263
    %v388 = vpop.f32.mrb[0].mxu0
    %v389 = vadd.f32 %v209, %v388
    %v390 = vpop.f32.mrb[0].mxu0
    %v391 = vadd.f32 %v213, %v390
    %v392 = vpop.f32.mrb[0].mxu0
    %v393 = vadd.f32 %v209, %v392
    %v394 = vpop.f32.mrb[0].mxu0
    %v395 = vadd.f32 %v213, %v394
    %396 = vmatprep.mubr.bf16.mxu0 0
    %397 = vmatmul.mubr.bf16.gmra.mrb[0].mxu0 %v266
    %v398 = vpop.f32.mrb[0].mxu0
    %v399 = vadd.f32 %v209, %v398
    %v400 = vpop.f32.mrb[0].mxu0
    %v401 = vadd.f32 %v213, %v400
    %v402 = vpop.f32.mrb[0].mxu0
    %v403 = vadd.f32 %v209, %v402
    %v404 = vpop.f32.mrb[0].mxu0
    %v405 = vadd.f32 %v213, %v404
    %406 = vmatprep.mubr.bf16.mxu0 0
    %407 = vmatmul.mubr.bf16.gmra.mrb[0].mxu0 %v269
    %v408 = vpop.f32.mrb[0].mxu0
    %v409 = vadd.f32 %v209, %v408
    %v410 = vpop.f32.mrb[0].mxu0
    %v411 = vadd.f32 %v213, %v410
    %v412 = vpop.f32.mrb[0].mxu0
    %v413 = vadd.f32 %v209, %v412
    %v414 = vpop.f32.mrb[0].mxu0
    %v415 = vadd.f32 %v213, %v414
    %416 = vdwg.mxu0
    %v417 = vld [vmem:[%s5] sm:$0xf]
    %v419 = vlaneseq
    %v420 = vshrl.u32 %v419, 7
    %v421 = vsub.s32 0, %v420
    %v422 = vrot.slane %v417, %v421
    %v423 = vlaneseq
    %v424 = vshrl.u32 %v423, 7
    %v425 = vsub.s32 1, %v424
    %v426 = vrot.slane %v417, %v425
    %v427 = vlaneseq
    %v428 = vshrl.u32 %v427, 7
    %v429 = vsub.s32 2, %v428
    %v430 = vrot.slane %v417, %v429
    %v431 = vlaneseq
    %v432 = vshrl.u32 %v431, 7
    %v433 = vsub.s32 3, %v432
    %v434 = vrot.slane %v417, %v433
    %v471 = vunpack.c.l.b16 %v72
    %v472 = vunpack.c.h.b16 %v72
    %v473 = vunpack.c.l.b16 %v73
    %v474 = vunpack.c.h.b16 %v73
    %v475 = vunpack.c.l.b16 %v74
    %v476 = vunpack.c.h.b16 %v74
    %v477 = vunpack.c.l.b16 %v75
    %v478 = vunpack.c.h.b16 %v75
    %v479 = vunpack.c.l.b16 %v76
    %v480 = vunpack.c.h.b16 %v76
    %v481 = vunpack.c.l.b16 %v77
    %v482 = vunpack.c.h.b16 %v77
    %v483 = vunpack.c.l.b16 %v78
    %v484 = vunpack.c.h.b16 %v78
    %v485 = vunpack.c.l.b16 %v79
    %v486 = vunpack.c.h.b16 %v79
    %v487 = vunpack.c.l.b16 %v80
    %v488 = vunpack.c.h.b16 %v80
    %v489 = vunpack.c.l.b16 %v81
    %v490 = vunpack.c.h.b16 %v81
    %v491 = vunpack.c.l.b16 %v82
    %v492 = vunpack.c.h.b16 %v82
    %v493 = vunpack.c.l.b16 %v83
    %v494 = vunpack.c.h.b16 %v83
    %v495 = vunpack.c.l.b16 %v84
    %v496 = vunpack.c.h.b16 %v84
    %v497 = vunpack.c.l.b16 %v85
    %v498 = vunpack.c.h.b16 %v85
    %v499 = vunpack.c.l.b16 %v86
    %v500 = vunpack.c.h.b16 %v86
    %v501 = vunpack.c.l.b16 %v87
    %v502 = vunpack.c.h.b16 %v87
    %v503 = vunpack.c.l.b16 %v88
    %v504 = vunpack.c.h.b16 %v88
    %v505 = vunpack.c.l.b16 %v89
    %v506 = vunpack.c.h.b16 %v89
    %v507 = vunpack.c.l.b16 %v90
    %v508 = vunpack.c.h.b16 %v90
    %v509 = vunpack.c.l.b16 %v91
    %v510 = vunpack.c.h.b16 %v91
    %v511 = vunpack.c.l.b16 %v92
    %v512 = vunpack.c.h.b16 %v92
    %v513 = vunpack.c.l.b16 %v93
    %v514 = vunpack.c.h.b16 %v93
    %v515 = vunpack.c.l.b16 %v94
    %v516 = vunpack.c.h.b16 %v94
    %v517 = vunpack.c.l.b16 %v95
    %v518 = vunpack.c.h.b16 %v95
    %v519 = vunpack.c.l.b16 %v96
    %v520 = vunpack.c.h.b16 %v96
    %v521 = vunpack.c.l.b16 %v97
    %v522 = vunpack.c.h.b16 %v97
    %v523 = vunpack.c.l.b16 %v98
    %v524 = vunpack.c.h.b16 %v98
    %v525 = vunpack.c.l.b16 %v99
    %v526 = vunpack.c.h.b16 %v99
    %v527 = vunpack.c.l.b16 %v100
    %v528 = vunpack.c.h.b16 %v100
    %v529 = vunpack.c.l.b16 %v101
    %v530 = vunpack.c.h.b16 %v101
    %v531 = vunpack.c.l.b16 %v102
    %v532 = vunpack.c.h.b16 %v102
    %v533 = vunpack.c.l.b16 %v103
    %v534 = vunpack.c.h.b16 %v103
    %v535 = vpack.c.b16 %v475, %v471
    %v536 = vpack.c.b16 %v476, %v472
    %v537 = vpack.c.b16 %v477, %v473
    %v538 = vpack.c.b16 %v478, %v474
    %v539 = vpack.c.b16 %v483, %v479
    %v540 = vpack.c.b16 %v484, %v480
    %v541 = vpack.c.b16 %v485, %v481
    %v542 = vpack.c.b16 %v486, %v482
    %v543 = vpack.c.b16 %v491, %v487
    %v544 = vpack.c.b16 %v492, %v488
    %v545 = vpack.c.b16 %v493, %v489
    %v546 = vpack.c.b16 %v494, %v490
    %v547 = vpack.c.b16 %v499, %v495
    %v548 = vpack.c.b16 %v500, %v496
    %v549 = vpack.c.b16 %v501, %v497
    %v550 = vpack.c.b16 %v502, %v498
    %v551 = vpack.c.b16 %v507, %v503
    %v552 = vpack.c.b16 %v508, %v504
    %v553 = vpack.c.b16 %v509, %v505
    %v554 = vpack.c.b16 %v510, %v506
    %v555 = vpack.c.b16 %v515, %v511
    %v556 = vpack.c.b16 %v516, %v512
    %v557 = vpack.c.b16 %v517, %v513
    %v558 = vpack.c.b16 %v518, %v514
    %v559 = vpack.c.b16 %v523, %v519
    %v560 = vpack.c.b16 %v524, %v520
    %v561 = vpack.c.b16 %v525, %v521
    %v562 = vpack.c.b16 %v526, %v522
    %v563 = vpack.c.b16 %v531, %v527
    %v564 = vpack.c.b16 %v532, %v528
    %v565 = vpack.c.b16 %v533, %v529
    %v566 = vpack.c.b16 %v534, %v530
    %599 = vmatprep.subr.bf16.mxu0 %v536
    %600 = vmatpush1.bf16.msra.mxu0 %v535
    %601 = vmatprep.subr.bf16.mxu0 %v540
    %602 = vmatpush1.bf16.msra.mxu0 %v539
    %603 = vmatprep.subr.bf16.mxu0 %v544
    %604 = vmatpush1.bf16.msra.mxu0 %v543
    %605 = vmatprep.subr.bf16.mxu0 %v548
    %606 = vmatpush1.bf16.msra.mxu0 %v547
    %607 = vmatprep.subr.bf16.mxu0 %v552
    %608 = vmatpush1.bf16.msra.mxu0 %v551
    %609 = vmatprep.subr.bf16.mxu0 %v556
    %610 = vmatpush1.bf16.msra.mxu0 %v555
    %611 = vmatprep.subr.bf16.mxu0 %v560
    %612 = vmatpush1.bf16.msra.mxu0 %v559
    %613 = vmatprep.subr.bf16.mxu0 %v564
    %614 = vmatpush1.bf16.msra.mxu0 %v563
    %615 = vmatprep.subr.bf16.mxu0 0
    %616 = vmatpush1.bf16.msra.mxu0 0
    %617 = vmatprep.subr.bf16.mxu0 0
    %618 = vmatpush1.bf16.msra.mxu0 0
    %619 = vmatprep.subr.bf16.mxu0 0
    %620 = vmatpush1.bf16.msra.mxu0 0
    %621 = vmatprep.subr.bf16.mxu0 0
    %622 = vmatpush1.bf16.msra.mxu0 0
    %623 = vmatprep.subr.bf16.mxu0 0
    %624 = vmatpush1.bf16.msra.mxu0 0
    %625 = vmatprep.subr.bf16.mxu0 0
    %626 = vmatpush1.bf16.msra.mxu0 0
    %627 = vmatprep.subr.bf16.mxu0 0
    %628 = vmatpush1.bf16.msra.mxu0 0
    %629 = vmatprep.subr.bf16.mxu0 0
    %630 = vmatpush1.bf16.msra.mxu0 0
    %631 = vmatprep.mubr.bf16.mxu0 0
    %632 = vmatmul.mubr.bf16.gmra.mrb[0].mxu0 0
    %v633 = vpop.f32.mrb[0].mxu0
    %v634 = vadd.f32 0.0, %v633
    %v635 = vpop.f32.mrb[0].mxu0
    %v636 = vadd.f32 0.0, %v635
    %v637 = vpop.f32.mrb[0].mxu0
    %v638 = vpop.f32.mrb[0].mxu0
    %639 = vdwg.mxu0
    %640 = vmatprep.subr.bf16.mxu0 %v538
    %641 = vmatpush1.bf16.msra.mxu0 %v537
    %642 = vmatprep.subr.bf16.mxu0 %v542
    %643 = vmatpush1.bf16.msra.mxu0 %v541
    %644 = vmatprep.subr.bf16.mxu0 %v546
    %645 = vmatpush1.bf16.msra.mxu0 %v545
    %646 = vmatprep.subr.bf16.mxu0 %v550
    %647 = vmatpush1.bf16.msra.mxu0 %v549
    %648 = vmatprep.subr.bf16.mxu0 %v554
    %649 = vmatpush1.bf16.msra.mxu0 %v553
    %650 = vmatprep.subr.bf16.mxu0 %v558
    %651 = vmatpush1.bf16.msra.mxu0 %v557
    %652 = vmatprep.subr.bf16.mxu0 %v562
    %653 = vmatpush1.bf16.msra.mxu0 %v561
    %654 = vmatprep.subr.bf16.mxu0 %v566
    %655 = vmatpush1.bf16.msra.mxu0 %v565
    %656 = vmatprep.subr.bf16.mxu0 0
    %657 = vmatpush1.bf16.msra.mxu0 0
    %658 = vmatprep.subr.bf16.mxu0 0
    %659 = vmatpush1.bf16.msra.mxu0 0
    %660 = vmatprep.subr.bf16.mxu0 0
    %661 = vmatpush1.bf16.msra.mxu0 0
    %662 = vmatprep.subr.bf16.mxu0 0
    %663 = vmatpush1.bf16.msra.mxu0 0
    %664 = vmatprep.subr.bf16.mxu0 0
    %665 = vmatpush1.bf16.msra.mxu0 0
    %666 = vmatprep.subr.bf16.mxu0 0
    %667 = vmatpush1.bf16.msra.mxu0 0
    %668 = vmatprep.subr.bf16.mxu0 0
    %669 = vmatpush1.bf16.msra.mxu0 0
    %670 = vmatprep.subr.bf16.mxu0 0
    %671 = vmatpush1.bf16.msra.mxu0 0
    %672 = vmatprep.mubr.bf16.mxu0 0
    %673 = vmatmul.mubr.bf16.gmra.mrb[0].mxu0 0
    %v674 = vpop.f32.mrb[0].mxu0
    %v675 = vadd.f32 0.0, %v674
    %v676 = vpop.f32.mrb[0].mxu0
    %v677 = vadd.f32 0.0, %v676
    %v678 = vpop.f32.mrb[0].mxu0
    %v679 = vpop.f32.mrb[0].mxu0
    %680 = vdwg.mxu0
    %v681 = vadd.f32 %v306, %v634
    %v682 = vadd.f32 %v308, %v636
    %v683 = vadd.f32 %v379, %v675
    %v684 = vadd.f32 %v381, %v677
    %v685 = vxor.u32 %v681, 2147483648
    %v686 = vxor.u32 %v682, 2147483648
    %v687 = vxor.u32 %v683, 2147483648
    %v688 = vmul.f32 %v685, 1.442695
    %v689 = vpow.pop %v688
    %v690 = vmul.f32 %v686, 1.442695
    %v691 = vpow.pop %v690
    %v692 = vmul.f32 %v687, 1.442695
    %v693 = vpow.pop %v692
    %v694 = vadd.f32 %v689, 1.0
    %v695 = vadd.f32 %v691, 1.0
    %v696 = vadd.f32 %v693, 1.0
    %v697 = vrcp.pop %v694
    %v698 = vmul.f32 1.0, %v697
    %v699 = vrcp.pop %v695
    %v700 = vmul.f32 1.0, %v699
    %v701 = vrcp.pop %v696
    %v702 = vmul.f32 1.0, %v701
    %v703 = vtanh.pop %v684
    %v704 = vmul.f32 %v700, 0.0
    %v705 = vmul.f32 %v698, %v703
    %v706 = vadd.f32 %v704, %v705
    %v707 = vtanh.pop %v706
    %v708 = vmul.f32 %v702, %v707
    %v709 = vpack.c.bf16 %v708, %v708
    %v710 = vpack.c.bf16 0.0, 0.0
    %v775 = vunpack.c.l.b16 %v104
    %v776 = vunpack.c.h.b16 %v104
    %v777 = vunpack.c.l.b16 %v105
    %v778 = vunpack.c.h.b16 %v105
    %v779 = vunpack.c.l.b16 %v106
    %v780 = vunpack.c.h.b16 %v106
    %v781 = vunpack.c.l.b16 %v107
    %v782 = vunpack.c.h.b16 %v107
    %v783 = vunpack.c.l.b16 %v108
    %v784 = vunpack.c.h.b16 %v108
    %v785 = vunpack.c.l.b16 %v109
    %v786 = vunpack.c.h.b16 %v109
    %v787 = vunpack.c.l.b16 %v110
    %v788 = vunpack.c.h.b16 %v110
    %v789 = vunpack.c.l.b16 %v111
    %v790 = vunpack.c.h.b16 %v111
    %v791 = vunpack.c.l.b16 %v112
    %v792 = vunpack.c.h.b16 %v112
    %v793 = vunpack.c.l.b16 %v113
    %v794 = vunpack.c.h.b16 %v113
    %v795 = vunpack.c.l.b16 %v114
    %v796 = vunpack.c.h.b16 %v114
    %v797 = vunpack.c.l.b16 %v115
    %v798 = vunpack.c.h.b16 %v115
    %v799 = vunpack.c.l.b16 %v116
    %v800 = vunpack.c.h.b16 %v116
    %v801 = vunpack.c.l.b16 %v117
    %v802 = vunpack.c.h.b16 %v117
    %v803 = vunpack.c.l.b16 %v118
    %v804 = vunpack.c.h.b16 %v118
    %v805 = vunpack.c.l.b16 %v119
    %v806 = vunpack.c.h.b16 %v119
    %v807 = vunpack.c.l.b16 %v120
    %v808 = vunpack.c.h.b16 %v120
    %v809 = vunpack.c.l.b16 %v121
    %v810 = vunpack.c.h.b16 %v121
    %v811 = vunpack.c.l.b16 %v122
    %v812 = vunpack.c.h.b16 %v122
    %v813 = vunpack.c.l.b16 %v123
    %v814 = vunpack.c.h.b16 %v123
    %v815 = vunpack.c.l.b16 %v124
    %v816 = vunpack.c.h.b16 %v124
    %v817 = vunpack.c.l.b16 %v125
    %v818 = vunpack.c.h.b16 %v125
    %v819 = vunpack.c.l.b16 %v126
    %v820 = vunpack.c.h.b16 %v126
    %v821 = vunpack.c.l.b16 %v127
    %v822 = vunpack.c.h.b16 %v127
    %v823 = vunpack.c.l.b16 %v128
    %v824 = vunpack.c.h.b16 %v128
    %v825 = vunpack.c.l.b16 %v129
    %v826 = vunpack.c.h.b16 %v129
    %v827 = vunpack.c.l.b16 %v130
    %v828 = vunpack.c.h.b16 %v130
    %v829 = vunpack.c.l.b16 %v131
    %v830 = vunpack.c.h.b16 %v131
    %v831 = vunpack.c.l.b16 %v132
    %v832 = vunpack.c.h.b16 %v132
    %v833 = vunpack.c.l.b16 %v133
    %v834 = vunpack.c.h.b16 %v133
    %v835 = vunpack.c.l.b16 %v134
    %v836 = vunpack.c.h.b16 %v134
    %v837 = vunpack.c.l.b16 %v135
    %v838 = vunpack.c.h.b16 %v135
    %v839 = vunpack.c.l.b16 %v136
    %v840 = vunpack.c.h.b16 %v136
    %v841 = vunpack.c.l.b16 %v137
    %v842 = vunpack.c.h.b16 %v137
    %v843 = vunpack.c.l.b16 %v138
    %v844 = vunpack.c.h.b16 %v138
    %v845 = vunpack.c.l.b16 %v139
    %v846 = vunpack.c.h.b16 %v139
    %v847 = vunpack.c.l.b16 %v140
    %v848 = vunpack.c.h.b16 %v140
    %v849 = vunpack.c.l.b16 %v141
    %v850 = vunpack.c.h.b16 %v141
    %v851 = vunpack.c.l.b16 %v142
    %v852 = vunpack.c.h.b16 %v142
    %v853 = vunpack.c.l.b16 %v143
    %v854 = vunpack.c.h.b16 %v143
    %v855 = vunpack.c.l.b16 %v144
    %v856 = vunpack.c.h.b16 %v144
    %v857 = vunpack.c.l.b16 %v145
    %v858 = vunpack.c.h.b16 %v145
    %v859 = vunpack.c.l.b16 %v146
    %v860 = vunpack.c.h.b16 %v146
    %v861 = vunpack.c.l.b16 %v147
    %v862 = vunpack.c.h.b16 %v147
    %v863 = vunpack.c.l.b16 %v148
    %v864 = vunpack.c.h.b16 %v148
    %v865 = vunpack.c.l.b16 %v149
    %v866 = vunpack.c.h.b16 %v149
    %v867 = vunpack.c.l.b16 %v150
    %v868 = vunpack.c.h.b16 %v150
    %v869 = vunpack.c.l.b16 %v151
    %v870 = vunpack.c.h.b16 %v151
    %v871 = vunpack.c.l.b16 %v152
    %v872 = vunpack.c.h.b16 %v152
    %v873 = vunpack.c.l.b16 %v153
    %v874 = vunpack.c.h.b16 %v153
    %v875 = vunpack.c.l.b16 %v154
    %v876 = vunpack.c.h.b16 %v154
    %v877 = vunpack.c.l.b16 %v155
    %v878 = vunpack.c.h.b16 %v155
    %v879 = vunpack.c.l.b16 %v156
    %v880 = vunpack.c.h.b16 %v156
    %v881 = vunpack.c.l.b16 %v157
    %v882 = vunpack.c.h.b16 %v157
    %v883 = vunpack.c.l.b16 %v158
    %v884 = vunpack.c.h.b16 %v158
    %v885 = vunpack.c.l.b16 %v159
    %v886 = vunpack.c.h.b16 %v159
    %v887 = vunpack.c.l.b16 %v160
    %v888 = vunpack.c.h.b16 %v160
    %v889 = vunpack.c.l.b16 %v161
    %v890 = vunpack.c.h.b16 %v161
    %v891 = vunpack.c.l.b16 %v162
    %v892 = vunpack.c.h.b16 %v162
    %v893 = vunpack.c.l.b16 %v163
    %v894 = vunpack.c.h.b16 %v163
    %v895 = vunpack.c.l.b16 %v164
    %v896 = vunpack.c.h.b16 %v164
    %v897 = vunpack.c.l.b16 %v165
    %v898 = vunpack.c.h.b16 %v165
    %v899 = vunpack.c.l.b16 %v166
    %v900 = vunpack.c.h.b16 %v166
    %v901 = vunpack.c.l.b16 %v167
    %v902 = vunpack.c.h.b16 %v167
    %v903 = vpack.c.b16 %v779, %v775
    %v904 = vpack.c.b16 %v780, %v776
    %v905 = vpack.c.b16 %v781, %v777
    %v906 = vpack.c.b16 %v782, %v778
    %v907 = vpack.c.b16 %v787, %v783
    %v908 = vpack.c.b16 %v788, %v784
    %v909 = vpack.c.b16 %v789, %v785
    %v910 = vpack.c.b16 %v790, %v786
    %v911 = vpack.c.b16 %v795, %v791
    %v912 = vpack.c.b16 %v796, %v792
    %v913 = vpack.c.b16 %v797, %v793
    %v914 = vpack.c.b16 %v798, %v794
    %v915 = vpack.c.b16 %v803, %v799
    %v916 = vpack.c.b16 %v804, %v800
    %v917 = vpack.c.b16 %v805, %v801
    %v918 = vpack.c.b16 %v806, %v802
    %v919 = vpack.c.b16 %v811, %v807
    %v920 = vpack.c.b16 %v812, %v808
    %v921 = vpack.c.b16 %v813, %v809
    %v922 = vpack.c.b16 %v814, %v810
    %v923 = vpack.c.b16 %v819, %v815
    %v924 = vpack.c.b16 %v820, %v816
    %v925 = vpack.c.b16 %v821, %v817
    %v926 = vpack.c.b16 %v822, %v818
    %v927 = vpack.c.b16 %v827, %v823
    %v928 = vpack.c.b16 %v828, %v824
    %v929 = vpack.c.b16 %v829, %v825
    %v930 = vpack.c.b16 %v830, %v826
    %v931 = vpack.c.b16 %v835, %v831
    %v932 = vpack.c.b16 %v836, %v832
    %v933 = vpack.c.b16 %v837, %v833
    %v934 = vpack.c.b16 %v838, %v834
    %v935 = vpack.c.b16 %v843, %v839
    %v936 = vpack.c.b16 %v844, %v840
    %v937 = vpack.c.b16 %v845, %v841
    %v938 = vpack.c.b16 %v846, %v842
    %v939 = vpack.c.b16 %v851, %v847
    %v940 = vpack.c.b16 %v852, %v848
    %v941 = vpack.c.b16 %v853, %v849
    %v942 = vpack.c.b16 %v854, %v850
    %v943 = vpack.c.b16 %v859, %v855
    %v944 = vpack.c.b16 %v860, %v856
    %v945 = vpack.c.b16 %v861, %v857
    %v946 = vpack.c.b16 %v862, %v858
    %v947 = vpack.c.b16 %v867, %v863
    %v948 = vpack.c.b16 %v868, %v864
    %v949 = vpack.c.b16 %v869, %v865
    %v950 = vpack.c.b16 %v870, %v866
    %v951 = vpack.c.b16 %v875, %v871
    %v952 = vpack.c.b16 %v876, %v872
    %v953 = vpack.c.b16 %v877, %v873
    %v954 = vpack.c.b16 %v878, %v874
    %v955 = vpack.c.b16 %v883, %v879
    %v956 = vpack.c.b16 %v884, %v880
    %v957 = vpack.c.b16 %v885, %v881
    %v958 = vpack.c.b16 %v886, %v882
    %v959 = vpack.c.b16 %v891, %v887
    %v960 = vpack.c.b16 %v892, %v888
    %v961 = vpack.c.b16 %v893, %v889
    %v962 = vpack.c.b16 %v894, %v890
    %v963 = vpack.c.b16 %v899, %v895
    %v964 = vpack.c.b16 %v900, %v896
    %v965 = vpack.c.b16 %v901, %v897
    %v966 = vpack.c.b16 %v902, %v898
    %1031 = vmatprep.subr.bf16.mxu0 %v904
    %1032 = vmatpush1.bf16.msra.mxu0 %v903
    %1033 = vmatprep.subr.bf16.mxu0 %v908
    %1034 = vmatpush1.bf16.msra.mxu0 %v907
    %1035 = vmatprep.subr.bf16.mxu0 %v912
    %1036 = vmatpush1.bf16.msra.mxu0 %v911
    %1037 = vmatprep.subr.bf16.mxu0 %v916
    %1038 = vmatpush1.bf16.msra.mxu0 %v915
    %1039 = vmatprep.subr.bf16.mxu0 %v920
    %1040 = vmatpush1.bf16.msra.mxu0 %v919
    %1041 = vmatprep.subr.bf16.mxu0 %v924
    %1042 = vmatpush1.bf16.msra.mxu0 %v923
    %1043 = vmatprep.subr.bf16.mxu0 %v928
    %1044 = vmatpush1.bf16.msra.mxu0 %v927
    %1045 = vmatprep.subr.bf16.mxu0 %v932
    %1046 = vmatpush1.bf16.msra.mxu0 %v931
    %1047 = vmatprep.subr.bf16.mxu0 %v936
    %1048 = vmatpush1.bf16.msra.mxu0 %v935
    %1049 = vmatprep.subr.bf16.mxu0 %v940
    %1050 = vmatpush1.bf16.msra.mxu0 %v939
    %1051 = vmatprep.subr.bf16.mxu0 %v944
    %1052 = vmatpush1.bf16.msra.mxu0 %v943
    %1053 = vmatprep.subr.bf16.mxu0 %v948
    %1054 = vmatpush1.bf16.msra.mxu0 %v947
    %1055 = vmatprep.subr.bf16.mxu0 %v952
    %1056 = vmatpush1.bf16.msra.mxu0 %v951
    %1057 = vmatprep.subr.bf16.mxu0 %v956
    %1058 = vmatpush1.bf16.msra.mxu0 %v955
    %1059 = vmatprep.subr.bf16.mxu0 %v960
    %1060 = vmatpush1.bf16.msra.mxu0 %v959
    %1061 = vmatprep.subr.bf16.mxu0 %v964
    %1062 = vmatpush1.bf16.msra.mxu0 %v963
    %1063 = vmatprep.mubr.bf16.mxu0 %v710
    %1064 = vmatmul.mubr.bf16.gmra.mrb[0].mxu0 %v709
    %v1065 = vpop.f32.mrb[0].mxu0
    %v1066 = vadd.f32 %v422, %v1065
    %v1067 = vpop.f32.mrb[0].mxu0
    %v1068 = vadd.f32 %v426, %v1067
    %v1069 = vpop.f32.mrb[0].mxu0
    %v1070 = vpop.f32.mrb[0].mxu0
    %1071 = vdwg.mxu0
    %1072 = vmatprep.subr.bf16.mxu0 %v906
    %1073 = vmatpush1.bf16.msra.mxu0 %v905
    %1074 = vmatprep.subr.bf16.mxu0 %v910
    %1075 = vmatpush1.bf16.msra.mxu0 %v909
    %1076 = vmatprep.subr.bf16.mxu0 %v914
    %1077 = vmatpush1.bf16.msra.mxu0 %v913
    %1078 = vmatprep.subr.bf16.mxu0 %v918
    %1079 = vmatpush1.bf16.msra.mxu0 %v917
    %1080 = vmatprep.subr.bf16.mxu0 %v922
    %1081 = vmatpush1.bf16.msra.mxu0 %v921
    %1082 = vmatprep.subr.bf16.mxu0 %v926
    %1083 = vmatpush1.bf16.msra.mxu0 %v925
    %1084 = vmatprep.subr.bf16.mxu0 %v930
    %1085 = vmatpush1.bf16.msra.mxu0 %v929
    %1086 = vmatprep.subr.bf16.mxu0 %v934
    %1087 = vmatpush1.bf16.msra.mxu0 %v933
    %1088 = vmatprep.subr.bf16.mxu0 %v938
    %1089 = vmatpush1.bf16.msra.mxu0 %v937
    %1090 = vmatprep.subr.bf16.mxu0 %v942
    %1091 = vmatpush1.bf16.msra.mxu0 %v941
    %1092 = vmatprep.subr.bf16.mxu0 %v946
    %1093 = vmatpush1.bf16.msra.mxu0 %v945
    %1094 = vmatprep.subr.bf16.mxu0 %v950
    %1095 = vmatpush1.bf16.msra.mxu0 %v949
    %1096 = vmatprep.subr.bf16.mxu0 %v954
    %1097 = vmatpush1.bf16.msra.mxu0 %v953
    %1098 = vmatprep.subr.bf16.mxu0 %v958
    %1099 = vmatpush1.bf16.msra.mxu0 %v957
    %1100 = vmatprep.subr.bf16.mxu0 %v962
    %1101 = vmatpush1.bf16.msra.mxu0 %v961
    %1102 = vmatprep.subr.bf16.mxu0 %v966
    %1103 = vmatpush1.bf16.msra.mxu0 %v965
    %1104 = vmatprep.mubr.bf16.mxu0 %v710
    %1105 = vmatmul.mubr.bf16.gmra.mrb[0].mxu0 %v709
    %v1106 = vpop.f32.mrb[0].mxu0
    %v1107 = vadd.f32 %v430, %v1106
    %v1108 = vpop.f32.mrb[0].mxu0
    %v1109 = vadd.f32 %v434, %v1108
    %v1110 = vpop.f32.mrb[0].mxu0
    %v1111 = vpop.f32.mrb[0].mxu0
    %1112 = vdwg.mxu0
    %v1113 = vxor.u32 %v1066, 2147483648
    %v1114 = vxor.u32 %v1068, 2147483648
    %v1115 = vxor.u32 %v1107, 2147483648
    %v1116 = vmul.f32 %v1113, 1.442695
    %v1117 = vpow.pop %v1116
    %v1118 = vmul.f32 %v1114, 1.442695
    %v1119 = vpow.pop %v1118
    %v1120 = vmul.f32 %v1115, 1.442695
    %v1121 = vpow.pop %v1120
    %v1122 = vadd.f32 %v1117, 1.0
    %v1123 = vadd.f32 %v1119, 1.0
    %v1124 = vadd.f32 %v1121, 1.0
    %v1125 = vrcp.pop %v1122
    %v1126 = vmul.f32 1.0, %v1125
    %v1127 = vrcp.pop %v1123
    %v1128 = vmul.f32 1.0, %v1127
    %v1129 = vrcp.pop %v1124
    %v1130 = vmul.f32 1.0, %v1129
    %v1131 = vtanh.pop %v1109
    %v1132 = vmul.f32 %v1128, 0.0
    %v1133 = vmul.f32 %v1126, %v1131
    %v1134 = vadd.f32 %v1132, %v1133
    %v1135 = vtanh.pop %v1134
    %v1136 = vmul.f32 %v1130, %v1135
    %1137 = vmatprep.subr.bf16.mxu0 %v536
    %1138 = vmatpush1.bf16.msra.mxu0 %v535
    %1139 = vmatprep.subr.bf16.mxu0 %v540
    %1140 = vmatpush1.bf16.msra.mxu0 %v539
    %1141 = vmatprep.subr.bf16.mxu0 %v544
    %1142 = vmatpush1.bf16.msra.mxu0 %v543
    %1143 = vmatprep.subr.bf16.mxu0 %v548
    %1144 = vmatpush1.bf16.msra.mxu0 %v547
    %1145 = vmatprep.subr.bf16.mxu0 %v552
    %1146 = vmatpush1.bf16.msra.mxu0 %v551
    %1147 = vmatprep.subr.bf16.mxu0 %v556
    %1148 = vmatpush1.bf16.msra.mxu0 %v555
    %1149 = vmatprep.subr.bf16.mxu0 %v560
    %1150 = vmatpush1.bf16.msra.mxu0 %v559
    %1151 = vmatprep.subr.bf16.mxu0 %v564
    %1152 = vmatpush1.bf16.msra.mxu0 %v563
    %1153 = vmatprep.subr.bf16.mxu0 0
    %1154 = vmatpush1.bf16.msra.mxu0 0
    %1155 = vmatprep.subr.bf16.mxu0 0
    %1156 = vmatpush1.bf16.msra.mxu0 0
    %1157 = vmatprep.subr.bf16.mxu0 0
    %1158 = vmatpush1.bf16.msra.mxu0 0
    %1159 = vmatprep.subr.bf16.mxu0 0
    %1160 = vmatpush1.bf16.msra.mxu0 0
    %1161 = vmatprep.subr.bf16.mxu0 0
    %1162 = vmatpush1.bf16.msra.mxu0 0
    %1163 = vmatprep.subr.bf16.mxu0 0
    %1164 = vmatpush1.bf16.msra.mxu0 0
    %1165 = vmatprep.subr.bf16.mxu0 0
    %1166 = vmatpush1.bf16.msra.mxu0 0
    %1167 = vmatprep.subr.bf16.mxu0 0
    %1168 = vmatpush1.bf16.msra.mxu0 0
    %1169 = vmatprep.mubr.bf16.mxu0 0
    %1170 = vmatmul.mubr.bf16.gmra.mrb[0].mxu0 %v709
    %v1171 = vpop.f32.mrb[0].mxu0
    %v1172 = vadd.f32 0.0, %v1171
    %v1173 = vpop.f32.mrb[0].mxu0
    %v1174 = vadd.f32 0.0, %v1173
    %v1175 = vpop.f32.mrb[0].mxu0
    %v1176 = vpop.f32.mrb[0].mxu0
    %1177 = vdwg.mxu0
    %1178 = vmatprep.subr.bf16.mxu0 %v538
    %1179 = vmatpush1.bf16.msra.mxu0 %v537
    %1180 = vmatprep.subr.bf16.mxu0 %v542
    %1181 = vmatpush1.bf16.msra.mxu0 %v541
    %1182 = vmatprep.subr.bf16.mxu0 %v546
    %1183 = vmatpush1.bf16.msra.mxu0 %v545
    %1184 = vmatprep.subr.bf16.mxu0 %v550
    %1185 = vmatpush1.bf16.msra.mxu0 %v549
    %1186 = vmatprep.subr.bf16.mxu0 %v554
    %1187 = vmatpush1.bf16.msra.mxu0 %v553
    %1188 = vmatprep.subr.bf16.mxu0 %v558
    %1189 = vmatpush1.bf16.msra.mxu0 %v557
    %1190 = vmatprep.subr.bf16.mxu0 %v562
    %1191 = vmatpush1.bf16.msra.mxu0 %v561
    %1192 = vmatprep.subr.bf16.mxu0 %v566
    %1193 = vmatpush1.bf16.msra.mxu0 %v565
    %1194 = vmatprep.subr.bf16.mxu0 0
    %1195 = vmatpush1.bf16.msra.mxu0 0
    %1196 = vmatprep.subr.bf16.mxu0 0
    %1197 = vmatpush1.bf16.msra.mxu0 0
    %1198 = vmatprep.subr.bf16.mxu0 0
    %1199 = vmatpush1.bf16.msra.mxu0 0
    %1200 = vmatprep.subr.bf16.mxu0 0
    %1201 = vmatpush1.bf16.msra.mxu0 0
    %1202 = vmatprep.subr.bf16.mxu0 0
    %1203 = vmatpush1.bf16.msra.mxu0 0
    %1204 = vmatprep.subr.bf16.mxu0 0
    %1205 = vmatpush1.bf16.msra.mxu0 0
    %1206 = vmatprep.subr.bf16.mxu0 0
    %1207 = vmatpush1.bf16.msra.mxu0 0
    %1208 = vmatprep.subr.bf16.mxu0 0
    %1209 = vmatpush1.bf16.msra.mxu0 0
    %1210 = vmatprep.mubr.bf16.mxu0 0
    %1211 = vmatmul.mubr.bf16.gmra.mrb[0].mxu0 %v709
    %v1212 = vpop.f32.mrb[0].mxu0
    %v1213 = vadd.f32 0.0, %v1212
    %v1214 = vpop.f32.mrb[0].mxu0
    %v1215 = vadd.f32 0.0, %v1214
    %v1216 = vpop.f32.mrb[0].mxu0
    %v1217 = vpop.f32.mrb[0].mxu0
    %1218 = vdwg.mxu0
    %v1219 = vadd.f32 %v310, %v1172
    %v1220 = vadd.f32 %v312, %v1174
    %v1221 = vadd.f32 %v383, %v1213
    %v1222 = vadd.f32 %v385, %v1215
    %v1223 = vxor.u32 %v1219, 2147483648
    %v1224 = vxor.u32 %v1220, 2147483648
    %v1225 = vxor.u32 %v1221, 2147483648
    %v1226 = vmul.f32 %v1223, 1.442695
    %v1227 = vpow.pop %v1226
    %v1228 = vmul.f32 %v1224, 1.442695
    %v1229 = vpow.pop %v1228
    %v1230 = vmul.f32 %v1225, 1.442695
    %v1231 = vpow.pop %v1230
    %v1232 = vadd.f32 %v1227, 1.0
    %v1233 = vadd.f32 %v1229, 1.0
    %v1234 = vadd.f32 %v1231, 1.0
    %v1235 = vrcp.pop %v1232
    %v1236 = vmul.f32 1.0, %v1235
    %v1237 = vrcp.pop %v1233
    %v1238 = vmul.f32 1.0, %v1237
    %v1239 = vrcp.pop %v1234
    %v1240 = vmul.f32 1.0, %v1239
    %v1241 = vtanh.pop %v1222
    %v1242 = vmul.f32 %v1238, %v706
    %v1243 = vmul.f32 %v1236, %v1241
    %v1244 = vadd.f32 %v1242, %v1243
    %v1245 = vtanh.pop %v1244
    %v1246 = vmul.f32 %v1240, %v1245
    %v1247 = vpack.c.bf16 %v1246, %v1246
    %v1248 = vpack.c.bf16 %v1136, %v1136
    %1249 = vmatprep.subr.bf16.mxu0 %v904
    %1250 = vmatpush1.bf16.msra.mxu0 %v903
    %1251 = vmatprep.subr.bf16.mxu0 %v908
    %1252 = vmatpush1.bf16.msra.mxu0 %v907
    %1253 = vmatprep.subr.bf16.mxu0 %v912
    %1254 = vmatpush1.bf16.msra.mxu0 %v911
    %1255 = vmatprep.subr.bf16.mxu0 %v916
    %1256 = vmatpush1.bf16.msra.mxu0 %v915
    %1257 = vmatprep.subr.bf16.mxu0 %v920
    %1258 = vmatpush1.bf16.msra.mxu0 %v919
    %1259 = vmatprep.subr.bf16.mxu0 %v924
    %1260 = vmatpush1.bf16.msra.mxu0 %v923
    %1261 = vmatprep.subr.bf16.mxu0 %v928
    %1262 = vmatpush1.bf16.msra.mxu0 %v927
    %1263 = vmatprep.subr.bf16.mxu0 %v932
    %1264 = vmatpush1.bf16.msra.mxu0 %v931
    %1265 = vmatprep.subr.bf16.mxu0 %v936
    %1266 = vmatpush1.bf16.msra.mxu0 %v935
    %1267 = vmatprep.subr.bf16.mxu0 %v940
    %1268 = vmatpush1.bf16.msra.mxu0 %v939
    %1269 = vmatprep.subr.bf16.mxu0 %v944
    %1270 = vmatpush1.bf16.msra.mxu0 %v943
    %1271 = vmatprep.subr.bf16.mxu0 %v948
    %1272 = vmatpush1.bf16.msra.mxu0 %v947
    %1273 = vmatprep.subr.bf16.mxu0 %v952
    %1274 = vmatpush1.bf16.msra.mxu0 %v951
    %1275 = vmatprep.subr.bf16.mxu0 %v956
    %1276 = vmatpush1.bf16.msra.mxu0 %v955
    %1277 = vmatprep.subr.bf16.mxu0 %v960
    %1278 = vmatpush1.bf16.msra.mxu0 %v959
    %1279 = vmatprep.subr.bf16.mxu0 %v964
    %1280 = vmatpush1.bf16.msra.mxu0 %v963
    %1281 = vmatprep.mubr.bf16.mxu0 %v1248
    %1282 = vmatmul.mubr.bf16.gmra.mrb[0].mxu0 %v1247
    %v1283 = vpop.f32.mrb[0].mxu0
    %v1284 = vadd.f32 %v422, %v1283
    %v1285 = vpop.f32.mrb[0].mxu0
    %v1286 = vadd.f32 %v426, %v1285
    %v1287 = vpop.f32.mrb[0].mxu0
    %v1288 = vpop.f32.mrb[0].mxu0
    %1289 = vdwg.mxu0
    %1290 = vmatprep.subr.bf16.mxu0 %v906
    %1291 = vmatpush1.bf16.msra.mxu0 %v905
    %1292 = vmatprep.subr.bf16.mxu0 %v910
    %1293 = vmatpush1.bf16.msra.mxu0 %v909
    %1294 = vmatprep.subr.bf16.mxu0 %v914
    %1295 = vmatpush1.bf16.msra.mxu0 %v913
    %1296 = vmatprep.subr.bf16.mxu0 %v918
    %1297 = vmatpush1.bf16.msra.mxu0 %v917
    %1298 = vmatprep.subr.bf16.mxu0 %v922
    %1299 = vmatpush1.bf16.msra.mxu0 %v921
    %1300 = vmatprep.subr.bf16.mxu0 %v926
    %1301 = vmatpush1.bf16.msra.mxu0 %v925
    %1302 = vmatprep.subr.bf16.mxu0 %v930
    %1303 = vmatpush1.bf16.msra.mxu0 %v929
    %1304 = vmatprep.subr.bf16.mxu0 %v934
    %1305 = vmatpush1.bf16.msra.mxu0 %v933
    %1306 = vmatprep.subr.bf16.mxu0 %v938
    %1307 = vmatpush1.bf16.msra.mxu0 %v937
    %1308 = vmatprep.subr.bf16.mxu0 %v942
    %1309 = vmatpush1.bf16.msra.mxu0 %v941
    %1310 = vmatprep.subr.bf16.mxu0 %v946
    %1311 = vmatpush1.bf16.msra.mxu0 %v945
    %1312 = vmatprep.subr.bf16.mxu0 %v950
    %1313 = vmatpush1.bf16.msra.mxu0 %v949
    %1314 = vmatprep.subr.bf16.mxu0 %v954
    %1315 = vmatpush1.bf16.msra.mxu0 %v953
    %1316 = vmatprep.subr.bf16.mxu0 %v958
    %1317 = vmatpush1.bf16.msra.mxu0 %v957
    %1318 = vmatprep.subr.bf16.mxu0 %v962
    %1319 = vmatpush1.bf16.msra.mxu0 %v961
    %1320 = vmatprep.subr.bf16.mxu0 %v966
    %1321 = vmatpush1.bf16.msra.mxu0 %v965
    %1322 = vmatprep.mubr.bf16.mxu0 %v1248
    %1323 = vmatmul.mubr.bf16.gmra.mrb[0].mxu0 %v1247
    %v1324 = vpop.f32.mrb[0].mxu0
    %v1325 = vadd.f32 %v430, %v1324
    %v1326 = vpop.f32.mrb[0].mxu0
    %v1327 = vadd.f32 %v434, %v1326
    %v1328 = vpop.f32.mrb[0].mxu0
    %v1329 = vpop.f32.mrb[0].mxu0
    %1330 = vdwg.mxu0
    %v1331 = vxor.u32 %v1284, 2147483648
    %v1332 = vxor.u32 %v1286, 2147483648
    %v1333 = vxor.u32 %v1325, 2147483648
    %v1334 = vmul.f32 %v1331, 1.442695
    %v1335 = vpow.pop %v1334
    %v1336 = vmul.f32 %v1332, 1.442695
    %v1337 = vpow.pop %v1336
    %v1338 = vmul.f32 %v1333, 1.442695
    %v1339 = vpow.pop %v1338
    %v1340 = vadd.f32 %v1335, 1.0
    %v1341 = vadd.f32 %v1337, 1.0
    %v1342 = vadd.f32 %v1339, 1.0
    %v1343 = vrcp.pop %v1340
    %v1344 = vmul.f32 1.0, %v1343
    %v1345 = vrcp.pop %v1341
    %v1346 = vmul.f32 1.0, %v1345
    %v1347 = vrcp.pop %v1342
    %v1348 = vmul.f32 1.0, %v1347
    %v1349 = vtanh.pop %v1327
    %v1350 = vmul.f32 %v1346, %v1134
    %v1351 = vmul.f32 %v1344, %v1349
    %v1352 = vadd.f32 %v1350, %v1351
    %v1353 = vtanh.pop %v1352
    %v1354 = vmul.f32 %v1348, %v1353
    %1355 = vmatprep.subr.bf16.mxu0 %v536
    %1356 = vmatpush1.bf16.msra.mxu0 %v535
    %1357 = vmatprep.subr.bf16.mxu0 %v540
    %1358 = vmatpush1.bf16.msra.mxu0 %v539
    %1359 = vmatprep.subr.bf16.mxu0 %v544
    %1360 = vmatpush1.bf16.msra.mxu0 %v543
    %1361 = vmatprep.subr.bf16.mxu0 %v548
    %1362 = vmatpush1.bf16.msra.mxu0 %v547
    %1363 = vmatprep.subr.bf16.mxu0 %v552
    %1364 = vmatpush1.bf16.msra.mxu0 %v551
    %1365 = vmatprep.subr.bf16.mxu0 %v556
    %1366 = vmatpush1.bf16.msra.mxu0 %v555
    %1367 = vmatprep.subr.bf16.mxu0 %v560
    %1368 = vmatpush1.bf16.msra.mxu0 %v559
    %1369 = vmatprep.subr.bf16.mxu0 %v564
    %1370 = vmatpush1.bf16.msra.mxu0 %v563
    %1371 = vmatprep.subr.bf16.mxu0 0
    %1372 = vmatpush1.bf16.msra.mxu0 0
    %1373 = vmatprep.subr.bf16.mxu0 0
    %1374 = vmatpush1.bf16.msra.mxu0 0
    %1375 = vmatprep.subr.bf16.mxu0 0
    %1376 = vmatpush1.bf16.msra.mxu0 0
    %1377 = vmatprep.subr.bf16.mxu0 0
    %1378 = vmatpush1.bf16.msra.mxu0 0
    %1379 = vmatprep.subr.bf16.mxu0 0
    %1380 = vmatpush1.bf16.msra.mxu0 0
    %1381 = vmatprep.subr.bf16.mxu0 0
    %1382 = vmatpush1.bf16.msra.mxu0 0
    %1383 = vmatprep.subr.bf16.mxu0 0
    %1384 = vmatpush1.bf16.msra.mxu0 0
    %1385 = vmatprep.subr.bf16.mxu0 0
    %1386 = vmatpush1.bf16.msra.mxu0 0
    %1387 = vmatprep.mubr.bf16.mxu0 0
    %1388 = vmatmul.mubr.bf16.gmra.mrb[0].mxu0 %v1247
    %v1389 = vpop.f32.mrb[0].mxu0
    %v1390 = vadd.f32 0.0, %v1389
    %v1391 = vpop.f32.mrb[0].mxu0
    %v1392 = vadd.f32 0.0, %v1391
    %v1393 = vpop.f32.mrb[0].mxu0
    %v1394 = vpop.f32.mrb[0].mxu0
    %1395 = vdwg.mxu0
    %1396 = vmatprep.subr.bf16.mxu0 %v538
    %1397 = vmatpush1.bf16.msra.mxu0 %v537
    %1398 = vmatprep.subr.bf16.mxu0 %v542
    %1399 = vmatpush1.bf16.msra.mxu0 %v541
    %1400 = vmatprep.subr.bf16.mxu0 %v546
    %1401 = vmatpush1.bf16.msra.mxu0 %v545
    %1402 = vmatprep.subr.bf16.mxu0 %v550
    %1403 = vmatpush1.bf16.msra.mxu0 %v549
    %1404 = vmatprep.subr.bf16.mxu0 %v554
    %1405 = vmatpush1.bf16.msra.mxu0 %v553
    %1406 = vmatprep.subr.bf16.mxu0 %v558
    %1407 = vmatpush1.bf16.msra.mxu0 %v557
    %1408 = vmatprep.subr.bf16.mxu0 %v562
    %1409 = vmatpush1.bf16.msra.mxu0 %v561
    %1410 = vmatprep.subr.bf16.mxu0 %v566
    %1411 = vmatpush1.bf16.msra.mxu0 %v565
    %1412 = vmatprep.subr.bf16.mxu0 0
    %1413 = vmatpush1.bf16.msra.mxu0 0
    %1414 = vmatprep.subr.bf16.mxu0 0
    %1415 = vmatpush1.bf16.msra.mxu0 0
    %1416 = vmatprep.subr.bf16.mxu0 0
    %1417 = vmatpush1.bf16.msra.mxu0 0
    %1418 = vmatprep.subr.bf16.mxu0 0
    %1419 = vmatpush1.bf16.msra.mxu0 0
    %1420 = vmatprep.subr.bf16.mxu0 0
    %1421 = vmatpush1.bf16.msra.mxu0 0
    %1422 = vmatprep.subr.bf16.mxu0 0
    %1423 = vmatpush1.bf16.msra.mxu0 0
    %1424 = vmatprep.subr.bf16.mxu0 0
    %1425 = vmatpush1.bf16.msra.mxu0 0
    %1426 = vmatprep.subr.bf16.mxu0 0
    %1427 = vmatpush1.bf16.msra.mxu0 0
    %1428 = vmatprep.mubr.bf16.mxu0 0
    %1429 = vmatmul.mubr.bf16.gmra.mrb[0].mxu0 %v1247
    %v1430 = vpop.f32.mrb[0].mxu0
    %v1431 = vadd.f32 0.0, %v1430
    %v1432 = vpop.f32.mrb[0].mxu0
    %v1433 = vadd.f32 0.0, %v1432
    %v1434 = vpop.f32.mrb[0].mxu0
    %v1435 = vpop.f32.mrb[0].mxu0
    %1436 = vdwg.mxu0
    %v1437 = vadd.f32 %v316, %v1390
    %v1438 = vadd.f32 %v318, %v1392
    %v1439 = vadd.f32 %v389, %v1431
    %v1440 = vadd.f32 %v391, %v1433
    %v1441 = vxor.u32 %v1437, 2147483648
    %v1442 = vxor.u32 %v1438, 2147483648
    %v1443 = vxor.u32 %v1439, 2147483648
    %v1444 = vmul.f32 %v1441, 1.442695
    %v1445 = vpow.pop %v1444
    %v1446 = vmul.f32 %v1442, 1.442695
    %v1447 = vpow.pop %v1446
    %v1448 = vmul.f32 %v1443, 1.442695
    %v1449 = vpow.pop %v1448
    %v1450 = vadd.f32 %v1445, 1.0
    %v1451 = vadd.f32 %v1447, 1.0
    %v1452 = vadd.f32 %v1449, 1.0
    %v1453 = vrcp.pop %v1450
    %v1454 = vmul.f32 1.0, %v1453
    %v1455 = vrcp.pop %v1451
    %v1456 = vmul.f32 1.0, %v1455
    %v1457 = vrcp.pop %v1452
    %v1458 = vmul.f32 1.0, %v1457
    %v1459 = vtanh.pop %v1440
    %v1460 = vmul.f32 %v1456, %v1244
    %v1461 = vmul.f32 %v1454, %v1459
    %v1462 = vadd.f32 %v1460, %v1461
    %v1463 = vtanh.pop %v1462
    %v1464 = vmul.f32 %v1458, %v1463
    %v1465 = vpack.c.bf16 %v1464, %v1464
    %v1466 = vpack.c.bf16 %v1354, %v1354
    %1467 = vmatprep.subr.bf16.mxu0 %v904
    %1468 = vmatpush1.bf16.msra.mxu0 %v903
    %1469 = vmatprep.subr.bf16.mxu0 %v908
    %1470 = vmatpush1.bf16.msra.mxu0 %v907
    %1471 = vmatprep.subr.bf16.mxu0 %v912
    %1472 = vmatpush1.bf16.msra.mxu0 %v911
    %1473 = vmatprep.subr.bf16.mxu0 %v916
    %1474 = vmatpush1.bf16.msra.mxu0 %v915
    %1475 = vmatprep.subr.bf16.mxu0 %v920
    %1476 = vmatpush1.bf16.msra.mxu0 %v919
    %1477 = vmatprep.subr.bf16.mxu0 %v924
    %1478 = vmatpush1.bf16.msra.mxu0 %v923
    %1479 = vmatprep.subr.bf16.mxu0 %v928
    %1480 = vmatpush1.bf16.msra.mxu0 %v927
    %1481 = vmatprep.subr.bf16.mxu0 %v932
    %1482 = vmatpush1.bf16.msra.mxu0 %v931
    %1483 = vmatprep.subr.bf16.mxu0 %v936
    %1484 = vmatpush1.bf16.msra.mxu0 %v935
    %1485 = vmatprep.subr.bf16.mxu0 %v940
    %1486 = vmatpush1.bf16.msra.mxu0 %v939
    %1487 = vmatprep.subr.bf16.mxu0 %v944
    %1488 = vmatpush1.bf16.msra.mxu0 %v943
    %1489 = vmatprep.subr.bf16.mxu0 %v948
    %1490 = vmatpush1.bf16.msra.mxu0 %v947
    %1491 = vmatprep.subr.bf16.mxu0 %v952
    %1492 = vmatpush1.bf16.msra.mxu0 %v951
    %1493 = vmatprep.subr.bf16.mxu0 %v956
    %1494 = vmatpush1.bf16.msra.mxu0 %v955
    %1495 = vmatprep.subr.bf16.mxu0 %v960
    %1496 = vmatpush1.bf16.msra.mxu0 %v959
    %1497 = vmatprep.subr.bf16.mxu0 %v964
    %1498 = vmatpush1.bf16.msra.mxu0 %v963
    %1499 = vmatprep.mubr.bf16.mxu0 %v1466
    %1500 = vmatmul.mubr.bf16.gmra.mrb[0].mxu0 %v1465
    %v1501 = vpop.f32.mrb[0].mxu0
    %v1502 = vadd.f32 %v422, %v1501
    %v1503 = vpop.f32.mrb[0].mxu0
    %v1504 = vadd.f32 %v426, %v1503
    %v1505 = vpop.f32.mrb[0].mxu0
    %v1506 = vpop.f32.mrb[0].mxu0
    %1507 = vdwg.mxu0
    %1508 = vmatprep.subr.bf16.mxu0 %v906
    %1509 = vmatpush1.bf16.msra.mxu0 %v905
    %1510 = vmatprep.subr.bf16.mxu0 %v910
    %1511 = vmatpush1.bf16.msra.mxu0 %v909
    %1512 = vmatprep.subr.bf16.mxu0 %v914
    %1513 = vmatpush1.bf16.msra.mxu0 %v913
    %1514 = vmatprep.subr.bf16.mxu0 %v918
    %1515 = vmatpush1.bf16.msra.mxu0 %v917
    %1516 = vmatprep.subr.bf16.mxu0 %v922
    %1517 = vmatpush1.bf16.msra.mxu0 %v921
    %1518 = vmatprep.subr.bf16.mxu0 %v926
    %1519 = vmatpush1.bf16.msra.mxu0 %v925
    %1520 = vmatprep.subr.bf16.mxu0 %v930
    %1521 = vmatpush1.bf16.msra.mxu0 %v929
    %1522 = vmatprep.subr.bf16.mxu0 %v934
    %1523 = vmatpush1.bf16.msra.mxu0 %v933
    %1524 = vmatprep.subr.bf16.mxu0 %v938
    %1525 = vmatpush1.bf16.msra.mxu0 %v937
    %1526 = vmatprep.subr.bf16.mxu0 %v942
    %1527 = vmatpush1.bf16.msra.mxu0 %v941
    %1528 = vmatprep.subr.bf16.mxu0 %v946
    %1529 = vmatpush1.bf16.msra.mxu0 %v945
    %1530 = vmatprep.subr.bf16.mxu0 %v950
    %1531 = vmatpush1.bf16.msra.mxu0 %v949
    %1532 = vmatprep.subr.bf16.mxu0 %v954
    %1533 = vmatpush1.bf16.msra.mxu0 %v953
    %1534 = vmatprep.subr.bf16.mxu0 %v958
    %1535 = vmatpush1.bf16.msra.mxu0 %v957
    %1536 = vmatprep.subr.bf16.mxu0 %v962
    %1537 = vmatpush1.bf16.msra.mxu0 %v961
    %1538 = vmatprep.subr.bf16.mxu0 %v966
    %1539 = vmatpush1.bf16.msra.mxu0 %v965
    %1540 = vmatprep.mubr.bf16.mxu0 %v1466
    %1541 = vmatmul.mubr.bf16.gmra.mrb[0].mxu0 %v1465
    %v1542 = vpop.f32.mrb[0].mxu0
    %v1543 = vadd.f32 %v430, %v1542
    %v1544 = vpop.f32.mrb[0].mxu0
    %v1545 = vadd.f32 %v434, %v1544
    %v1546 = vpop.f32.mrb[0].mxu0
    %v1547 = vpop.f32.mrb[0].mxu0
    %1548 = vdwg.mxu0
    %v1549 = vxor.u32 %v1502, 2147483648
    %v1550 = vxor.u32 %v1504, 2147483648
    %v1551 = vxor.u32 %v1543, 2147483648
    %v1552 = vmul.f32 %v1549, 1.442695
    %v1553 = vpow.pop %v1552
    %v1554 = vmul.f32 %v1550, 1.442695
    %v1555 = vpow.pop %v1554
    %v1556 = vmul.f32 %v1551, 1.442695
    %v1557 = vpow.pop %v1556
    %v1558 = vadd.f32 %v1553, 1.0
    %v1559 = vadd.f32 %v1555, 1.0
    %v1560 = vadd.f32 %v1557, 1.0
    %v1561 = vrcp.pop %v1558
    %v1562 = vmul.f32 1.0, %v1561
    %v1563 = vrcp.pop %v1559
    %v1564 = vmul.f32 1.0, %v1563
    %v1565 = vrcp.pop %v1560
    %v1566 = vmul.f32 1.0, %v1565
    %v1567 = vtanh.pop %v1545
    %v1568 = vmul.f32 %v1564, %v1352
    %v1569 = vmul.f32 %v1562, %v1567
    %v1570 = vadd.f32 %v1568, %v1569
    %v1571 = vtanh.pop %v1570
    %v1572 = vmul.f32 %v1566, %v1571
    %1573 = vmatprep.subr.bf16.mxu0 %v536
    %1574 = vmatpush1.bf16.msra.mxu0 %v535
    %1575 = vmatprep.subr.bf16.mxu0 %v540
    %1576 = vmatpush1.bf16.msra.mxu0 %v539
    %1577 = vmatprep.subr.bf16.mxu0 %v544
    %1578 = vmatpush1.bf16.msra.mxu0 %v543
    %1579 = vmatprep.subr.bf16.mxu0 %v548
    %1580 = vmatpush1.bf16.msra.mxu0 %v547
    %1581 = vmatprep.subr.bf16.mxu0 %v552
    %1582 = vmatpush1.bf16.msra.mxu0 %v551
    %1583 = vmatprep.subr.bf16.mxu0 %v556
    %1584 = vmatpush1.bf16.msra.mxu0 %v555
    %1585 = vmatprep.subr.bf16.mxu0 %v560
    %1586 = vmatpush1.bf16.msra.mxu0 %v559
    %1587 = vmatprep.subr.bf16.mxu0 %v564
    %1588 = vmatpush1.bf16.msra.mxu0 %v563
    %1589 = vmatprep.subr.bf16.mxu0 0
    %1590 = vmatpush1.bf16.msra.mxu0 0
    %1591 = vmatprep.subr.bf16.mxu0 0
    %1592 = vmatpush1.bf16.msra.mxu0 0
    %1593 = vmatprep.subr.bf16.mxu0 0
    %1594 = vmatpush1.bf16.msra.mxu0 0
    %1595 = vmatprep.subr.bf16.mxu0 0
    %1596 = vmatpush1.bf16.msra.mxu0 0
    %1597 = vmatprep.subr.bf16.mxu0 0
    %1598 = vmatpush1.bf16.msra.mxu0 0
    %1599 = vmatprep.subr.bf16.mxu0 0
    %1600 = vmatpush1.bf16.msra.mxu0 0
    %1601 = vmatprep.subr.bf16.mxu0 0
    %1602 = vmatpush1.bf16.msra.mxu0 0
    %1603 = vmatprep.subr.bf16.mxu0 0
    %1604 = vmatpush1.bf16.msra.mxu0 0
    %1605 = vmatprep.mubr.bf16.mxu0 0
    %1606 = vmatmul.mubr.bf16.gmra.mrb[0].mxu0 %v1465
    %v1607 = vpop.f32.mrb[0].mxu0
    %v1608 = vadd.f32 0.0, %v1607
    %v1609 = vpop.f32.mrb[0].mxu0
    %v1610 = vadd.f32 0.0, %v1609
    %v1611 = vpop.f32.mrb[0].mxu0
    %v1612 = vpop.f32.mrb[0].mxu0
    %1613 = vdwg.mxu0
    %1614 = vmatprep.subr.bf16.mxu0 %v538
    %1615 = vmatpush1.bf16.msra.mxu0 %v537
    %1616 = vmatprep.subr.bf16.mxu0 %v542
    %1617 = vmatpush1.bf16.msra.mxu0 %v541
    %1618 = vmatprep.subr.bf16.mxu0 %v546
    %1619 = vmatpush1.bf16.msra.mxu0 %v545
    %1620 = vmatprep.subr.bf16.mxu0 %v550
    %1621 = vmatpush1.bf16.msra.mxu0 %v549
    %1622 = vmatprep.subr.bf16.mxu0 %v554
    %1623 = vmatpush1.bf16.msra.mxu0 %v553
    %1624 = vmatprep.subr.bf16.mxu0 %v558
    %1625 = vmatpush1.bf16.msra.mxu0 %v557
    %1626 = vmatprep.subr.bf16.mxu0 %v562
    %1627 = vmatpush1.bf16.msra.mxu0 %v561
    %1628 = vmatprep.subr.bf16.mxu0 %v566
    %1629 = vmatpush1.bf16.msra.mxu0 %v565
    %1630 = vmatprep.subr.bf16.mxu0 0
    %1631 = vmatpush1.bf16.msra.mxu0 0
    %1632 = vmatprep.subr.bf16.mxu0 0
    %1633 = vmatpush1.bf16.msra.mxu0 0
    %1634 = vmatprep.subr.bf16.mxu0 0
    %1635 = vmatpush1.bf16.msra.mxu0 0
    %1636 = vmatprep.subr.bf16.mxu0 0
    %1637 = vmatpush1.bf16.msra.mxu0 0
    %1638 = vmatprep.subr.bf16.mxu0 0
    %1639 = vmatpush1.bf16.msra.mxu0 0
    %1640 = vmatprep.subr.bf16.mxu0 0
    %1641 = vmatpush1.bf16.msra.mxu0 0
    %1642 = vmatprep.subr.bf16.mxu0 0
    %1643 = vmatpush1.bf16.msra.mxu0 0
    %1644 = vmatprep.subr.bf16.mxu0 0
    %1645 = vmatpush1.bf16.msra.mxu0 0
    %1646 = vmatprep.mubr.bf16.mxu0 0
    %1647 = vmatmul.mubr.bf16.gmra.mrb[0].mxu0 %v1465
    %v1648 = vpop.f32.mrb[0].mxu0
    %v1649 = vadd.f32 0.0, %v1648
    %v1650 = vpop.f32.mrb[0].mxu0
    %v1651 = vadd.f32 0.0, %v1650
    %v1652 = vpop.f32.mrb[0].mxu0
    %v1653 = vpop.f32.mrb[0].mxu0
    %1654 = vdwg.mxu0
    %v1655 = vadd.f32 %v320, %v1608
    %v1656 = vadd.f32 %v322, %v1610
    %v1657 = vadd.f32 %v393, %v1649
    %v1658 = vadd.f32 %v395, %v1651
    %v1659 = vxor.u32 %v1655, 2147483648
    %v1660 = vxor.u32 %v1656, 2147483648
    %v1661 = vxor.u32 %v1657, 2147483648
    %v1662 = vmul.f32 %v1659, 1.442695
    %v1663 = vpow.pop %v1662
    %v1664 = vmul.f32 %v1660, 1.442695
    %v1665 = vpow.pop %v1664
    %v1666 = vmul.f32 %v1661, 1.442695
    %v1667 = vpow.pop %v1666
    %v1668 = vadd.f32 %v1663, 1.0
    %v1669 = vadd.f32 %v1665, 1.0
    %v1670 = vadd.f32 %v1667, 1.0
    %v1671 = vrcp.pop %v1668
    %v1672 = vmul.f32 1.0, %v1671
    %v1673 = vrcp.pop %v1669
    %v1674 = vmul.f32 1.0, %v1673
    %v1675 = vrcp.pop %v1670
    %v1676 = vmul.f32 1.0, %v1675
    %v1677 = vtanh.pop %v1658
    %v1678 = vmul.f32 %v1674, %v1462
    %v1679 = vmul.f32 %v1672, %v1677
    %v1680 = vadd.f32 %v1678, %v1679
    %v1681 = vtanh.pop %v1680
    %v1682 = vmul.f32 %v1676, %v1681
    %v1683 = vpack.c.bf16 %v1682, %v1682
    %v1684 = vpack.c.bf16 %v1572, %v1572
    %1685 = vmatprep.subr.bf16.mxu0 %v904
    %1686 = vmatpush1.bf16.msra.mxu0 %v903
    %1687 = vmatprep.subr.bf16.mxu0 %v908
    %1688 = vmatpush1.bf16.msra.mxu0 %v907
    %1689 = vmatprep.subr.bf16.mxu0 %v912
    %1690 = vmatpush1.bf16.msra.mxu0 %v911
    %1691 = vmatprep.subr.bf16.mxu0 %v916
    %1692 = vmatpush1.bf16.msra.mxu0 %v915
    %1693 = vmatprep.subr.bf16.mxu0 %v920
    %1694 = vmatpush1.bf16.msra.mxu0 %v919
    %1695 = vmatprep.subr.bf16.mxu0 %v924
    %1696 = vmatpush1.bf16.msra.mxu0 %v923
    %1697 = vmatprep.subr.bf16.mxu0 %v928
    %1698 = vmatpush1.bf16.msra.mxu0 %v927
    %1699 = vmatprep.subr.bf16.mxu0 %v932
    %1700 = vmatpush1.bf16.msra.mxu0 %v931
    %1701 = vmatprep.subr.bf16.mxu0 %v936
    %1702 = vmatpush1.bf16.msra.mxu0 %v935
    %1703 = vmatprep.subr.bf16.mxu0 %v940
    %1704 = vmatpush1.bf16.msra.mxu0 %v939
    %1705 = vmatprep.subr.bf16.mxu0 %v944
    %1706 = vmatpush1.bf16.msra.mxu0 %v943
    %1707 = vmatprep.subr.bf16.mxu0 %v948
    %1708 = vmatpush1.bf16.msra.mxu0 %v947
    %1709 = vmatprep.subr.bf16.mxu0 %v952
    %1710 = vmatpush1.bf16.msra.mxu0 %v951
    %1711 = vmatprep.subr.bf16.mxu0 %v956
    %1712 = vmatpush1.bf16.msra.mxu0 %v955
    %1713 = vmatprep.subr.bf16.mxu0 %v960
    %1714 = vmatpush1.bf16.msra.mxu0 %v959
    %1715 = vmatprep.subr.bf16.mxu0 %v964
    %1716 = vmatpush1.bf16.msra.mxu0 %v963
    %1717 = vmatprep.mubr.bf16.mxu0 %v1684
    %1718 = vmatmul.mubr.bf16.gmra.mrb[0].mxu0 %v1683
    %v1719 = vpop.f32.mrb[0].mxu0
    %v1720 = vadd.f32 %v422, %v1719
    %v1721 = vpop.f32.mrb[0].mxu0
    %v1722 = vadd.f32 %v426, %v1721
    %v1723 = vpop.f32.mrb[0].mxu0
    %v1724 = vpop.f32.mrb[0].mxu0
    %1725 = vdwg.mxu0
    %1726 = vmatprep.subr.bf16.mxu0 %v906
    %1727 = vmatpush1.bf16.msra.mxu0 %v905
    %1728 = vmatprep.subr.bf16.mxu0 %v910
    %1729 = vmatpush1.bf16.msra.mxu0 %v909
    %1730 = vmatprep.subr.bf16.mxu0 %v914
    %1731 = vmatpush1.bf16.msra.mxu0 %v913
    %1732 = vmatprep.subr.bf16.mxu0 %v918
    %1733 = vmatpush1.bf16.msra.mxu0 %v917
    %1734 = vmatprep.subr.bf16.mxu0 %v922
    %1735 = vmatpush1.bf16.msra.mxu0 %v921
    %1736 = vmatprep.subr.bf16.mxu0 %v926
    %1737 = vmatpush1.bf16.msra.mxu0 %v925
    %1738 = vmatprep.subr.bf16.mxu0 %v930
    %1739 = vmatpush1.bf16.msra.mxu0 %v929
    %1740 = vmatprep.subr.bf16.mxu0 %v934
    %1741 = vmatpush1.bf16.msra.mxu0 %v933
    %1742 = vmatprep.subr.bf16.mxu0 %v938
    %1743 = vmatpush1.bf16.msra.mxu0 %v937
    %1744 = vmatprep.subr.bf16.mxu0 %v942
    %1745 = vmatpush1.bf16.msra.mxu0 %v941
    %1746 = vmatprep.subr.bf16.mxu0 %v946
    %1747 = vmatpush1.bf16.msra.mxu0 %v945
    %1748 = vmatprep.subr.bf16.mxu0 %v950
    %1749 = vmatpush1.bf16.msra.mxu0 %v949
    %1750 = vmatprep.subr.bf16.mxu0 %v954
    %1751 = vmatpush1.bf16.msra.mxu0 %v953
    %1752 = vmatprep.subr.bf16.mxu0 %v958
    %1753 = vmatpush1.bf16.msra.mxu0 %v957
    %1754 = vmatprep.subr.bf16.mxu0 %v962
    %1755 = vmatpush1.bf16.msra.mxu0 %v961
    %1756 = vmatprep.subr.bf16.mxu0 %v966
    %1757 = vmatpush1.bf16.msra.mxu0 %v965
    %1758 = vmatprep.mubr.bf16.mxu0 %v1684
    %1759 = vmatmul.mubr.bf16.gmra.mrb[0].mxu0 %v1683
    %v1760 = vpop.f32.mrb[0].mxu0
    %v1761 = vadd.f32 %v430, %v1760
    %v1762 = vpop.f32.mrb[0].mxu0
    %v1763 = vadd.f32 %v434, %v1762
    %v1764 = vpop.f32.mrb[0].mxu0
    %v1765 = vpop.f32.mrb[0].mxu0
    %1766 = vdwg.mxu0
    %v1767 = vxor.u32 %v1720, 2147483648
    %v1768 = vxor.u32 %v1722, 2147483648
    %v1769 = vxor.u32 %v1761, 2147483648
    %v1770 = vmul.f32 %v1767, 1.442695
    %v1771 = vpow.pop %v1770
    %v1772 = vmul.f32 %v1768, 1.442695
    %v1773 = vpow.pop %v1772
    %v1774 = vmul.f32 %v1769, 1.442695
    %v1775 = vpow.pop %v1774
    %v1776 = vadd.f32 %v1771, 1.0
    %v1777 = vadd.f32 %v1773, 1.0
    %v1778 = vadd.f32 %v1775, 1.0
    %v1779 = vrcp.pop %v1776
    %v1780 = vmul.f32 1.0, %v1779
    %v1781 = vrcp.pop %v1777
    %v1782 = vmul.f32 1.0, %v1781
    %v1783 = vrcp.pop %v1778
    %v1784 = vmul.f32 1.0, %v1783
    %v1785 = vtanh.pop %v1763
    %v1786 = vmul.f32 %v1782, %v1570
    %v1787 = vmul.f32 %v1780, %v1785
    %v1788 = vadd.f32 %v1786, %v1787
    %v1789 = vtanh.pop %v1788
    %v1790 = vmul.f32 %v1784, %v1789
    %1791 = vmatprep.subr.bf16.mxu0 %v536
    %1792 = vmatpush1.bf16.msra.mxu0 %v535
    %1793 = vmatprep.subr.bf16.mxu0 %v540
    %1794 = vmatpush1.bf16.msra.mxu0 %v539
    %1795 = vmatprep.subr.bf16.mxu0 %v544
    %1796 = vmatpush1.bf16.msra.mxu0 %v543
    %1797 = vmatprep.subr.bf16.mxu0 %v548
    %1798 = vmatpush1.bf16.msra.mxu0 %v547
    %1799 = vmatprep.subr.bf16.mxu0 %v552
    %1800 = vmatpush1.bf16.msra.mxu0 %v551
    %1801 = vmatprep.subr.bf16.mxu0 %v556
    %1802 = vmatpush1.bf16.msra.mxu0 %v555
    %1803 = vmatprep.subr.bf16.mxu0 %v560
    %1804 = vmatpush1.bf16.msra.mxu0 %v559
    %1805 = vmatprep.subr.bf16.mxu0 %v564
    %1806 = vmatpush1.bf16.msra.mxu0 %v563
    %1807 = vmatprep.subr.bf16.mxu0 0
    %1808 = vmatpush1.bf16.msra.mxu0 0
    %1809 = vmatprep.subr.bf16.mxu0 0
    %1810 = vmatpush1.bf16.msra.mxu0 0
    %1811 = vmatprep.subr.bf16.mxu0 0
    %1812 = vmatpush1.bf16.msra.mxu0 0
    %1813 = vmatprep.subr.bf16.mxu0 0
    %1814 = vmatpush1.bf16.msra.mxu0 0
    %1815 = vmatprep.subr.bf16.mxu0 0
    %1816 = vmatpush1.bf16.msra.mxu0 0
    %1817 = vmatprep.subr.bf16.mxu0 0
    %1818 = vmatpush1.bf16.msra.mxu0 0
    %1819 = vmatprep.subr.bf16.mxu0 0
    %1820 = vmatpush1.bf16.msra.mxu0 0
    %1821 = vmatprep.subr.bf16.mxu0 0
    %1822 = vmatpush1.bf16.msra.mxu0 0
    %1823 = vmatprep.mubr.bf16.mxu0 0
    %1824 = vmatmul.mubr.bf16.gmra.mrb[0].mxu0 %v1683
    %v1825 = vpop.f32.mrb[0].mxu0
    %v1826 = vadd.f32 0.0, %v1825
    %v1827 = vpop.f32.mrb[0].mxu0
    %v1828 = vadd.f32 0.0, %v1827
    %v1829 = vpop.f32.mrb[0].mxu0
    %v1830 = vpop.f32.mrb[0].mxu0
    %1831 = vdwg.mxu0
    %1832 = vmatprep.subr.bf16.mxu0 %v538
    %1833 = vmatpush1.bf16.msra.mxu0 %v537
    %1834 = vmatprep.subr.bf16.mxu0 %v542
    %1835 = vmatpush1.bf16.msra.mxu0 %v541
    %1836 = vmatprep.subr.bf16.mxu0 %v546
    %1837 = vmatpush1.bf16.msra.mxu0 %v545
    %1838 = vmatprep.subr.bf16.mxu0 %v550
    %1839 = vmatpush1.bf16.msra.mxu0 %v549
    %1840 = vmatprep.subr.bf16.mxu0 %v554
    %1841 = vmatpush1.bf16.msra.mxu0 %v553
    %1842 = vmatprep.subr.bf16.mxu0 %v558
    %1843 = vmatpush1.bf16.msra.mxu0 %v557
    %1844 = vmatprep.subr.bf16.mxu0 %v562
    %1845 = vmatpush1.bf16.msra.mxu0 %v561
    %1846 = vmatprep.subr.bf16.mxu0 %v566
    %1847 = vmatpush1.bf16.msra.mxu0 %v565
    %1848 = vmatprep.subr.bf16.mxu0 0
    %1849 = vmatpush1.bf16.msra.mxu0 0
    %1850 = vmatprep.subr.bf16.mxu0 0
    %1851 = vmatpush1.bf16.msra.mxu0 0
    %1852 = vmatprep.subr.bf16.mxu0 0
    %1853 = vmatpush1.bf16.msra.mxu0 0
    %1854 = vmatprep.subr.bf16.mxu0 0
    %1855 = vmatpush1.bf16.msra.mxu0 0
    %1856 = vmatprep.subr.bf16.mxu0 0
    %1857 = vmatpush1.bf16.msra.mxu0 0
    %1858 = vmatprep.subr.bf16.mxu0 0
    %1859 = vmatpush1.bf16.msra.mxu0 0
    %1860 = vmatprep.subr.bf16.mxu0 0
    %1861 = vmatpush1.bf16.msra.mxu0 0
    %1862 = vmatprep.subr.bf16.mxu0 0
    %1863 = vmatpush1.bf16.msra.mxu0 0
    %1864 = vmatprep.mubr.bf16.mxu0 0
    %1865 = vmatmul.mubr.bf16.gmra.mrb[0].mxu0 %v1683
    %v1866 = vpop.f32.mrb[0].mxu0
    %v1867 = vadd.f32 0.0, %v1866
    %v1868 = vpop.f32.mrb[0].mxu0
    %v1869 = vadd.f32 0.0, %v1868
    %v1870 = vpop.f32.mrb[0].mxu0
    %v1871 = vpop.f32.mrb[0].mxu0
    %1872 = vdwg.mxu0
    %v1873 = vadd.f32 %v326, %v1826
    %v1874 = vadd.f32 %v328, %v1828
    %v1875 = vadd.f32 %v399, %v1867
    %v1876 = vadd.f32 %v401, %v1869
    %v1877 = vxor.u32 %v1873, 2147483648
    %v1878 = vxor.u32 %v1874, 2147483648
    %v1879 = vxor.u32 %v1875, 2147483648
    %v1880 = vmul.f32 %v1877, 1.442695
    %v1881 = vpow.pop %v1880
    %v1882 = vmul.f32 %v1878, 1.442695
    %v1883 = vpow.pop %v1882
    %v1884 = vmul.f32 %v1879, 1.442695
    %v1885 = vpow.pop %v1884
    %v1886 = vadd.f32 %v1881, 1.0
    %v1887 = vadd.f32 %v1883, 1.0
    %v1888 = vadd.f32 %v1885, 1.0
    %v1889 = vrcp.pop %v1886
    %v1890 = vmul.f32 1.0, %v1889
    %v1891 = vrcp.pop %v1887
    %v1892 = vmul.f32 1.0, %v1891
    %v1893 = vrcp.pop %v1888
    %v1894 = vmul.f32 1.0, %v1893
    %v1895 = vtanh.pop %v1876
    %v1896 = vmul.f32 %v1892, %v1680
    %v1897 = vmul.f32 %v1890, %v1895
    %v1898 = vadd.f32 %v1896, %v1897
    %v1899 = vtanh.pop %v1898
    %v1900 = vmul.f32 %v1894, %v1899
    %v1901 = vpack.c.bf16 %v1900, %v1900
    %v1902 = vpack.c.bf16 %v1790, %v1790
    %1903 = vmatprep.subr.bf16.mxu0 %v904
    %1904 = vmatpush1.bf16.msra.mxu0 %v903
    %1905 = vmatprep.subr.bf16.mxu0 %v908
    %1906 = vmatpush1.bf16.msra.mxu0 %v907
    %1907 = vmatprep.subr.bf16.mxu0 %v912
    %1908 = vmatpush1.bf16.msra.mxu0 %v911
    %1909 = vmatprep.subr.bf16.mxu0 %v916
    %1910 = vmatpush1.bf16.msra.mxu0 %v915
    %1911 = vmatprep.subr.bf16.mxu0 %v920
    %1912 = vmatpush1.bf16.msra.mxu0 %v919
    %1913 = vmatprep.subr.bf16.mxu0 %v924
    %1914 = vmatpush1.bf16.msra.mxu0 %v923
    %1915 = vmatprep.subr.bf16.mxu0 %v928
    %1916 = vmatpush1.bf16.msra.mxu0 %v927
    %1917 = vmatprep.subr.bf16.mxu0 %v932
    %1918 = vmatpush1.bf16.msra.mxu0 %v931
    %1919 = vmatprep.subr.bf16.mxu0 %v936
    %1920 = vmatpush1.bf16.msra.mxu0 %v935
    %1921 = vmatprep.subr.bf16.mxu0 %v940
    %1922 = vmatpush1.bf16.msra.mxu0 %v939
    %1923 = vmatprep.subr.bf16.mxu0 %v944
    %1924 = vmatpush1.bf16.msra.mxu0 %v943
    %1925 = vmatprep.subr.bf16.mxu0 %v948
    %1926 = vmatpush1.bf16.msra.mxu0 %v947
    %1927 = vmatprep.subr.bf16.mxu0 %v952
    %1928 = vmatpush1.bf16.msra.mxu0 %v951
    %1929 = vmatprep.subr.bf16.mxu0 %v956
    %1930 = vmatpush1.bf16.msra.mxu0 %v955
    %1931 = vmatprep.subr.bf16.mxu0 %v960
    %1932 = vmatpush1.bf16.msra.mxu0 %v959
    %1933 = vmatprep.subr.bf16.mxu0 %v964
    %1934 = vmatpush1.bf16.msra.mxu0 %v963
    %1935 = vmatprep.mubr.bf16.mxu0 %v1902
    %1936 = vmatmul.mubr.bf16.gmra.mrb[0].mxu0 %v1901
    %v1937 = vpop.f32.mrb[0].mxu0
    %v1938 = vadd.f32 %v422, %v1937
    %v1939 = vpop.f32.mrb[0].mxu0
    %v1940 = vadd.f32 %v426, %v1939
    %v1941 = vpop.f32.mrb[0].mxu0
    %v1942 = vpop.f32.mrb[0].mxu0
    %1943 = vdwg.mxu0
    %1944 = vmatprep.subr.bf16.mxu0 %v906
    %1945 = vmatpush1.bf16.msra.mxu0 %v905
    %1946 = vmatprep.subr.bf16.mxu0 %v910
    %1947 = vmatpush1.bf16.msra.mxu0 %v909
    %1948 = vmatprep.subr.bf16.mxu0 %v914
    %1949 = vmatpush1.bf16.msra.mxu0 %v913
    %1950 = vmatprep.subr.bf16.mxu0 %v918
    %1951 = vmatpush1.bf16.msra.mxu0 %v917
    %1952 = vmatprep.subr.bf16.mxu0 %v922
    %1953 = vmatpush1.bf16.msra.mxu0 %v921
    %1954 = vmatprep.subr.bf16.mxu0 %v926
    %1955 = vmatpush1.bf16.msra.mxu0 %v925
    %1956 = vmatprep.subr.bf16.mxu0 %v930
    %1957 = vmatpush1.bf16.msra.mxu0 %v929
    %1958 = vmatprep.subr.bf16.mxu0 %v934
    %1959 = vmatpush1.bf16.msra.mxu0 %v933
    %1960 = vmatprep.subr.bf16.mxu0 %v938
    %1961 = vmatpush1.bf16.msra.mxu0 %v937
    %1962 = vmatprep.subr.bf16.mxu0 %v942
    %1963 = vmatpush1.bf16.msra.mxu0 %v941
    %1964 = vmatprep.subr.bf16.mxu0 %v946
    %1965 = vmatpush1.bf16.msra.mxu0 %v945
    %1966 = vmatprep.subr.bf16.mxu0 %v950
    %1967 = vmatpush1.bf16.msra.mxu0 %v949
    %1968 = vmatprep.subr.bf16.mxu0 %v954
    %1969 = vmatpush1.bf16.msra.mxu0 %v953
    %1970 = vmatprep.subr.bf16.mxu0 %v958
    %1971 = vmatpush1.bf16.msra.mxu0 %v957
    %1972 = vmatprep.subr.bf16.mxu0 %v962
    %1973 = vmatpush1.bf16.msra.mxu0 %v961
    %1974 = vmatprep.subr.bf16.mxu0 %v966
    %1975 = vmatpush1.bf16.msra.mxu0 %v965
    %1976 = vmatprep.mubr.bf16.mxu0 %v1902
    %1977 = vmatmul.mubr.bf16.gmra.mrb[0].mxu0 %v1901
    %v1978 = vpop.f32.mrb[0].mxu0
    %v1979 = vadd.f32 %v430, %v1978
    %v1980 = vpop.f32.mrb[0].mxu0
    %v1981 = vadd.f32 %v434, %v1980
    %v1982 = vpop.f32.mrb[0].mxu0
    %v1983 = vpop.f32.mrb[0].mxu0
    %1984 = vdwg.mxu0
    %v1985 = vxor.u32 %v1938, 2147483648
    %v1986 = vxor.u32 %v1940, 2147483648
    %v1987 = vxor.u32 %v1979, 2147483648
    %v1988 = vmul.f32 %v1985, 1.442695
    %v1989 = vpow.pop %v1988
    %v1990 = vmul.f32 %v1986, 1.442695
    %v1991 = vpow.pop %v1990
    %v1992 = vmul.f32 %v1987, 1.442695
    %v1993 = vpow.pop %v1992
    %v1994 = vadd.f32 %v1989, 1.0
    %v1995 = vadd.f32 %v1991, 1.0
    %v1996 = vadd.f32 %v1993, 1.0
    %v1997 = vrcp.pop %v1994
    %v1998 = vmul.f32 1.0, %v1997
    %v1999 = vrcp.pop %v1995
    %v2000 = vmul.f32 1.0, %v1999
    %v2001 = vrcp.pop %v1996
    %v2002 = vmul.f32 1.0, %v2001
    %v2003 = vtanh.pop %v1981
    %v2004 = vmul.f32 %v2000, %v1788
    %v2005 = vmul.f32 %v1998, %v2003
    %v2006 = vadd.f32 %v2004, %v2005
    %v2007 = vtanh.pop %v2006
    %v2008 = vmul.f32 %v2002, %v2007
    %2009 = vmatprep.subr.bf16.mxu0 %v536
    %2010 = vmatpush1.bf16.msra.mxu0 %v535
    %2011 = vmatprep.subr.bf16.mxu0 %v540
    %2012 = vmatpush1.bf16.msra.mxu0 %v539
    %2013 = vmatprep.subr.bf16.mxu0 %v544
    %2014 = vmatpush1.bf16.msra.mxu0 %v543
    %2015 = vmatprep.subr.bf16.mxu0 %v548
    %2016 = vmatpush1.bf16.msra.mxu0 %v547
    %2017 = vmatprep.subr.bf16.mxu0 %v552
    %2018 = vmatpush1.bf16.msra.mxu0 %v551
    %2019 = vmatprep.subr.bf16.mxu0 %v556
    %2020 = vmatpush1.bf16.msra.mxu0 %v555
    %2021 = vmatprep.subr.bf16.mxu0 %v560
    %2022 = vmatpush1.bf16.msra.mxu0 %v559
    %2023 = vmatprep.subr.bf16.mxu0 %v564
    %2024 = vmatpush1.bf16.msra.mxu0 %v563
    %2025 = vmatprep.subr.bf16.mxu0 0
    %2026 = vmatpush1.bf16.msra.mxu0 0
    %2027 = vmatprep.subr.bf16.mxu0 0
    %2028 = vmatpush1.bf16.msra.mxu0 0
    %2029 = vmatprep.subr.bf16.mxu0 0
    %2030 = vmatpush1.bf16.msra.mxu0 0
    %2031 = vmatprep.subr.bf16.mxu0 0
    %2032 = vmatpush1.bf16.msra.mxu0 0
    %2033 = vmatprep.subr.bf16.mxu0 0
    %2034 = vmatpush1.bf16.msra.mxu0 0
    %2035 = vmatprep.subr.bf16.mxu0 0
    %2036 = vmatpush1.bf16.msra.mxu0 0
    %2037 = vmatprep.subr.bf16.mxu0 0
    %2038 = vmatpush1.bf16.msra.mxu0 0
    %2039 = vmatprep.subr.bf16.mxu0 0
    %2040 = vmatpush1.bf16.msra.mxu0 0
    %2041 = vmatprep.mubr.bf16.mxu0 0
    %2042 = vmatmul.mubr.bf16.gmra.mrb[0].mxu0 %v1901
    %v2043 = vpop.f32.mrb[0].mxu0
    %v2044 = vadd.f32 0.0, %v2043
    %v2045 = vpop.f32.mrb[0].mxu0
    %v2046 = vadd.f32 0.0, %v2045
    %v2047 = vpop.f32.mrb[0].mxu0
    %v2048 = vpop.f32.mrb[0].mxu0
    %2049 = vdwg.mxu0
    %2050 = vmatprep.subr.bf16.mxu0 %v538
    %2051 = vmatpush1.bf16.msra.mxu0 %v537
    %2052 = vmatprep.subr.bf16.mxu0 %v542
    %2053 = vmatpush1.bf16.msra.mxu0 %v541
    %2054 = vmatprep.subr.bf16.mxu0 %v546
    %2055 = vmatpush1.bf16.msra.mxu0 %v545
    %2056 = vmatprep.subr.bf16.mxu0 %v550
    %2057 = vmatpush1.bf16.msra.mxu0 %v549
    %2058 = vmatprep.subr.bf16.mxu0 %v554
    %2059 = vmatpush1.bf16.msra.mxu0 %v553
    %2060 = vmatprep.subr.bf16.mxu0 %v558
    %2061 = vmatpush1.bf16.msra.mxu0 %v557
    %2062 = vmatprep.subr.bf16.mxu0 %v562
    %2063 = vmatpush1.bf16.msra.mxu0 %v561
    %2064 = vmatprep.subr.bf16.mxu0 %v566
    %2065 = vmatpush1.bf16.msra.mxu0 %v565
    %2066 = vmatprep.subr.bf16.mxu0 0
    %2067 = vmatpush1.bf16.msra.mxu0 0
    %2068 = vmatprep.subr.bf16.mxu0 0
    %2069 = vmatpush1.bf16.msra.mxu0 0
    %2070 = vmatprep.subr.bf16.mxu0 0
    %2071 = vmatpush1.bf16.msra.mxu0 0
    %2072 = vmatprep.subr.bf16.mxu0 0
    %2073 = vmatpush1.bf16.msra.mxu0 0
    %2074 = vmatprep.subr.bf16.mxu0 0
    %2075 = vmatpush1.bf16.msra.mxu0 0
    %2076 = vmatprep.subr.bf16.mxu0 0
    %2077 = vmatpush1.bf16.msra.mxu0 0
    %2078 = vmatprep.subr.bf16.mxu0 0
    %2079 = vmatpush1.bf16.msra.mxu0 0
    %2080 = vmatprep.subr.bf16.mxu0 0
    %2081 = vmatpush1.bf16.msra.mxu0 0
    %2082 = vmatprep.mubr.bf16.mxu0 0
    %2083 = vmatmul.mubr.bf16.gmra.mrb[0].mxu0 %v1901
    %v2084 = vpop.f32.mrb[0].mxu0
    %v2085 = vadd.f32 0.0, %v2084
    %v2086 = vpop.f32.mrb[0].mxu0
    %v2087 = vadd.f32 0.0, %v2086
    %v2088 = vpop.f32.mrb[0].mxu0
    %v2089 = vpop.f32.mrb[0].mxu0
    %2090 = vdwg.mxu0
    %v2091 = vadd.f32 %v330, %v2044
    %v2092 = vadd.f32 %v332, %v2046
    %v2093 = vadd.f32 %v403, %v2085
    %v2094 = vadd.f32 %v405, %v2087
    %v2095 = vxor.u32 %v2091, 2147483648
    %v2096 = vxor.u32 %v2092, 2147483648
    %v2097 = vxor.u32 %v2093, 2147483648
    %v2098 = vmul.f32 %v2095, 1.442695
    %v2099 = vpow.pop %v2098
    %v2100 = vmul.f32 %v2096, 1.442695
    %v2101 = vpow.pop %v2100
    %v2102 = vmul.f32 %v2097, 1.442695
    %v2103 = vpow.pop %v2102
    %v2104 = vadd.f32 %v2099, 1.0
    %v2105 = vadd.f32 %v2101, 1.0
    %v2106 = vadd.f32 %v2103, 1.0
    %v2107 = vrcp.pop %v2104
    %v2108 = vmul.f32 1.0, %v2107
    %v2109 = vrcp.pop %v2105
    %v2110 = vmul.f32 1.0, %v2109
    %v2111 = vrcp.pop %v2106
    %v2112 = vmul.f32 1.0, %v2111
    %v2113 = vtanh.pop %v2094
    %v2114 = vmul.f32 %v2110, %v1898
    %v2115 = vmul.f32 %v2108, %v2113
    %v2116 = vadd.f32 %v2114, %v2115
    %v2117 = vtanh.pop %v2116
    %v2118 = vmul.f32 %v2112, %v2117
    %v2119 = vpack.c.bf16 %v2118, %v2118
    %v2120 = vpack.c.bf16 %v2008, %v2008
    %2121 = vmatprep.subr.bf16.mxu0 %v904
    %2122 = vmatpush1.bf16.msra.mxu0 %v903
    %2123 = vmatprep.subr.bf16.mxu0 %v908
    %2124 = vmatpush1.bf16.msra.mxu0 %v907
    %2125 = vmatprep.subr.bf16.mxu0 %v912
    %2126 = vmatpush1.bf16.msra.mxu0 %v911
    %2127 = vmatprep.subr.bf16.mxu0 %v916
    %2128 = vmatpush1.bf16.msra.mxu0 %v915
    %2129 = vmatprep.subr.bf16.mxu0 %v920
    %2130 = vmatpush1.bf16.msra.mxu0 %v919
    %2131 = vmatprep.subr.bf16.mxu0 %v924
    %2132 = vmatpush1.bf16.msra.mxu0 %v923
    %2133 = vmatprep.subr.bf16.mxu0 %v928
    %2134 = vmatpush1.bf16.msra.mxu0 %v927
    %2135 = vmatprep.subr.bf16.mxu0 %v932
    %2136 = vmatpush1.bf16.msra.mxu0 %v931
    %2137 = vmatprep.subr.bf16.mxu0 %v936
    %2138 = vmatpush1.bf16.msra.mxu0 %v935
    %2139 = vmatprep.subr.bf16.mxu0 %v940
    %2140 = vmatpush1.bf16.msra.mxu0 %v939
    %2141 = vmatprep.subr.bf16.mxu0 %v944
    %2142 = vmatpush1.bf16.msra.mxu0 %v943
    %2143 = vmatprep.subr.bf16.mxu0 %v948
    %2144 = vmatpush1.bf16.msra.mxu0 %v947
    %2145 = vmatprep.subr.bf16.mxu0 %v952
    %2146 = vmatpush1.bf16.msra.mxu0 %v951
    %2147 = vmatprep.subr.bf16.mxu0 %v956
    %2148 = vmatpush1.bf16.msra.mxu0 %v955
    %2149 = vmatprep.subr.bf16.mxu0 %v960
    %2150 = vmatpush1.bf16.msra.mxu0 %v959
    %2151 = vmatprep.subr.bf16.mxu0 %v964
    %2152 = vmatpush1.bf16.msra.mxu0 %v963
    %2153 = vmatprep.mubr.bf16.mxu0 %v2120
    %2154 = vmatmul.mubr.bf16.gmra.mrb[0].mxu0 %v2119
    %v2155 = vpop.f32.mrb[0].mxu0
    %v2156 = vadd.f32 %v422, %v2155
    %v2157 = vpop.f32.mrb[0].mxu0
    %v2158 = vadd.f32 %v426, %v2157
    %v2159 = vpop.f32.mrb[0].mxu0
    %v2160 = vpop.f32.mrb[0].mxu0
    %2161 = vdwg.mxu0
    %2162 = vmatprep.subr.bf16.mxu0 %v906
    %2163 = vmatpush1.bf16.msra.mxu0 %v905
    %2164 = vmatprep.subr.bf16.mxu0 %v910
    %2165 = vmatpush1.bf16.msra.mxu0 %v909
    %2166 = vmatprep.subr.bf16.mxu0 %v914
    %2167 = vmatpush1.bf16.msra.mxu0 %v913
    %2168 = vmatprep.subr.bf16.mxu0 %v918
    %2169 = vmatpush1.bf16.msra.mxu0 %v917
    %2170 = vmatprep.subr.bf16.mxu0 %v922
    %2171 = vmatpush1.bf16.msra.mxu0 %v921
    %2172 = vmatprep.subr.bf16.mxu0 %v926
    %2173 = vmatpush1.bf16.msra.mxu0 %v925
    %2174 = vmatprep.subr.bf16.mxu0 %v930
    %2175 = vmatpush1.bf16.msra.mxu0 %v929
    %2176 = vmatprep.subr.bf16.mxu0 %v934
    %2177 = vmatpush1.bf16.msra.mxu0 %v933
    %2178 = vmatprep.subr.bf16.mxu0 %v938
    %2179 = vmatpush1.bf16.msra.mxu0 %v937
    %2180 = vmatprep.subr.bf16.mxu0 %v942
    %2181 = vmatpush1.bf16.msra.mxu0 %v941
    %2182 = vmatprep.subr.bf16.mxu0 %v946
    %2183 = vmatpush1.bf16.msra.mxu0 %v945
    %2184 = vmatprep.subr.bf16.mxu0 %v950
    %2185 = vmatpush1.bf16.msra.mxu0 %v949
    %2186 = vmatprep.subr.bf16.mxu0 %v954
    %2187 = vmatpush1.bf16.msra.mxu0 %v953
    %2188 = vmatprep.subr.bf16.mxu0 %v958
    %2189 = vmatpush1.bf16.msra.mxu0 %v957
    %2190 = vmatprep.subr.bf16.mxu0 %v962
    %2191 = vmatpush1.bf16.msra.mxu0 %v961
    %2192 = vmatprep.subr.bf16.mxu0 %v966
    %2193 = vmatpush1.bf16.msra.mxu0 %v965
    %2194 = vmatprep.mubr.bf16.mxu0 %v2120
    %2195 = vmatmul.mubr.bf16.gmra.mrb[0].mxu0 %v2119
    %v2196 = vpop.f32.mrb[0].mxu0
    %v2197 = vadd.f32 %v430, %v2196
    %v2198 = vpop.f32.mrb[0].mxu0
    %v2199 = vadd.f32 %v434, %v2198
    %v2200 = vpop.f32.mrb[0].mxu0
    %v2201 = vpop.f32.mrb[0].mxu0
    %2202 = vdwg.mxu0
    %v2203 = vxor.u32 %v2156, 2147483648
    %v2204 = vxor.u32 %v2158, 2147483648
    %v2205 = vxor.u32 %v2197, 2147483648
    %v2206 = vmul.f32 %v2203, 1.442695
    %v2207 = vpow.pop %v2206
    %v2208 = vmul.f32 %v2204, 1.442695
    %v2209 = vpow.pop %v2208
    %v2210 = vmul.f32 %v2205, 1.442695
    %v2211 = vpow.pop %v2210
    %v2212 = vadd.f32 %v2207, 1.0
    %v2213 = vadd.f32 %v2209, 1.0
    %v2214 = vadd.f32 %v2211, 1.0
    %v2215 = vrcp.pop %v2212
    %v2216 = vmul.f32 1.0, %v2215
    %v2217 = vrcp.pop %v2213
    %v2218 = vmul.f32 1.0, %v2217
    %v2219 = vrcp.pop %v2214
    %v2220 = vmul.f32 1.0, %v2219
    %v2221 = vtanh.pop %v2199
    %v2222 = vmul.f32 %v2218, %v2006
    %v2223 = vmul.f32 %v2216, %v2221
    %v2224 = vadd.f32 %v2222, %v2223
    %v2225 = vtanh.pop %v2224
    %v2226 = vmul.f32 %v2220, %v2225
    %2227 = vmatprep.subr.bf16.mxu0 %v536
    %2228 = vmatpush1.bf16.msra.mxu0 %v535
    %2229 = vmatprep.subr.bf16.mxu0 %v540
    %2230 = vmatpush1.bf16.msra.mxu0 %v539
    %2231 = vmatprep.subr.bf16.mxu0 %v544
    %2232 = vmatpush1.bf16.msra.mxu0 %v543
    %2233 = vmatprep.subr.bf16.mxu0 %v548
    %2234 = vmatpush1.bf16.msra.mxu0 %v547
    %2235 = vmatprep.subr.bf16.mxu0 %v552
    %2236 = vmatpush1.bf16.msra.mxu0 %v551
    %2237 = vmatprep.subr.bf16.mxu0 %v556
    %2238 = vmatpush1.bf16.msra.mxu0 %v555
    %2239 = vmatprep.subr.bf16.mxu0 %v560
    %2240 = vmatpush1.bf16.msra.mxu0 %v559
    %2241 = vmatprep.subr.bf16.mxu0 %v564
    %2242 = vmatpush1.bf16.msra.mxu0 %v563
    %2243 = vmatprep.subr.bf16.mxu0 0
    %2244 = vmatpush1.bf16.msra.mxu0 0
    %2245 = vmatprep.subr.bf16.mxu0 0
    %2246 = vmatpush1.bf16.msra.mxu0 0
    %2247 = vmatprep.subr.bf16.mxu0 0
    %2248 = vmatpush1.bf16.msra.mxu0 0
    %2249 = vmatprep.subr.bf16.mxu0 0
    %2250 = vmatpush1.bf16.msra.mxu0 0
    %2251 = vmatprep.subr.bf16.mxu0 0
    %2252 = vmatpush1.bf16.msra.mxu0 0
    %2253 = vmatprep.subr.bf16.mxu0 0
    %2254 = vmatpush1.bf16.msra.mxu0 0
    %2255 = vmatprep.subr.bf16.mxu0 0
    %2256 = vmatpush1.bf16.msra.mxu0 0
    %2257 = vmatprep.subr.bf16.mxu0 0
    %2258 = vmatpush1.bf16.msra.mxu0 0
    %2259 = vmatprep.mubr.bf16.mxu0 0
    %2260 = vmatmul.mubr.bf16.gmra.mrb[0].mxu0 %v2119
    %v2261 = vpop.f32.mrb[0].mxu0
    %v2262 = vadd.f32 0.0, %v2261
    %v2263 = vpop.f32.mrb[0].mxu0
    %v2264 = vadd.f32 0.0, %v2263
    %v2265 = vpop.f32.mrb[0].mxu0
    %v2266 = vpop.f32.mrb[0].mxu0
    %2267 = vdwg.mxu0
    %2268 = vmatprep.subr.bf16.mxu0 %v538
    %2269 = vmatpush1.bf16.msra.mxu0 %v537
    %2270 = vmatprep.subr.bf16.mxu0 %v542
    %2271 = vmatpush1.bf16.msra.mxu0 %v541
    %2272 = vmatprep.subr.bf16.mxu0 %v546
    %2273 = vmatpush1.bf16.msra.mxu0 %v545
    %2274 = vmatprep.subr.bf16.mxu0 %v550
    %2275 = vmatpush1.bf16.msra.mxu0 %v549
    %2276 = vmatprep.subr.bf16.mxu0 %v554
    %2277 = vmatpush1.bf16.msra.mxu0 %v553
    %2278 = vmatprep.subr.bf16.mxu0 %v558
    %2279 = vmatpush1.bf16.msra.mxu0 %v557
    %2280 = vmatprep.subr.bf16.mxu0 %v562
    %2281 = vmatpush1.bf16.msra.mxu0 %v561
    %2282 = vmatprep.subr.bf16.mxu0 %v566
    %2283 = vmatpush1.bf16.msra.mxu0 %v565
    %2284 = vmatprep.subr.bf16.mxu0 0
    %2285 = vmatpush1.bf16.msra.mxu0 0
    %2286 = vmatprep.subr.bf16.mxu0 0
    %2287 = vmatpush1.bf16.msra.mxu0 0
    %2288 = vmatprep.subr.bf16.mxu0 0
    %2289 = vmatpush1.bf16.msra.mxu0 0
    %2290 = vmatprep.subr.bf16.mxu0 0
    %2291 = vmatpush1.bf16.msra.mxu0 0
    %2292 = vmatprep.subr.bf16.mxu0 0
    %2293 = vmatpush1.bf16.msra.mxu0 0
    %2294 = vmatprep.subr.bf16.mxu0 0
    %2295 = vmatpush1.bf16.msra.mxu0 0
    %2296 = vmatprep.subr.bf16.mxu0 0
    %2297 = vmatpush1.bf16.msra.mxu0 0
    %2298 = vmatprep.subr.bf16.mxu0 0
    %2299 = vmatpush1.bf16.msra.mxu0 0
    %2300 = vmatprep.mubr.bf16.mxu0 0
    %2301 = vmatmul.mubr.bf16.gmra.mrb[0].mxu0 %v2119
    %v2302 = vpop.f32.mrb[0].mxu0
    %v2303 = vadd.f32 0.0, %v2302
    %v2304 = vpop.f32.mrb[0].mxu0
    %v2305 = vadd.f32 0.0, %v2304
    %v2306 = vpop.f32.mrb[0].mxu0
    %v2307 = vpop.f32.mrb[0].mxu0
    %2308 = vdwg.mxu0
    %v2309 = vadd.f32 %v336, %v2262
    %v2310 = vadd.f32 %v338, %v2264
    %v2311 = vadd.f32 %v409, %v2303
    %v2312 = vadd.f32 %v411, %v2305
    %v2313 = vxor.u32 %v2309, 2147483648
    %v2314 = vxor.u32 %v2310, 2147483648
    %v2315 = vxor.u32 %v2311, 2147483648
    %v2316 = vmul.f32 %v2313, 1.442695
    %v2317 = vpow.pop %v2316
    %v2318 = vmul.f32 %v2314, 1.442695
    %v2319 = vpow.pop %v2318
    %v2320 = vmul.f32 %v2315, 1.442695
    %v2321 = vpow.pop %v2320
    %v2322 = vadd.f32 %v2317, 1.0
    %v2323 = vadd.f32 %v2319, 1.0
    %v2324 = vadd.f32 %v2321, 1.0
    %v2325 = vrcp.pop %v2322
    %v2326 = vmul.f32 1.0, %v2325
    %v2327 = vrcp.pop %v2323
    %v2328 = vmul.f32 1.0, %v2327
    %v2329 = vrcp.pop %v2324
    %v2330 = vmul.f32 1.0, %v2329
    %v2331 = vtanh.pop %v2312
    %v2332 = vmul.f32 %v2328, %v2116
    %v2333 = vmul.f32 %v2326, %v2331
    %v2334 = vadd.f32 %v2332, %v2333
    %v2335 = vtanh.pop %v2334
    %v2336 = vmul.f32 %v2330, %v2335
    %v2337 = vpack.c.bf16 %v2336, %v2336
    %v2338 = vpack.c.bf16 %v2226, %v2226
    %2339 = vmatprep.subr.bf16.mxu0 %v904
    %2340 = vmatpush1.bf16.msra.mxu0 %v903
    %2341 = vmatprep.subr.bf16.mxu0 %v908
    %2342 = vmatpush1.bf16.msra.mxu0 %v907
    %2343 = vmatprep.subr.bf16.mxu0 %v912
    %2344 = vmatpush1.bf16.msra.mxu0 %v911
    %2345 = vmatprep.subr.bf16.mxu0 %v916
    %2346 = vmatpush1.bf16.msra.mxu0 %v915
    %2347 = vmatprep.subr.bf16.mxu0 %v920
    %2348 = vmatpush1.bf16.msra.mxu0 %v919
    %2349 = vmatprep.subr.bf16.mxu0 %v924
    %2350 = vmatpush1.bf16.msra.mxu0 %v923
    %2351 = vmatprep.subr.bf16.mxu0 %v928
    %2352 = vmatpush1.bf16.msra.mxu0 %v927
    %2353 = vmatprep.subr.bf16.mxu0 %v932
    %2354 = vmatpush1.bf16.msra.mxu0 %v931
    %2355 = vmatprep.subr.bf16.mxu0 %v936
    %2356 = vmatpush1.bf16.msra.mxu0 %v935
    %2357 = vmatprep.subr.bf16.mxu0 %v940
    %2358 = vmatpush1.bf16.msra.mxu0 %v939
    %2359 = vmatprep.subr.bf16.mxu0 %v944
    %2360 = vmatpush1.bf16.msra.mxu0 %v943
    %2361 = vmatprep.subr.bf16.mxu0 %v948
    %2362 = vmatpush1.bf16.msra.mxu0 %v947
    %2363 = vmatprep.subr.bf16.mxu0 %v952
    %2364 = vmatpush1.bf16.msra.mxu0 %v951
    %2365 = vmatprep.subr.bf16.mxu0 %v956
    %2366 = vmatpush1.bf16.msra.mxu0 %v955
    %2367 = vmatprep.subr.bf16.mxu0 %v960
    %2368 = vmatpush1.bf16.msra.mxu0 %v959
    %2369 = vmatprep.subr.bf16.mxu0 %v964
    %2370 = vmatpush1.bf16.msra.mxu0 %v963
    %2371 = vmatprep.mubr.bf16.mxu0 %v2338
    %2372 = vmatmul.mubr.bf16.gmra.mrb[0].mxu0 %v2337
    %v2373 = vpop.f32.mrb[0].mxu0
    %v2374 = vadd.f32 %v422, %v2373
    %v2375 = vpop.f32.mrb[0].mxu0
    %v2376 = vadd.f32 %v426, %v2375
    %v2377 = vpop.f32.mrb[0].mxu0
    %v2378 = vpop.f32.mrb[0].mxu0
    %2379 = vdwg.mxu0
    %2380 = vmatprep.subr.bf16.mxu0 %v906
    %2381 = vmatpush1.bf16.msra.mxu0 %v905
    %2382 = vmatprep.subr.bf16.mxu0 %v910
    %2383 = vmatpush1.bf16.msra.mxu0 %v909
    %2384 = vmatprep.subr.bf16.mxu0 %v914
    %2385 = vmatpush1.bf16.msra.mxu0 %v913
    %2386 = vmatprep.subr.bf16.mxu0 %v918
    %2387 = vmatpush1.bf16.msra.mxu0 %v917
    %2388 = vmatprep.subr.bf16.mxu0 %v922
    %2389 = vmatpush1.bf16.msra.mxu0 %v921
    %2390 = vmatprep.subr.bf16.mxu0 %v926
    %2391 = vmatpush1.bf16.msra.mxu0 %v925
    %2392 = vmatprep.subr.bf16.mxu0 %v930
    %2393 = vmatpush1.bf16.msra.mxu0 %v929
    %2394 = vmatprep.subr.bf16.mxu0 %v934
    %2395 = vmatpush1.bf16.msra.mxu0 %v933
    %2396 = vmatprep.subr.bf16.mxu0 %v938
    %2397 = vmatpush1.bf16.msra.mxu0 %v937
    %2398 = vmatprep.subr.bf16.mxu0 %v942
    %2399 = vmatpush1.bf16.msra.mxu0 %v941
    %2400 = vmatprep.subr.bf16.mxu0 %v946
    %2401 = vmatpush1.bf16.msra.mxu0 %v945
    %2402 = vmatprep.subr.bf16.mxu0 %v950
    %2403 = vmatpush1.bf16.msra.mxu0 %v949
    %2404 = vmatprep.subr.bf16.mxu0 %v954
    %2405 = vmatpush1.bf16.msra.mxu0 %v953
    %2406 = vmatprep.subr.bf16.mxu0 %v958
    %2407 = vmatpush1.bf16.msra.mxu0 %v957
    %2408 = vmatprep.subr.bf16.mxu0 %v962
    %2409 = vmatpush1.bf16.msra.mxu0 %v961
    %2410 = vmatprep.subr.bf16.mxu0 %v966
    %2411 = vmatpush1.bf16.msra.mxu0 %v965
    %2412 = vmatprep.mubr.bf16.mxu0 %v2338
    %2413 = vmatmul.mubr.bf16.gmra.mrb[0].mxu0 %v2337
    %v2414 = vpop.f32.mrb[0].mxu0
    %v2415 = vadd.f32 %v430, %v2414
    %v2416 = vpop.f32.mrb[0].mxu0
    %v2417 = vadd.f32 %v434, %v2416
    %v2418 = vpop.f32.mrb[0].mxu0
    %v2419 = vpop.f32.mrb[0].mxu0
    %2420 = vdwg.mxu0
    %v2421 = vxor.u32 %v2374, 2147483648
    %v2422 = vxor.u32 %v2376, 2147483648
    %v2423 = vxor.u32 %v2415, 2147483648
    %v2424 = vmul.f32 %v2421, 1.442695
    %v2425 = vpow.pop %v2424
    %v2426 = vmul.f32 %v2422, 1.442695
    %v2427 = vpow.pop %v2426
    %v2428 = vmul.f32 %v2423, 1.442695
    %v2429 = vpow.pop %v2428
    %v2430 = vadd.f32 %v2425, 1.0
    %v2431 = vadd.f32 %v2427, 1.0
    %v2432 = vadd.f32 %v2429, 1.0
    %v2433 = vrcp.pop %v2430
    %v2434 = vmul.f32 1.0, %v2433
    %v2435 = vrcp.pop %v2431
    %v2436 = vmul.f32 1.0, %v2435
    %v2437 = vrcp.pop %v2432
    %v2438 = vmul.f32 1.0, %v2437
    %v2439 = vtanh.pop %v2417
    %v2440 = vmul.f32 %v2436, %v2224
    %v2441 = vmul.f32 %v2434, %v2439
    %v2442 = vadd.f32 %v2440, %v2441
    %v2443 = vtanh.pop %v2442
    %v2444 = vmul.f32 %v2438, %v2443
    %2445 = vmatprep.subr.bf16.mxu0 %v536
    %2446 = vmatpush1.bf16.msra.mxu0 %v535
    %2447 = vmatprep.subr.bf16.mxu0 %v540
    %2448 = vmatpush1.bf16.msra.mxu0 %v539
    %2449 = vmatprep.subr.bf16.mxu0 %v544
    %2450 = vmatpush1.bf16.msra.mxu0 %v543
    %2451 = vmatprep.subr.bf16.mxu0 %v548
    %2452 = vmatpush1.bf16.msra.mxu0 %v547
    %2453 = vmatprep.subr.bf16.mxu0 %v552
    %2454 = vmatpush1.bf16.msra.mxu0 %v551
    %2455 = vmatprep.subr.bf16.mxu0 %v556
    %2456 = vmatpush1.bf16.msra.mxu0 %v555
    %2457 = vmatprep.subr.bf16.mxu0 %v560
    %2458 = vmatpush1.bf16.msra.mxu0 %v559
    %2459 = vmatprep.subr.bf16.mxu0 %v564
    %2460 = vmatpush1.bf16.msra.mxu0 %v563
    %2461 = vmatprep.subr.bf16.mxu0 0
    %2462 = vmatpush1.bf16.msra.mxu0 0
    %2463 = vmatprep.subr.bf16.mxu0 0
    %2464 = vmatpush1.bf16.msra.mxu0 0
    %2465 = vmatprep.subr.bf16.mxu0 0
    %2466 = vmatpush1.bf16.msra.mxu0 0
    %2467 = vmatprep.subr.bf16.mxu0 0
    %2468 = vmatpush1.bf16.msra.mxu0 0
    %2469 = vmatprep.subr.bf16.mxu0 0
    %2470 = vmatpush1.bf16.msra.mxu0 0
    %2471 = vmatprep.subr.bf16.mxu0 0
    %2472 = vmatpush1.bf16.msra.mxu0 0
    %2473 = vmatprep.subr.bf16.mxu0 0
    %2474 = vmatpush1.bf16.msra.mxu0 0
    %2475 = vmatprep.subr.bf16.mxu0 0
    %2476 = vmatpush1.bf16.msra.mxu0 0
    %2477 = vmatprep.mubr.bf16.mxu0 0
    %2478 = vmatmul.mubr.bf16.gmra.mrb[0].mxu0 %v2337
    %v2479 = vpop.f32.mrb[0].mxu0
    %v2480 = vadd.f32 0.0, %v2479
    %v2481 = vpop.f32.mrb[0].mxu0
    %v2482 = vadd.f32 0.0, %v2481
    %v2483 = vpop.f32.mrb[0].mxu0
    %v2484 = vpop.f32.mrb[0].mxu0
    %2485 = vdwg.mxu0
    %2486 = vmatprep.subr.bf16.mxu0 %v538
    %2487 = vmatpush1.bf16.msra.mxu0 %v537
    %2488 = vmatprep.subr.bf16.mxu0 %v542
    %2489 = vmatpush1.bf16.msra.mxu0 %v541
    %2490 = vmatprep.subr.bf16.mxu0 %v546
    %2491 = vmatpush1.bf16.msra.mxu0 %v545
    %2492 = vmatprep.subr.bf16.mxu0 %v550
    %2493 = vmatpush1.bf16.msra.mxu0 %v549
    %2494 = vmatprep.subr.bf16.mxu0 %v554
    %2495 = vmatpush1.bf16.msra.mxu0 %v553
    %2496 = vmatprep.subr.bf16.mxu0 %v558
    %2497 = vmatpush1.bf16.msra.mxu0 %v557
    %2498 = vmatprep.subr.bf16.mxu0 %v562
    %2499 = vmatpush1.bf16.msra.mxu0 %v561
    %2500 = vmatprep.subr.bf16.mxu0 %v566
    %2501 = vmatpush1.bf16.msra.mxu0 %v565
    %2502 = vmatprep.subr.bf16.mxu0 0
    %2503 = vmatpush1.bf16.msra.mxu0 0
    %2504 = vmatprep.subr.bf16.mxu0 0
    %2505 = vmatpush1.bf16.msra.mxu0 0
    %2506 = vmatprep.subr.bf16.mxu0 0
    %2507 = vmatpush1.bf16.msra.mxu0 0
    %2508 = vmatprep.subr.bf16.mxu0 0
    %2509 = vmatpush1.bf16.msra.mxu0 0
    %2510 = vmatprep.subr.bf16.mxu0 0
    %2511 = vmatpush1.bf16.msra.mxu0 0
    %2512 = vmatprep.subr.bf16.mxu0 0
    %2513 = vmatpush1.bf16.msra.mxu0 0
    %2514 = vmatprep.subr.bf16.mxu0 0
    %2515 = vmatpush1.bf16.msra.mxu0 0
    %2516 = vmatprep.subr.bf16.mxu0 0
    %2517 = vmatpush1.bf16.msra.mxu0 0
    %2518 = vmatprep.mubr.bf16.mxu0 0
    %2519 = vmatmul.mubr.bf16.gmra.mrb[0].mxu0 %v2337
    %v2520 = vpop.f32.mrb[0].mxu0
    %v2521 = vadd.f32 0.0, %v2520
    %v2522 = vpop.f32.mrb[0].mxu0
    %v2523 = vadd.f32 0.0, %v2522
    %v2524 = vpop.f32.mrb[0].mxu0
    %v2525 = vpop.f32.mrb[0].mxu0
    %2526 = vdwg.mxu0
    %v2527 = vadd.f32 %v340, %v2480
    %v2528 = vadd.f32 %v342, %v2482
    %v2529 = vadd.f32 %v413, %v2521
    %v2530 = vadd.f32 %v415, %v2523
    %v2531 = vxor.u32 %v2527, 2147483648
    %v2532 = vxor.u32 %v2528, 2147483648
    %v2533 = vxor.u32 %v2529, 2147483648
    %v2534 = vmul.f32 %v2531, 1.442695
    %v2535 = vpow.pop %v2534
    %v2536 = vmul.f32 %v2532, 1.442695
    %v2537 = vpow.pop %v2536
    %v2538 = vmul.f32 %v2533, 1.442695
    %v2539 = vpow.pop %v2538
    %v2540 = vadd.f32 %v2535, 1.0
    %v2541 = vadd.f32 %v2537, 1.0
    %v2542 = vadd.f32 %v2539, 1.0
    %v2543 = vrcp.pop %v2540
    %v2544 = vmul.f32 1.0, %v2543
    %v2545 = vrcp.pop %v2541
    %v2546 = vmul.f32 1.0, %v2545
    %v2547 = vrcp.pop %v2542
    %v2548 = vmul.f32 1.0, %v2547
    %v2549 = vtanh.pop %v2530
    %v2550 = vmul.f32 %v2546, %v2334
    %v2551 = vmul.f32 %v2544, %v2549
    %v2552 = vadd.f32 %v2550, %v2551
    %v2553 = vtanh.pop %v2552
    %v2554 = vmul.f32 %v2548, %v2553
    %v2555 = vpack.c.bf16 %v2554, %v2554
    %v2556 = vpack.c.bf16 %v2444, %v2444
    %2557 = vmatprep.subr.bf16.mxu0 %v904
    %2558 = vmatpush1.bf16.msra.mxu0 %v903
    %2559 = vmatprep.subr.bf16.mxu0 %v908
    %2560 = vmatpush1.bf16.msra.mxu0 %v907
    %2561 = vmatprep.subr.bf16.mxu0 %v912
    %2562 = vmatpush1.bf16.msra.mxu0 %v911
    %2563 = vmatprep.subr.bf16.mxu0 %v916
    %2564 = vmatpush1.bf16.msra.mxu0 %v915
    %2565 = vmatprep.subr.bf16.mxu0 %v920
    %2566 = vmatpush1.bf16.msra.mxu0 %v919
    %2567 = vmatprep.subr.bf16.mxu0 %v924
    %2568 = vmatpush1.bf16.msra.mxu0 %v923
    %2569 = vmatprep.subr.bf16.mxu0 %v928
    %2570 = vmatpush1.bf16.msra.mxu0 %v927
    %2571 = vmatprep.subr.bf16.mxu0 %v932
    %2572 = vmatpush1.bf16.msra.mxu0 %v931
    %2573 = vmatprep.subr.bf16.mxu0 %v936
    %2574 = vmatpush1.bf16.msra.mxu0 %v935
    %2575 = vmatprep.subr.bf16.mxu0 %v940
    %2576 = vmatpush1.bf16.msra.mxu0 %v939
    %2577 = vmatprep.subr.bf16.mxu0 %v944
    %2578 = vmatpush1.bf16.msra.mxu0 %v943
    %2579 = vmatprep.subr.bf16.mxu0 %v948
    %2580 = vmatpush1.bf16.msra.mxu0 %v947
    %2581 = vmatprep.subr.bf16.mxu0 %v952
    %2582 = vmatpush1.bf16.msra.mxu0 %v951
    %2583 = vmatprep.subr.bf16.mxu0 %v956
    %2584 = vmatpush1.bf16.msra.mxu0 %v955
    %2585 = vmatprep.subr.bf16.mxu0 %v960
    %2586 = vmatpush1.bf16.msra.mxu0 %v959
    %2587 = vmatprep.subr.bf16.mxu0 %v964
    %2588 = vmatpush1.bf16.msra.mxu0 %v963
    %2589 = vmatprep.mubr.bf16.mxu0 %v2556
    %2590 = vmatmul.mubr.bf16.gmra.mrb[0].mxu0 %v2555
    %v2591 = vpop.f32.mrb[0].mxu0
    %v2592 = vadd.f32 %v422, %v2591
    %v2593 = vpop.f32.mrb[0].mxu0
    %v2594 = vadd.f32 %v426, %v2593
    %v2595 = vpop.f32.mrb[0].mxu0
    %v2596 = vpop.f32.mrb[0].mxu0
    %2597 = vdwg.mxu0
    %2598 = vmatprep.subr.bf16.mxu0 %v906
    %2599 = vmatpush1.bf16.msra.mxu0 %v905
    %2600 = vmatprep.subr.bf16.mxu0 %v910
    %2601 = vmatpush1.bf16.msra.mxu0 %v909
    %2602 = vmatprep.subr.bf16.mxu0 %v914
    %2603 = vmatpush1.bf16.msra.mxu0 %v913
    %2604 = vmatprep.subr.bf16.mxu0 %v918
    %2605 = vmatpush1.bf16.msra.mxu0 %v917
    %2606 = vmatprep.subr.bf16.mxu0 %v922
    %2607 = vmatpush1.bf16.msra.mxu0 %v921
    %2608 = vmatprep.subr.bf16.mxu0 %v926
    %2609 = vmatpush1.bf16.msra.mxu0 %v925
    %2610 = vmatprep.subr.bf16.mxu0 %v930
    %2611 = vmatpush1.bf16.msra.mxu0 %v929
    %2612 = vmatprep.subr.bf16.mxu0 %v934
    %2613 = vmatpush1.bf16.msra.mxu0 %v933
    %2614 = vmatprep.subr.bf16.mxu0 %v938
    %2615 = vmatpush1.bf16.msra.mxu0 %v937
    %2616 = vmatprep.subr.bf16.mxu0 %v942
    %2617 = vmatpush1.bf16.msra.mxu0 %v941
    %2618 = vmatprep.subr.bf16.mxu0 %v946
    %2619 = vmatpush1.bf16.msra.mxu0 %v945
    %2620 = vmatprep.subr.bf16.mxu0 %v950
    %2621 = vmatpush1.bf16.msra.mxu0 %v949
    %2622 = vmatprep.subr.bf16.mxu0 %v954
    %2623 = vmatpush1.bf16.msra.mxu0 %v953
    %2624 = vmatprep.subr.bf16.mxu0 %v958
    %2625 = vmatpush1.bf16.msra.mxu0 %v957
    %2626 = vmatprep.subr.bf16.mxu0 %v962
    %2627 = vmatpush1.bf16.msra.mxu0 %v961
    %2628 = vmatprep.subr.bf16.mxu0 %v966
    %2629 = vmatpush1.bf16.msra.mxu0 %v965
    %2630 = vmatprep.mubr.bf16.mxu0 %v2556
    %2631 = vmatmul.mubr.bf16.gmra.mrb[0].mxu0 %v2555
    %v2632 = vpop.f32.mrb[0].mxu0
    %v2633 = vadd.f32 %v430, %v2632
    %v2634 = vpop.f32.mrb[0].mxu0
    %v2635 = vadd.f32 %v434, %v2634
    %v2636 = vpop.f32.mrb[0].mxu0
    %v2637 = vpop.f32.mrb[0].mxu0
    %2638 = vdwg.mxu0
    %v2639 = vxor.u32 %v2592, 2147483648
    %v2640 = vxor.u32 %v2594, 2147483648
    %v2641 = vxor.u32 %v2633, 2147483648
    %v2642 = vmul.f32 %v2639, 1.442695
    %v2643 = vpow.pop %v2642
    %v2644 = vmul.f32 %v2640, 1.442695
    %v2645 = vpow.pop %v2644
    %v2646 = vmul.f32 %v2641, 1.442695
    %v2647 = vpow.pop %v2646
    %v2648 = vadd.f32 %v2643, 1.0
    %v2649 = vadd.f32 %v2645, 1.0
    %v2650 = vadd.f32 %v2647, 1.0
    %v2651 = vrcp.pop %v2648
    %v2652 = vmul.f32 1.0, %v2651
    %v2653 = vrcp.pop %v2649
    %v2654 = vmul.f32 1.0, %v2653
    %v2655 = vrcp.pop %v2650
    %v2656 = vmul.f32 1.0, %v2655
    %v2657 = vtanh.pop %v2635
    %v2658 = vmul.f32 %v2654, %v2442
    %v2659 = vmul.f32 %v2652, %v2657
    %v2660 = vadd.f32 %v2658, %v2659
    %v2661 = vtanh.pop %v2660
    %v2662 = vmul.f32 %v2656, %v2661
    %v2663 = vpack.c.bf16 %v2662, %v2662
    %v2664 = vld [vmem:[%s7] sm:$0x1]
    %v2666 = vlaneseq
    %v2667 = vshrl.u32 %v2666, 7
    %v2668 = vsub.s32 0, %v2667
    %v2669 = vrot.slane %v2664, %v2668
    %v2687 = vunpack.c.l.b16 %v168
    %v2688 = vunpack.c.l.b16 %v169
    %v2689 = vunpack.c.l.b16 %v170
    %v2690 = vunpack.c.l.b16 %v171
    %v2691 = vunpack.c.l.b16 %v172
    %v2692 = vunpack.c.l.b16 %v173
    %v2693 = vunpack.c.l.b16 %v174
    %v2694 = vunpack.c.l.b16 %v175
    %v2695 = vunpack.c.l.b16 %v176
    %v2696 = vunpack.c.l.b16 %v177
    %v2697 = vunpack.c.l.b16 %v178
    %v2698 = vunpack.c.l.b16 %v179
    %v2699 = vunpack.c.l.b16 %v180
    %v2700 = vunpack.c.l.b16 %v181
    %v2701 = vunpack.c.l.b16 %v182
    %v2702 = vunpack.c.l.b16 %v183
    %v2703 = vpack.c.b16 %v2688, %v2687
    %v2704 = vpack.c.b16 %v2690, %v2689
    %v2705 = vpack.c.b16 %v2692, %v2691
    %v2706 = vpack.c.b16 %v2694, %v2693
    %v2707 = vpack.c.b16 %v2696, %v2695
    %v2708 = vpack.c.b16 %v2698, %v2697
    %v2709 = vpack.c.b16 %v2700, %v2699
    %v2710 = vpack.c.b16 %v2702, %v2701
    %2719 = vmatprep.subr.bf16.mxu0 0
    %2720 = vmatpush1.bf16.msra.mxu0 %v2703
    %2721 = vmatprep.subr.bf16.mxu0 0
    %2722 = vmatpush1.bf16.msra.mxu0 %v2704
    %2723 = vmatprep.subr.bf16.mxu0 0
    %2724 = vmatpush1.bf16.msra.mxu0 %v2705
    %2725 = vmatprep.subr.bf16.mxu0 0
    %2726 = vmatpush1.bf16.msra.mxu0 %v2706
    %2727 = vmatprep.subr.bf16.mxu0 0
    %2728 = vmatpush1.bf16.msra.mxu0 %v2707
    %2729 = vmatprep.subr.bf16.mxu0 0
    %2730 = vmatpush1.bf16.msra.mxu0 %v2708
    %2731 = vmatprep.subr.bf16.mxu0 0
    %2732 = vmatpush1.bf16.msra.mxu0 %v2709
    %2733 = vmatprep.subr.bf16.mxu0 0
    %2734 = vmatpush1.bf16.msra.mxu0 %v2710
    %2735 = vmatprep.subr.bf16.mxu0 0
    %2736 = vmatpush1.bf16.msra.mxu0 0
    %2737 = vmatprep.subr.bf16.mxu0 0
    %2738 = vmatpush1.bf16.msra.mxu0 0
    %2739 = vmatprep.subr.bf16.mxu0 0
    %2740 = vmatpush1.bf16.msra.mxu0 0
    %2741 = vmatprep.subr.bf16.mxu0 0
    %2742 = vmatpush1.bf16.msra.mxu0 0
    %2743 = vmatprep.subr.bf16.mxu0 0
    %2744 = vmatpush1.bf16.msra.mxu0 0
    %2745 = vmatprep.subr.bf16.mxu0 0
    %2746 = vmatpush1.bf16.msra.mxu0 0
    %2747 = vmatprep.subr.bf16.mxu0 0
    %2748 = vmatpush1.bf16.msra.mxu0 0
    %2749 = vmatprep.subr.bf16.mxu0 0
    %2750 = vmatpush1.bf16.msra.mxu0 0
    %2751 = vmatprep.mubr.bf16.mxu0 0
    %2752 = vmatmul.mubr.bf16.gmra.mrb[0].mxu0 %v2663
    %v2753 = vpop.f32.mrb[0].mxu0
    %v2754 = vadd.f32 %v2669, %v2753
    %v2755 = vpop.f32.mrb[0].mxu0
    %v2756 = vpop.f32.mrb[0].mxu0
    %v2757 = vpop.f32.mrb[0].mxu0
    %2758 = vdwg.mxu0
    %2759 = vst [vmem:[#allocation8] sm:$0xff] %v2754
    // Predicated region
    $region46: #{tpu_custom_call.1} parent=1 // pred_check
      _
    $region47: #{tpu_custom_call.1} parent=1 // pred_check_branch
      %2761 = sbr.rel (0) target = $region49
    $region48: #{tpu_custom_call.1} parent=1 // pred_region
      %s2763 = ssub.s32 128, 128
      %2764 = vsyncadd [#allocation4], %s2763
      %s2766 = sshll.u32 [#allocation8], 4
      %s2767 = int_to_ptr.vmem [resolvable:$true] %s2766
      %2769 = dma.vmem_to_hbm [thread:$0]  %s2767, 128, %s8, [#allocation4]
    $region49: #{tpu_custom_call.1} parent=1 // pred_fallthru
      _
    // Predicated region
    $region50: #{tpu_custom_call.1} parent=1 // pred_check
      _
    $region51: #{tpu_custom_call.1} parent=1 // pred_check_branch
      %2771 = sbr.rel (0) target = $region53
    $region52: #{tpu_custom_call.1} parent=1 // pred_region
      %2772 = dma.done [#allocation4], 128
    $region53: #{tpu_custom_call.1} parent=1 // pred_fallthru
      _
    %2773 = vsyncpa [#allocation3], 1
    %2774 = vsyncpa [#allocation6], 1
    %2775 = vsyncpa [#allocation4], 1

</llo_original>
